<compile_context>
chip_gen: v6e
topology: v6e:2x2x1
jax: 0.10.0
libtpu: 0.0.40
codegen_flags: <defaults>
</compile_context>

<pallas_src>
import functools

import jax
import jax.numpy as jnp
from jax.experimental import pallas as pl
from jax.experimental.pallas import tpu as pltpu

_EPS = 1e-5
_VMEM_LIMIT_BYTES = 48 * 1024 * 1024   # < 64 MiB physical on v7x; fine on v5e/v6e


# ------------------------------ tiling helpers --------------------------------

def _round_up(v, m):
    return -(-v // m) * m


def _pick_tm(m, tm_max=512):
    """M tile for the 1x1-conv matmuls: one big tile when it fits, else 512
    (8-aligned); at production sizes this still gives many grid steps."""
    return m if m <= tm_max else tm_max


def _pick_th(ho, wo, cp, th_max=32, panel_budget=6 << 20):
    """Output-row tile for conv2; bounds the bf16 im2col panel (th*wo, 9*cp)."""
    cap = max(1, panel_budget // (wo * 9 * cp * 2))
    tmax = min(th_max, cap, ho)
    if tmax >= ho:
        return ho
    for th in range(tmax, 0, -1):            # prefer an exact divisor of Ho
        if ho % th == 0 and (th * wo) % 8 == 0:
            return th
    for th in range(tmax, 0, -1):            # else any sublane-aligned tile
        if (th * wo) % 8 == 0:
            return th
    return ho                                # fall back: whole image per step


# ------------------------------ Pallas kernels --------------------------------

def _mm_bias_kernel(x_ref, w_ref, b_ref, o_ref, *, relu):
    # (tm, K) @ (K, N) in bf16 on the MXU, f32 accumulation, fused bias (+ReLU).
    acc = jnp.dot(x_ref[...], w_ref[...], preferred_element_type=jnp.float32)
    acc = acc + b_ref[...]
    if relu:
        acc = jnp.maximum(acc, 0.0)
    o_ref[...] = acc.astype(o_ref.dtype)


def matmul_bias(x2d, w, bias, *, relu, out_dtype, tm_max=512):
    """y = act(x2d @ w + bias); BN scale is pre-folded into w."""
    m, k = x2d.shape
    n = w.shape[1]
    tm = _pick_tm(m, tm_max)
    return pl.pallas_call(
        functools.partial(_mm_bias_kernel, relu=relu),
        out_shape=jax.ShapeDtypeStruct((m, n), out_dtype),
        grid=(pl.cdiv(m, tm),),
        in_specs=[
            pl.BlockSpec((tm, k), lambda i: (i, 0)),   # activation tile (bf16)
            pl.BlockSpec((k, n), lambda i: (0, 0)),    # folded weight  (bf16)
            pl.BlockSpec((1, n), lambda i: (0, 0)),    # folded bias    (f32)
        ],
        out_specs=pl.BlockSpec((tm, n), lambda i: (i, 0)),
        compiler_params=pltpu.CompilerParams(
            dimension_semantics=("parallel",),
            vmem_limit_bytes=_VMEM_LIMIT_BYTES),
    )(x2d, w, bias)


def _conv2_kernel(p00_ref, p01_ref, p10_ref, p11_ref, h10_ref, h11_ref,
                  w_ref, b_ref, o_ref, *, th, wo, cp):
    # 3x3 stride-2 conv over one (batch, row-tile) block, via a single MXU dot
    # on an im2col panel built from contiguous slices of the 2x2 phase planes.
    r = pl.program_id(1)
    p00 = p00_ref[0, 0]                                   # (th, wo, cp)
    p01 = p01_ref[0, 0]
    p10 = p10_ref[0, 0]
    p11 = p11_ref[0, 0]
    # Top-halo rows of the odd-row phases; r == 0 -> conv2's zero-padding row.
    h10 = h10_ref[0, 0]                                   # (1, wo, cp)
    h11 = h11_ref[0, 0]
    h10 = jnp.where(r > 0, h10, jnp.zeros_like(h10))
    h11 = jnp.where(r > 0, h11, jnp.zeros_like(h11))

    a10 = jnp.concatenate([h10, p10], axis=0)             # (th+1, wo,   cp)
    a11 = jnp.concatenate([h11, p11], axis=0)             # (th+1, wo,   cp)
    zc0 = jnp.zeros((th, 1, cp), p00.dtype)               # left zero-pad column
    zc1 = jnp.zeros((th + 1, 1, cp), p00.dtype)
    a01 = jnp.concatenate([zc0, p01], axis=1)             # (th,   wo+1, cp)
    a11 = jnp.concatenate([zc1, a11], axis=1)             # (th+1, wo+1, cp)

    taps = [                                  # tap order (dy, dx), row-major
        a11[0:th, 0:wo],          # (0,0) plane(1,1)[yo-1, xo-1]
        a10[0:th, :],             # (0,1) plane(1,0)[yo-1, xo  ]
        a11[0:th, 1:wo + 1],      # (0,2) plane(1,1)[yo-1, xo  ]
        a01[:, 0:wo],             # (1,0) plane(0,1)[yo,   xo-1]
        p00,                      # (1,1) plane(0,0)[yo,   xo  ]
        a01[:, 1:wo + 1],         # (1,2) plane(0,1)[yo,   xo  ]
        a11[1:th + 1, 0:wo],      # (2,0) plane(1,1)[yo,   xo-1]
        a10[1:th + 1, :],         # (2,1) plane(1,0)[yo,   xo  ]
        a11[1:th + 1, 1:wo + 1],  # (2,2) plane(1,1)[yo,   xo  ]
    ]
    panel = jnp.concatenate([t.reshape(th * wo, cp) for t in taps], axis=1)
    acc = jnp.dot(panel, w_ref[...], preferred_element_type=jnp.float32)
    acc = acc + b_ref[...]
    o_ref[0] = jnp.maximum(acc, 0.0).astype(o_ref.dtype)


def conv2_bn_relu(h1p, w_mat, bias, *, ho, wo, out_dtype):
    """h1p: (N, 4, Ho, Wo, Cp) conv1 output in 2x2 phase layout.
       w_mat: (9*Cp, Cp) tap-major folded weights.  Returns (N, Ho*Wo, Cp)."""
    n, _, _, _, cp = h1p.shape
    th = _pick_th(ho, wo, cp)

    def halo_row(r):
        return jnp.maximum(r * th - 1, 0)

    return pl.pallas_call(
        functools.partial(_conv2_kernel, th=th, wo=wo, cp=cp),
        out_shape=jax.ShapeDtypeStruct((n, ho * wo, cp), out_dtype),
        grid=(n, pl.cdiv(ho, th)),
        in_specs=[
            pl.BlockSpec((1, 1, th, wo, cp), lambda b, r: (b, 0, r, 0, 0)),
            pl.BlockSpec((1, 1, th, wo, cp), lambda b, r: (b, 1, r, 0, 0)),
            pl.BlockSpec((1, 1, th, wo, cp), lambda b, r: (b, 2, r, 0, 0)),
            pl.BlockSpec((1, 1, th, wo, cp), lambda b, r: (b, 3, r, 0, 0)),
            pl.BlockSpec((1, 1, 1, wo, cp), lambda b, r: (b, 2, halo_row(r), 0, 0)),
            pl.BlockSpec((1, 1, 1, wo, cp), lambda b, r: (b, 3, halo_row(r), 0, 0)),
            pl.BlockSpec((9 * cp, cp), lambda b, r: (0, 0)),
            pl.BlockSpec((1, cp), lambda b, r: (0, 0)),
        ],
        out_specs=pl.BlockSpec((1, th * wo, cp), lambda b, r: (b, r, 0)),
        compiler_params=pltpu.CompilerParams(
            dimension_semantics=("parallel", "parallel"),
            vmem_limit_bytes=_VMEM_LIMIT_BYTES),
    )(h1p, h1p, h1p, h1p, h1p, h1p, w_mat, bias)


def _conv3_down_kernel(h2_ref, w3_ref, xd_ref, wd_ref, b_ref, o_ref):
    # conv3 (1x1) + fused downsample branch (1x1 stride-2), combined bias, ReLU.
    acc = jnp.dot(h2_ref[...], w3_ref[...], preferred_element_type=jnp.float32)
    acc = acc + jnp.dot(xd_ref[...], wd_ref[...], preferred_element_type=jnp.float32)
    acc = acc + b_ref[...]
    o_ref[...] = jnp.maximum(acc, 0.0).astype(o_ref.dtype)


def conv3_residual(h2, w3, xd, wd, bias, *, out_dtype, tm_max=512):
    m, kw = h2.shape
    cout = w3.shape[1]
    cin = xd.shape[1]
    tm = _pick_tm(m, tm_max)
    return pl.pallas_call(
        _conv3_down_kernel,
        out_shape=jax.ShapeDtypeStruct((m, cout), out_dtype),
        grid=(pl.cdiv(m, tm),),
        in_specs=[
            pl.BlockSpec((tm, kw), lambda i: (i, 0)),     # h2 tile (bf16)
            pl.BlockSpec((kw, cout), lambda i: (0, 0)),   # folded w3 (bf16)
            pl.BlockSpec((tm, cin), lambda i: (i, 0)),    # strided input tile (bf16)
            pl.BlockSpec((cin, cout), lambda i: (0, 0)),  # folded w_down (bf16)
            pl.BlockSpec((1, cout), lambda i: (0, 0)),    # combined bias (f32)
        ],
        out_specs=pl.BlockSpec((tm, cout), lambda i: (i, 0)),
        compiler_params=pltpu.CompilerParams(
            dimension_semantics=("parallel",),
            vmem_limit_bytes=_VMEM_LIMIT_BYTES),
    )(h2, w3, xd, wd, bias)


# --------------------------- parameter handling -------------------------------

def _fold_bn(gamma, beta, mean, var):
    s = gamma / jnp.sqrt(var + _EPS)
    return s, beta - mean * s


def init_params(key, in_channels, out_channels, base_width=64):
    width = int(out_channels * (base_width / 64))
    ks = jax.random.split(key, 20)
    i = iter(range(20))

    def conv_w(k, o, c, kh, kw):
        return 0.1 * jax.random.normal(k, (o, c, kh, kw), jnp.float32)

    def bn(k1, k2, k3, k4, c):
        gamma = 1.0 + 0.1 * jax.random.normal(k1, (c,), jnp.float32)
        beta = 0.1 * jax.random.normal(k2, (c,), jnp.float32)
        mean = 0.1 * jax.random.normal(k3, (c,), jnp.float32)
        var = jax.random.uniform(k4, (c,), jnp.float32, 0.5, 1.5)
        return gamma, beta, mean, var

    p = {
        "w_down": conv_w(ks[next(i)], out_channels, in_channels, 1, 1),
        "bn_down": bn(ks[next(i)], ks[next(i)], ks[next(i)], ks[next(i)], out_channels),
        "w1": conv_w(ks[next(i)], width, in_channels, 1, 1),
        "bn1": bn(ks[next(i)], ks[next(i)], ks[next(i)], ks[next(i)], width),
        "w2": conv_w(ks[next(i)], width, width, 3, 3),
        "bn2": bn(ks[next(i)], ks[next(i)], ks[next(i)], ks[next(i)], width),
        "w3": conv_w(ks[next(i)], out_channels, width, 1, 1),
        "bn3": bn(ks[next(i)], ks[next(i)], ks[next(i)], ks[next(i)], out_channels),
    }
    return p, width


# ------------------------------- forward pass ----------------------------------

def encoder_bottleneck_forward(x_nchw, p, stride=2):
    """Pallas-backed forward. Input/output NCHW (f32) to match PyTorch."""
    assert stride == 2, "EncoderBottleneck requires stride=2 for shapes to match"
    N, Cin, H, W = x_nchw.shape
    assert H % 2 == 0 and W % 2 == 0, "even spatial dims required"
    Cout = p["w_down"].shape[0]
    width = p["w1"].shape[0]
    Ho, Wo = H // 2, W // 2
    width_p = _round_up(width, 128)
    cout_p = _round_up(Cout, 128)

    # Fold BN: scale goes into the (f32) weights before the bf16 cast, the
    # remaining per-channel bias stays f32.  Channels are zero-padded to 128.
    s_d, b_d = _fold_bn(*p["bn_down"])
    s_1, b_1 = _fold_bn(*p["bn1"])
    s_2, b_2 = _fold_bn(*p["bn2"])
    s_3, b_3 = _fold_bn(*p["bn3"])

    w1 = p["w1"][:, :, 0, 0].T * s_1[None, :]                       # (Cin, width)
    w1 = jnp.pad(w1, ((0, 0), (0, width_p - width))).astype(jnp.bfloat16)
    b1 = jnp.pad(b_1, (0, width_p - width)).reshape(1, -1).astype(jnp.float32)

    w2 = jnp.transpose(p["w2"], (2, 3, 1, 0)) * s_2[None, None, None, :]   # (3,3,I,O)
    w2 = jnp.pad(w2, ((0, 0), (0, 0), (0, width_p - width), (0, width_p - width)))
    w2 = w2.reshape(9 * width_p, width_p).astype(jnp.bfloat16)       # tap-major K
    b2 = jnp.pad(b_2, (0, width_p - width)).reshape(1, -1).astype(jnp.float32)

    w3 = p["w3"][:, :, 0, 0].T * s_3[None, :]                        # (width, Cout)
    w3 = jnp.pad(w3, ((0, width_p - width), (0, cout_p - Cout))).astype(jnp.bfloat16)
    wd = p["w_down"][:, :, 0, 0].T * s_d[None, :]                    # (Cin, Cout)
    wd = jnp.pad(wd, ((0, 0), (0, cout_p - Cout))).astype(jnp.bfloat16)
    b3d = jnp.pad(b_3 + b_d, (0, cout_p - Cout)).reshape(1, -1).astype(jnp.float32)

    # 2x2 phase decomposition of x (single cheap layout pass over the
    # Cin-channel input, directly from NCHW): xp[n, 2*py+px, i, j] = x[n, :, 2i+py, 2j+px].
    xp = x_nchw.reshape(N, Cin, Ho, 2, Wo, 2)
    xp = jnp.transpose(xp, (0, 3, 5, 2, 4, 1)).reshape(N, 4, Ho, Wo, Cin)
    xp = xp.astype(jnp.bfloat16)

    # ---- conv1 (1x1) + BN + ReLU ---- output lands directly in phase layout.
    h1p = matmul_bias(xp.reshape(-1, Cin), w1, b1, relu=True, out_dtype=jnp.bfloat16)
    h1p = h1p.reshape(N, 4, Ho, Wo, width_p)

    # ---- conv2 (3x3, stride 2, pad 1) + BN + ReLU ---- one K=9*Cp MXU dot/tile.
    h2 = conv2_bn_relu(h1p, w2, b2, ho=Ho, wo=Wo, out_dtype=jnp.bfloat16)
    h2 = h2.reshape(N * Ho * Wo, width_p)

    # ---- conv3 (1x1) + BN, fused downsample (1x1 s2 == phase 0), residual, ReLU ----
    xd = xp[:, 0].reshape(N * Ho * Wo, Cin)
    out = conv3_residual(h2, w3, xd, wd, b3d, out_dtype=jnp.float32)
    out = out.reshape(N, Ho, Wo, cout_p)[..., :Cout]
    return jnp.transpose(out, (0, 3, 1, 2))                          # back to NCHW


# ------------------------------ pure-JAX reference -----------------------------

def reference_forward(x_nchw, p, stride=2):
    def conv(x, w, s, pad):
        return jax.lax.conv_general_dilated(
            x, w, (s, s), [(pad, pad), (pad, pad)],
            dimension_numbers=("NCHW", "OIHW", "NCHW"))

    def bn(x, params):
        gamma, beta, mean, var = params
        sc = gamma / jnp.sqrt(var + _EPS)
        return x * sc[None, :, None, None] + (beta - mean * sc)[None, :, None, None]

    x = x_nchw.astype(jnp.float32)
    x_down = bn(conv(x, p["w_down"], stride, 0), p["bn_down"])
    h = jax.nn.relu(bn(conv(x, p["w1"], 1, 0), p["bn1"]))
    h = jax.nn.relu(bn(conv(h, p["w2"], 2, 1), p["bn2"]))
    h = bn(conv(h, p["w3"], 1, 0), p["bn3"])
    return jax.nn.relu(h + x_down)


# ------------------------------------- main -------------------------------------

if __name__ == "__main__":
    key = jax.random.PRNGKey(0)
    k_x, k_p = jax.random.split(key)

    in_channels, out_channels, stride = 4, 8, 2
    x = jax.random.normal(k_x, (2, in_channels, 16, 16), jnp.float32)  # NCHW

    params, width = init_params(k_p, in_channels, out_channels)

    fwd = jax.jit(functools.partial(encoder_bottleneck_forward, stride=stride))
    out = jax.block_until_ready(fwd(x, params))

    ref = jax.block_until_ready(reference_forward(x, params, stride=stride))
    assert out.shape == ref.shape == (2, out_channels, 8, 8), (out.shape, ref.shape)
    err = float(jnp.max(jnp.abs(out - ref)))
    # bf16 matmul inputs + bf16 intermediates vs. an all-f32 reference -> loosened tol.
    assert jnp.allclose(out, ref, atol=3e-2, rtol=3e-2), f"max|diff|={err}"

    print("KERNEL_OK")
</pallas_src>

<mosaic_0001>
module attributes {stable_mosaic.version = 11 : i64} {
  func.func @_mm_bias_kernel(%arg0: i32, %arg1: memref<512x4xbf16, #tpu.memory_space<vmem>>, %arg2: memref<4x128xbf16, #tpu.memory_space<vmem>>, %arg3: memref<1x128xf32, #tpu.memory_space<vmem>>, %arg4: memref<512x128xbf16, #tpu.memory_space<vmem>>) attributes {dimension_semantics = [#tpu.dimension_semantics<parallel>], iteration_bounds = array<i64: 1>, scalar_prefetch = 0 : i64, scratch_operands = 0 : i64, tpu.core_type = #tpu.core_type<tc>, window_params = [{transform_indices = @transform_0, window_bounds = array<i64: 512, 4>}, {pipeline_mode = #tpu.pipeline_mode<synchronous>, transform_indices = @transform_1, window_bounds = array<i64: 4, 128>}, {pipeline_mode = #tpu.pipeline_mode<synchronous>, transform_indices = @transform_2, window_bounds = array<i64: 1, 128>}, {transform_indices = @transform_3, window_bounds = array<i64: 512, 128>}]} {
    %c0 = arith.constant 0 : index
    %c0_0 = arith.constant 0 : index
    %0 = vector.load %arg1[%c0, %c0_0] : memref<512x4xbf16, #tpu.memory_space<vmem>>, vector<512x4xbf16>
    %c0_1 = arith.constant 0 : index
    %c0_2 = arith.constant 0 : index
    %1 = vector.load %arg2[%c0_1, %c0_2] : memref<4x128xbf16, #tpu.memory_space<vmem>>, vector<4x128xbf16>
    %cst = arith.constant dense<0.000000e+00> : vector<512x128xf32>
    %2 = tpu.matmul %0, %1, %cst {dimension_numbers = #tpu.dot_dimension_numbers<[1], [0], [0], [1], [0, 0, 1, 1], [], []>} : vector<512x4xbf16>, vector<4x128xbf16>, vector<512x128xf32> -> vector<512x128xf32>
    %c0_3 = arith.constant 0 : index
    %c0_4 = arith.constant 0 : index
    %3 = vector.load %arg3[%c0_3, %c0_4] : memref<1x128xf32, #tpu.memory_space<vmem>>, vector<1x128xf32>
    %4 = vector.broadcast %3 : vector<1x128xf32> to vector<512x128xf32>
    %5 = arith.addf %2, %4 : vector<512x128xf32>
    %cst_5 = arith.constant 0.000000e+00 : f32
    %6 = vector.broadcast %cst_5 : f32 to vector<512x128xf32>
    %7 = arith.maximumf %5, %6 : vector<512x128xf32>
    %8 = arith.truncf %7 : vector<512x128xf32> to vector<512x128xbf16>
    %c0_6 = arith.constant 0 : index
    %c0_7 = arith.constant 0 : index
    %9 = vector.load %arg4[%c0_6, %c0_7] : memref<512x128xbf16, #tpu.memory_space<vmem>>, vector<512x128xbf16>
    tpu.vector_store %arg4[%c0_6, %c0_7], %8 {strides = array<i32>} : memref<512x128xbf16, #tpu.memory_space<vmem>>, vector<512x128xbf16>,
    return
  }
  func.func @transform_0(%arg0: i32) -> (i32, i32) {
    %c0_i32 = arith.constant 0 : i32
    %c0_i32_0 = arith.constant 0 : i32
    return %arg0, %c0_i32 : i32, i32
  }
  func.func @transform_1(%arg0: i32) -> (i32, i32) {
    %c0_i32 = arith.constant 0 : i32
    %c0_i32_0 = arith.constant 0 : i32
    %c0_i32_1 = arith.constant 0 : i32
    return %c0_i32, %c0_i32_0 : i32, i32
  }
  func.func @transform_2(%arg0: i32) -> (i32, i32) {
    %c0_i32 = arith.constant 0 : i32
    %c0_i32_0 = arith.constant 0 : i32
    %c0_i32_1 = arith.constant 0 : i32
    return %c0_i32, %c0_i32_0 : i32, i32
  }
  func.func @transform_3(%arg0: i32) -> (i32, i32) {
    %c0_i32 = arith.constant 0 : i32
    %c0_i32_0 = arith.constant 0 : i32
    return %arg0, %c0_i32 : i32, i32
  }
}

module attributes {stable_mosaic.version = 11 : i64} {
  func.func @_conv2_kernel(%arg0: i32, %arg1: i32, %arg2: memref<1x1x8x8x128xbf16, #tpu.memory_space<vmem>>, %arg3: memref<1x1x8x8x128xbf16, #tpu.memory_space<vmem>>, %arg4: memref<1x1x8x8x128xbf16, #tpu.memory_space<vmem>>, %arg5: memref<1x1x8x8x128xbf16, #tpu.memory_space<vmem>>, %arg6: memref<1x1x1x8x128xbf16, #tpu.memory_space<vmem>>, %arg7: memref<1x1x1x8x128xbf16, #tpu.memory_space<vmem>>, %arg8: memref<1152x128xbf16, #tpu.memory_space<vmem>>, %arg9: memref<1x128xf32, #tpu.memory_space<vmem>>, %arg10: memref<1x64x128xbf16, #tpu.memory_space<vmem>>) attributes {dimension_semantics = [#tpu.dimension_semantics<parallel>, #tpu.dimension_semantics<parallel>], iteration_bounds = array<i64: 2, 1>, scalar_prefetch = 0 : i64, scratch_operands = 0 : i64, tpu.core_type = #tpu.core_type<tc>, window_params = [{transform_indices = @transform_0, window_bounds = array<i64: 1, 1, 8, 8, 128>}, {transform_indices = @transform_1, window_bounds = array<i64: 1, 1, 8, 8, 128>}, {transform_indices = @transform_2, window_bounds = array<i64: 1, 1, 8, 8, 128>}, {transform_indices = @transform_3, window_bounds = array<i64: 1, 1, 8, 8, 128>}, {transform_indices = @transform_4, window_bounds = array<i64: 1, 1, 1, 8, 128>}, {transform_indices = @transform_5, window_bounds = array<i64: 1, 1, 1, 8, 128>}, {pipeline_mode = #tpu.pipeline_mode<synchronous>, transform_indices = @transform_6, window_bounds = array<i64: 1152, 128>}, {pipeline_mode = #tpu.pipeline_mode<synchronous>, transform_indices = @transform_7, window_bounds = array<i64: 1, 128>}, {transform_indices = @transform_8, window_bounds = array<i64: 1, 64, 128>}]} {
    %c0 = arith.constant 0 : index
    %c0_0 = arith.constant 0 : index
    %c0_1 = arith.constant 0 : index
    %c0_2 = arith.constant 0 : index
    %c0_3 = arith.constant 0 : index
    %0 = vector.load %arg2[%c0, %c0_0, %c0_1, %c0_2, %c0_3] : memref<1x1x8x8x128xbf16, #tpu.memory_space<vmem>>, vector<1x1x8x8x128xbf16>
    %1 = vector.shape_cast %0 : vector<1x1x8x8x128xbf16> to vector<8x8x128xbf16>
    %c0_4 = arith.constant 0 : index
    %c0_5 = arith.constant 0 : index
    %c0_6 = arith.constant 0 : index
    %c0_7 = arith.constant 0 : index
    %c0_8 = arith.constant 0 : index
    %2 = vector.load %arg3[%c0_4, %c0_5, %c0_6, %c0_7, %c0_8] : memref<1x1x8x8x128xbf16, #tpu.memory_space<vmem>>, vector<1x1x8x8x128xbf16>
    %3 = vector.shape_cast %2 : vector<1x1x8x8x128xbf16> to vector<8x8x128xbf16>
    %c0_9 = arith.constant 0 : index
    %c0_10 = arith.constant 0 : index
    %c0_11 = arith.constant 0 : index
    %c0_12 = arith.constant 0 : index
    %c0_13 = arith.constant 0 : index
    %4 = vector.load %arg4[%c0_9, %c0_10, %c0_11, %c0_12, %c0_13] : memref<1x1x8x8x128xbf16, #tpu.memory_space<vmem>>, vector<1x1x8x8x128xbf16>
    %5 = vector.shape_cast %4 : vector<1x1x8x8x128xbf16> to vector<8x8x128xbf16>
    %c0_14 = arith.constant 0 : index
    %c0_15 = arith.constant 0 : index
    %c0_16 = arith.constant 0 : index
    %c0_17 = arith.constant 0 : index
    %c0_18 = arith.constant 0 : index
    %6 = vector.load %arg5[%c0_14, %c0_15, %c0_16, %c0_17, %c0_18] : memref<1x1x8x8x128xbf16, #tpu.memory_space<vmem>>, vector<1x1x8x8x128xbf16>
    %7 = vector.shape_cast %6 : vector<1x1x8x8x128xbf16> to vector<8x8x128xbf16>
    %c0_19 = arith.constant 0 : index
    %c0_20 = arith.constant 0 : index
    %c0_21 = arith.constant 0 : index
    %c0_22 = arith.constant 0 : index
    %c0_23 = arith.constant 0 : index
    %8 = vector.load %arg6[%c0_19, %c0_20, %c0_21, %c0_22, %c0_23] : memref<1x1x1x8x128xbf16, #tpu.memory_space<vmem>>, vector<1x1x1x8x128xbf16>
    %9 = vector.shape_cast %8 : vector<1x1x1x8x128xbf16> to vector<1x8x128xbf16>
    %c0_24 = arith.constant 0 : index
    %c0_25 = arith.constant 0 : index
    %c0_26 = arith.constant 0 : index
    %c0_27 = arith.constant 0 : index
    %c0_28 = arith.constant 0 : index
    %10 = vector.load %arg7[%c0_24, %c0_25, %c0_26, %c0_27, %c0_28] : memref<1x1x1x8x128xbf16, #tpu.memory_space<vmem>>, vector<1x1x1x8x128xbf16>
    %11 = vector.shape_cast %10 : vector<1x1x1x8x128xbf16> to vector<1x8x128xbf16>
    %c0_i32 = arith.constant 0 : i32
    %12 = arith.cmpi sgt, %arg1, %c0_i32 : i32
    %cst = arith.constant 0.000000e+00 : bf16
    %13 = vector.broadcast %cst : bf16 to vector<1x8x128xbf16>
    %14 = arith.select %12, %9, %13 : vector<1x8x128xbf16>
    %c0_i32_29 = arith.constant 0 : i32
    %15 = arith.cmpi sgt, %arg1, %c0_i32_29 : i32
    %cst_30 = arith.constant 0.000000e+00 : bf16
    %16 = vector.broadcast %cst_30 : bf16 to vector<1x8x128xbf16>
    %17 = arith.select %15, %11, %16 : vector<1x8x128xbf16>
    %18 = tpu.concatenate %14, %5 in 0 : vector<1x8x128xbf16>, vector<8x8x128xbf16> -> vector<9x8x128xbf16>
    %19 = tpu.concatenate %17, %7 in 0 : vector<1x8x128xbf16>, vector<8x8x128xbf16> -> vector<9x8x128xbf16>
    %cst_31 = arith.constant 0.000000e+00 : bf16
    %20 = vector.broadcast %cst_31 : bf16 to vector<8x1x128xbf16>
    %cst_32 = arith.constant 0.000000e+00 : bf16
    %21 = vector.broadcast %cst_32 : bf16 to vector<9x1x128xbf16>
    %22 = tpu.concatenate %20, %3 in 1 : vector<8x1x128xbf16>, vector<8x8x128xbf16> -> vector<8x9x128xbf16>
    %23 = tpu.concatenate %21, %19 in 1 : vector<9x1x128xbf16>, vector<9x8x128xbf16> -> vector<9x9x128xbf16>
    %24 = vector.extract_strided_slice %23 {offsets = [0, 0, 0], sizes = [8, 8, 128], strides = [1, 1, 1]} : vector<9x9x128xbf16> to vector<8x8x128xbf16>
    %25 = vector.extract_strided_slice %18 {offsets = [0, 0, 0], sizes = [8, 8, 128], strides = [1, 1, 1]} : vector<9x8x128xbf16> to vector<8x8x128xbf16>
    %26 = vector.extract_strided_slice %23 {offsets = [0, 1, 0], sizes = [8, 8, 128], strides = [1, 1, 1]} : vector<9x9x128xbf16> to vector<8x8x128xbf16>
    %27 = vector.extract_strided_slice %22 {offsets = [0, 0, 0], sizes = [8, 8, 128], strides = [1, 1, 1]} : vector<8x9x128xbf16> to vector<8x8x128xbf16>
    %28 = vector.extract_strided_slice %22 {offsets = [0, 1, 0], sizes = [8, 8, 128], strides = [1, 1, 1]} : vector<8x9x128xbf16> to vector<8x8x128xbf16>
    %29 = vector.extract_strided_slice %23 {offsets = [1, 0, 0], sizes = [8, 8, 128], strides = [1, 1, 1]} : vector<9x9x128xbf16> to vector<8x8x128xbf16>
    %30 = vector.extract_strided_slice %18 {offsets = [1, 0, 0], sizes = [8, 8, 128], strides = [1, 1, 1]} : vector<9x8x128xbf16> to vector<8x8x128xbf16>
    %31 = vector.extract_strided_slice %23 {offsets = [1, 1, 0], sizes = [8, 8, 128], strides = [1, 1, 1]} : vector<9x9x128xbf16> to vector<8x8x128xbf16>
    %32 = vector.shape_cast %24 : vector<8x8x128xbf16> to vector<64x128xbf16>
    %33 = vector.shape_cast %25 : vector<8x8x128xbf16> to vector<64x128xbf16>
    %34 = vector.shape_cast %26 : vector<8x8x128xbf16> to vector<64x128xbf16>
    %35 = vector.shape_cast %27 : vector<8x8x128xbf16> to vector<64x128xbf16>
    %36 = vector.shape_cast %1 : vector<8x8x128xbf16> to vector<64x128xbf16>
    %37 = vector.shape_cast %28 : vector<8x8x128xbf16> to vector<64x128xbf16>
    %38 = vector.shape_cast %29 : vector<8x8x128xbf16> to vector<64x128xbf16>
    %39 = vector.shape_cast %30 : vector<8x8x128xbf16> to vector<64x128xbf16>
    %40 = vector.shape_cast %31 : vector<8x8x128xbf16> to vector<64x128xbf16>
    %41 = tpu.concatenate %32, %33, %34, %35, %36, %37, %38, %39, %40 in 1 : vector<64x128xbf16>, vector<64x128xbf16>, vector<64x128xbf16>, vector<64x128xbf16>, vector<64x128xbf16>, vector<64x128xbf16>, vector<64x128xbf16>, vector<64x128xbf16>, vector<64x128xbf16> -> vector<64x1152xbf16>
    %c0_33 = arith.constant 0 : index
    %c0_34 = arith.constant 0 : index
    %42 = vector.load %arg8[%c0_33, %c0_34] : memref<1152x128xbf16, #tpu.memory_space<vmem>>, vector<1152x128xbf16>
    %cst_35 = arith.constant dense<0.000000e+00> : vector<64x128xf32>
    %43 = tpu.matmul %41, %42, %cst_35 {dimension_numbers = #tpu.dot_dimension_numbers<[1], [0], [0], [1], [0, 0, 1, 1], [], []>} : vector<64x1152xbf16>, vector<1152x128xbf16>, vector<64x128xf32> -> vector<64x128xf32>
    %c0_36 = arith.constant 0 : index
    %c0_37 = arith.constant 0 : index
    %44 = vector.load %arg9[%c0_36, %c0_37] : memref<1x128xf32, #tpu.memory_space<vmem>>, vector<1x128xf32>
    %45 = vector.broadcast %44 : vector<1x128xf32> to vector<64x128xf32>
    %46 = arith.addf %43, %45 : vector<64x128xf32>
    %cst_38 = arith.constant 0.000000e+00 : f32
    %47 = vector.broadcast %cst_38 : f32 to vector<64x128xf32>
    %48 = arith.maximumf %46, %47 : vector<64x128xf32>
    %49 = arith.truncf %48 : vector<64x128xf32> to vector<64x128xbf16>
    %c0_39 = arith.constant 0 : index
    %c0_40 = arith.constant 0 : index
    %c0_41 = arith.constant 0 : index
    %50 = vector.load %arg10[%c0_39, %c0_40, %c0_41] : memref<1x64x128xbf16, #tpu.memory_space<vmem>>, vector<1x64x128xbf16>
    %51 = vector.shape_cast %50 : vector<1x64x128xbf16> to vector<64x128xbf16>
    %52 = vector.shape_cast %49 : vector<64x128xbf16> to vector<1x64x128xbf16>
    tpu.vector_store %arg10[%c0_39, %c0_40, %c0_41], %52 {strides = array<i32>} : memref<1x64x128xbf16, #tpu.memory_space<vmem>>, vector<1x64x128xbf16>,
    return
  }
  func.func @transform_0(%arg0: i32, %arg1: i32) -> (i32, i32, i32, i32, i32) {
    %c0_i32 = arith.constant 0 : i32
    %c0_i32_0 = arith.constant 0 : i32
    %c0_i32_1 = arith.constant 0 : i32
    %c0_i32_2 = arith.constant 0 : i32
    return %arg0, %c0_i32, %arg1, %c0_i32_0, %c0_i32_1 : i32, i32, i32, i32, i32
  }
  func.func @transform_1(%arg0: i32, %arg1: i32) -> (i32, i32, i32, i32, i32) {
    %c1_i32 = arith.constant 1 : i32
    %c0_i32 = arith.constant 0 : i32
    %c0_i32_0 = arith.constant 0 : i32
    %c0_i32_1 = arith.constant 0 : i32
    return %arg0, %c1_i32, %arg1, %c0_i32, %c0_i32_0 : i32, i32, i32, i32, i32
  }
  func.func @transform_2(%arg0: i32, %arg1: i32) -> (i32, i32, i32, i32, i32) {
    %c2_i32 = arith.constant 2 : i32
    %c0_i32 = arith.constant 0 : i32
    %c0_i32_0 = arith.constant 0 : i32
    %c0_i32_1 = arith.constant 0 : i32
    return %arg0, %c2_i32, %arg1, %c0_i32, %c0_i32_0 : i32, i32, i32, i32, i32
  }
  func.func @transform_3(%arg0: i32, %arg1: i32) -> (i32, i32, i32, i32, i32) {
    %c3_i32 = arith.constant 3 : i32
    %c0_i32 = arith.constant 0 : i32
    %c0_i32_0 = arith.constant 0 : i32
    %c0_i32_1 = arith.constant 0 : i32
    return %arg0, %c3_i32, %arg1, %c0_i32, %c0_i32_0 : i32, i32, i32, i32, i32
  }
  func.func @transform_4(%arg0: i32, %arg1: i32) -> (i32, i32, i32, i32, i32) {
    %c8_i32 = arith.constant 8 : i32
    %0 = arith.muli %arg1, %c8_i32 : i32
    %c1_i32 = arith.constant 1 : i32
    %1 = arith.subi %0, %c1_i32 : i32
    %c0_i32 = arith.constant 0 : i32
    %2 = arith.maxsi %1, %c0_i32 : i32
    %c2_i32 = arith.constant 2 : i32
    %c0_i32_0 = arith.constant 0 : i32
    %c0_i32_1 = arith.constant 0 : i32
    %c0_i32_2 = arith.constant 0 : i32
    return %arg0, %c2_i32, %2, %c0_i32_0, %c0_i32_1 : i32, i32, i32, i32, i32
  }
  func.func @transform_5(%arg0: i32, %arg1: i32) -> (i32, i32, i32, i32, i32) {
    %c8_i32 = arith.constant 8 : i32
    %0 = arith.muli %arg1, %c8_i32 : i32
    %c1_i32 = arith.constant 1 : i32
    %1 = arith.subi %0, %c1_i32 : i32
    %c0_i32 = arith.constant 0 : i32
    %2 = arith.maxsi %1, %c0_i32 : i32
    %c3_i32 = arith.constant 3 : i32
    %c0_i32_0 = arith.constant 0 : i32
    %c0_i32_1 = arith.constant 0 : i32
    %c0_i32_2 = arith.constant 0 : i32
    return %arg0, %c3_i32, %2, %c0_i32_0, %c0_i32_1 : i32, i32, i32, i32, i32
  }
  func.func @transform_6(%arg0: i32, %arg1: i32) -> (i32, i32) {
    %c0_i32 = arith.constant 0 : i32
    %c0_i32_0 = arith.constant 0 : i32
    %c0_i32_1 = arith.constant 0 : i32
    return %c0_i32, %c0_i32_0 : i32, i32
  }
  func.func @transform_7(%arg0: i32, %arg1: i32) -> (i32, i32) {
    %c0_i32 = arith.constant 0 : i32
    %c0_i32_0 = arith.constant 0 : i32
    %c0_i32_1 = arith.constant 0 : i32
    return %c0_i32, %c0_i32_0 : i32, i32
  }
  func.func @transform_8(%arg0: i32, %arg1: i32) -> (i32, i32, i32) {
    %c0_i32 = arith.constant 0 : i32
    %c0_i32_0 = arith.constant 0 : i32
    return %arg0, %arg1, %c0_i32 : i32, i32, i32
  }
}

module attributes {stable_mosaic.version = 11 : i64} {
  func.func @_conv3_down_kernel(%arg0: i32, %arg1: memref<128x128xbf16, #tpu.memory_space<vmem>>, %arg2: memref<128x128xbf16, #tpu.memory_space<vmem>>, %arg3: memref<128x4xbf16, #tpu.memory_space<vmem>>, %arg4: memref<4x128xbf16, #tpu.memory_space<vmem>>, %arg5: memref<1x128xf32, #tpu.memory_space<vmem>>, %arg6: memref<128x128xf32, #tpu.memory_space<vmem>>) attributes {dimension_semantics = [#tpu.dimension_semantics<parallel>], iteration_bounds = array<i64: 1>, scalar_prefetch = 0 : i64, scratch_operands = 0 : i64, tpu.core_type = #tpu.core_type<tc>, window_params = [{transform_indices = @transform_0, window_bounds = array<i64: 128, 128>}, {pipeline_mode = #tpu.pipeline_mode<synchronous>, transform_indices = @transform_1, window_bounds = array<i64: 128, 128>}, {transform_indices = @transform_2, window_bounds = array<i64: 128, 4>}, {pipeline_mode = #tpu.pipeline_mode<synchronous>, transform_indices = @transform_3, window_bounds = array<i64: 4, 128>}, {pipeline_mode = #tpu.pipeline_mode<synchronous>, transform_indices = @transform_4, window_bounds = array<i64: 1, 128>}, {transform_indices = @transform_5, window_bounds = array<i64: 128, 128>}]} {
    %c0 = arith.constant 0 : index
    %c0_0 = arith.constant 0 : index
    %0 = vector.load %arg1[%c0, %c0_0] : memref<128x128xbf16, #tpu.memory_space<vmem>>, vector<128x128xbf16>
    %c0_1 = arith.constant 0 : index
    %c0_2 = arith.constant 0 : index
    %1 = vector.load %arg2[%c0_1, %c0_2] : memref<128x128xbf16, #tpu.memory_space<vmem>>, vector<128x128xbf16>
    %cst = arith.constant dense<0.000000e+00> : vector<128x128xf32>
    %2 = tpu.matmul %0, %1, %cst {dimension_numbers = #tpu.dot_dimension_numbers<[1], [0], [0], [1], [0, 0, 1, 1], [], []>} : vector<128x128xbf16>, vector<128x128xbf16>, vector<128x128xf32> -> vector<128x128xf32>
    %c0_3 = arith.constant 0 : index
    %c0_4 = arith.constant 0 : index
    %3 = vector.load %arg3[%c0_3, %c0_4] : memref<128x4xbf16, #tpu.memory_space<vmem>>, vector<128x4xbf16>
    %c0_5 = arith.constant 0 : index
    %c0_6 = arith.constant 0 : index
    %4 = vector.load %arg4[%c0_5, %c0_6] : memref<4x128xbf16, #tpu.memory_space<vmem>>, vector<4x128xbf16>
    %cst_7 = arith.constant dense<0.000000e+00> : vector<128x128xf32>
    %5 = tpu.matmul %3, %4, %cst_7 {dimension_numbers = #tpu.dot_dimension_numbers<[1], [0], [0], [1], [0, 0, 1, 1], [], []>} : vector<128x4xbf16>, vector<4x128xbf16>, vector<128x128xf32> -> vector<128x128xf32>
    %6 = arith.addf %2, %5 : vector<128x128xf32>
    %c0_8 = arith.constant 0 : index
    %c0_9 = arith.constant 0 : index
    %7 = vector.load %arg5[%c0_8, %c0_9] : memref<1x128xf32, #tpu.memory_space<vmem>>, vector<1x128xf32>
    %8 = vector.broadcast %7 : vector<1x128xf32> to vector<128x128xf32>
    %9 = arith.addf %6, %8 : vector<128x128xf32>
    %cst_10 = arith.constant 0.000000e+00 : f32
    %10 = vector.broadcast %cst_10 : f32 to vector<128x128xf32>
    %11 = arith.maximumf %9, %10 : vector<128x128xf32>
    %c0_11 = arith.constant 0 : index
    %c0_12 = arith.constant 0 : index
    %12 = vector.load %arg6[%c0_11, %c0_12] : memref<128x128xf32, #tpu.memory_space<vmem>>, vector<128x128xf32>
    tpu.vector_store %arg6[%c0_11, %c0_12], %11 {strides = array<i32>} : memref<128x128xf32, #tpu.memory_space<vmem>>, vector<128x128xf32>,
    return
  }
  func.func @transform_0(%arg0: i32) -> (i32, i32) {
    %c0_i32 = arith.constant 0 : i32
    %c0_i32_0 = arith.constant 0 : i32
    return %arg0, %c0_i32 : i32, i32
  }
  func.func @transform_1(%arg0: i32) -> (i32, i32) {
    %c0_i32 = arith.constant 0 : i32
    %c0_i32_0 = arith.constant 0 : i32
    %c0_i32_1 = arith.constant 0 : i32
    return %c0_i32, %c0_i32_0 : i32, i32
  }
  func.func @transform_2(%arg0: i32) -> (i32, i32) {
    %c0_i32 = arith.constant 0 : i32
    %c0_i32_0 = arith.constant 0 : i32
    return %arg0, %c0_i32 : i32, i32
  }
  func.func @transform_3(%arg0: i32) -> (i32, i32) {
    %c0_i32 = arith.constant 0 : i32
    %c0_i32_0 = arith.constant 0 : i32
    %c0_i32_1 = arith.constant 0 : i32
    return %c0_i32, %c0_i32_0 : i32, i32
  }
  func.func @transform_4(%arg0: i32) -> (i32, i32) {
    %c0_i32 = arith.constant 0 : i32
    %c0_i32_0 = arith.constant 0 : i32
    %c0_i32_1 = arith.constant 0 : i32
    return %c0_i32, %c0_i32_0 : i32, i32
  }
  func.func @transform_5(%arg0: i32) -> (i32, i32) {
    %c0_i32 = arith.constant 0 : i32
    %c0_i32_0 = arith.constant 0 : i32
    return %arg0, %c0_i32 : i32, i32
  }
}

</mosaic_0001>

<llo_original>
// kernel: encoder_bottleneck_forward.5
$region0: #{encoder_bottleneck_forward.5}
  #allocation0 [shape = 'u32[]', space=smem, size = 0x4, offset = 0x4, fixed_abs, tag = 'smem constant byte address 0x4 - core index']
  #allocation1 [shape = 'u32[144,128]{1,0:T(1,128)}', space=vmem, size = 0x12000, scoped, tag = 'internal scratch']
  %s0 = inlined_call_operand.vmem [shape: bf16[128,128], index: 0, kind: input, shape index: {}]
  %s1 = inlined_call_operand.vmem [shape: bf16[128,128], index: 1, kind: input, shape index: {}]
  %s2 = inlined_call_operand.vmem [shape: bf16[128,4], index: 2, kind: input, shape index: {}]
  %s3 = inlined_call_operand.vmem [shape: bf16[4,128], index: 3, kind: input, shape index: {}]
  %s4 = inlined_call_operand.vmem [shape: f32[1,128], index: 4, kind: input, shape index: {}]
  %s5 = inlined_call_operand.vmem [shape: f32[128,128], index: 5, kind: output, shape index: {}]
  %s6 = sld [smem:[#allocation0]]
  $region30: #{encoder_bottleneck_forward.5} parent=0
    _
  %s8 = ssub.s32 1, %s6
  %s9 = scalar_select 0, %s8, %s6
  // Predicated region
  $region2: #{encoder_bottleneck_forward.5} parent=0 // pred_check
    _
  $region3: #{encoder_bottleneck_forward.5} parent=0 // pred_check_branch
    %11 = sbr.rel (0) target = $region5
  $region4: #{encoder_bottleneck_forward.5} parent=0 // pred_region
    _
  $region5: #{encoder_bottleneck_forward.5} parent=0 // pred_fallthru
    _
  // Predicated region
  $region6: #{encoder_bottleneck_forward.5} parent=0 // pred_check
    _
  $region7: #{encoder_bottleneck_forward.5} parent=0 // pred_check_branch
    %13 = sbr.rel (0) target = $region9
  $region8: #{encoder_bottleneck_forward.5} parent=0 // pred_region
    _
  $region9: #{encoder_bottleneck_forward.5} parent=0 // pred_fallthru
    _
  // Predicated region
  $region10: #{encoder_bottleneck_forward.5} parent=0 // pred_check
    _
  $region11: #{encoder_bottleneck_forward.5} parent=0 // pred_check_branch
    %15 = sbr.rel (0) target = $region13
  $region12: #{encoder_bottleneck_forward.5} parent=0 // pred_region
    _
  $region13: #{encoder_bottleneck_forward.5} parent=0 // pred_fallthru
    _
  // Predicated region
  $region14: #{encoder_bottleneck_forward.5} parent=0 // pred_check
    _
  $region15: #{encoder_bottleneck_forward.5} parent=0 // pred_check_branch
    %17 = sbr.rel (0) target = $region17
  $region16: #{encoder_bottleneck_forward.5} parent=0 // pred_region
    _
  $region17: #{encoder_bottleneck_forward.5} parent=0 // pred_fallthru
    _
  // Predicated region
  $region18: #{encoder_bottleneck_forward.5} parent=0 // pred_check
    _
  $region19: #{encoder_bottleneck_forward.5} parent=0 // pred_check_branch
    %19 = sbr.rel (0) target = $region21
  $region20: #{encoder_bottleneck_forward.5} parent=0 // pred_region
    _
  $region21: #{encoder_bottleneck_forward.5} parent=0 // pred_fallthru
    _
  %v21 = vld [vmem:[%s0] sm:$0xf]
  %v22 = vld [vmem:[%s0 + $0x4] sm:$0xf]
  %v23 = vld [vmem:[%s0 + $0x8] sm:$0xf]
  %v24 = vld [vmem:[%s0 + $0xc] sm:$0xf]
  %v25 = vld [vmem:[%s0 + $0x10] sm:$0xf]
  %v26 = vld [vmem:[%s0 + $0x14] sm:$0xf]
  %v27 = vld [vmem:[%s0 + $0x18] sm:$0xf]
  %v28 = vld [vmem:[%s0 + $0x1c] sm:$0xf]
  %v29 = vld [vmem:[%s0 + $0x20] sm:$0xf]
  %v30 = vld [vmem:[%s0 + $0x24] sm:$0xf]
  %v31 = vld [vmem:[%s0 + $0x28] sm:$0xf]
  %v32 = vld [vmem:[%s0 + $0x2c] sm:$0xf]
  %v33 = vld [vmem:[%s0 + $0x30] sm:$0xf]
  %v34 = vld [vmem:[%s0 + $0x34] sm:$0xf]
  %v35 = vld [vmem:[%s0 + $0x38] sm:$0xf]
  %v36 = vld [vmem:[%s0 + $0x3c] sm:$0xf]
  %v37 = vld [vmem:[%s1] sm:$0xf]
  %v38 = vld [vmem:[%s1 + $0x4] sm:$0xf]
  %v39 = vld [vmem:[%s1 + $0x8] sm:$0xf]
  %v40 = vld [vmem:[%s1 + $0xc] sm:$0xf]
  %v41 = vld [vmem:[%s1 + $0x10] sm:$0xf]
  %v42 = vld [vmem:[%s1 + $0x14] sm:$0xf]
  %v43 = vld [vmem:[%s1 + $0x18] sm:$0xf]
  %v44 = vld [vmem:[%s1 + $0x1c] sm:$0xf]
  %v45 = vld [vmem:[%s1 + $0x20] sm:$0xf]
  %v46 = vld [vmem:[%s1 + $0x24] sm:$0xf]
  %v47 = vld [vmem:[%s1 + $0x28] sm:$0xf]
  %v48 = vld [vmem:[%s1 + $0x2c] sm:$0xf]
  %v49 = vld [vmem:[%s1 + $0x30] sm:$0xf]
  %v50 = vld [vmem:[%s1 + $0x34] sm:$0xf]
  %v51 = vld [vmem:[%s1 + $0x38] sm:$0xf]
  %v52 = vld [vmem:[%s1 + $0x3c] sm:$0xf]
  %v53 = vld [vmem:[%s2] sm:$0xf]
  %v54 = vld [vmem:[%s2 + $0x4] sm:$0xf]
  %v55 = vld [vmem:[%s2 + $0x8] sm:$0xf]
  %v56 = vld [vmem:[%s2 + $0xc] sm:$0xf]
  %v57 = vld [vmem:[%s2 + $0x10] sm:$0xf]
  %v58 = vld [vmem:[%s2 + $0x14] sm:$0xf]
  %v59 = vld [vmem:[%s2 + $0x18] sm:$0xf]
  %v60 = vld [vmem:[%s2 + $0x1c] sm:$0xf]
  %v61 = vld [vmem:[%s2 + $0x20] sm:$0xf]
  %v62 = vld [vmem:[%s2 + $0x24] sm:$0xf]
  %v63 = vld [vmem:[%s2 + $0x28] sm:$0xf]
  %v64 = vld [vmem:[%s2 + $0x2c] sm:$0xf]
  %v65 = vld [vmem:[%s2 + $0x30] sm:$0xf]
  %v66 = vld [vmem:[%s2 + $0x34] sm:$0xf]
  %v67 = vld [vmem:[%s2 + $0x38] sm:$0xf]
  %v68 = vld [vmem:[%s2 + $0x3c] sm:$0xf]
  %v69 = vld [vmem:[%s3] sm:$0x3]
  %v86 = vunpack.c.l.b16 %v53
  %v87 = vunpack.c.l.b16 %v54
  %v88 = vunpack.c.l.b16 %v55
  %v89 = vunpack.c.l.b16 %v56
  %v90 = vunpack.c.l.b16 %v57
  %v91 = vunpack.c.l.b16 %v58
  %v92 = vunpack.c.l.b16 %v59
  %v93 = vunpack.c.l.b16 %v60
  %v94 = vunpack.c.l.b16 %v61
  %v95 = vunpack.c.l.b16 %v62
  %v96 = vunpack.c.l.b16 %v63
  %v97 = vunpack.c.l.b16 %v64
  %v98 = vunpack.c.l.b16 %v65
  %v99 = vunpack.c.l.b16 %v66
  %v100 = vunpack.c.l.b16 %v67
  %v101 = vunpack.c.l.b16 %v68
  %v102 = vpack.c.b16 %v87, %v86
  %v103 = vpack.c.b16 %v89, %v88
  %v104 = vpack.c.b16 %v91, %v90
  %v105 = vpack.c.b16 %v93, %v92
  %v106 = vpack.c.b16 %v95, %v94
  %v107 = vpack.c.b16 %v97, %v96
  %v108 = vpack.c.b16 %v99, %v98
  %v109 = vpack.c.b16 %v101, %v100
  %vm110 = vcmask 31744
  %v112 = vsel %vm110, %v102, 0
  %v115 = vsel %vm110, %v103, 0
  %v118 = vsel %vm110, %v104, 0
  %v121 = vsel %vm110, %v105, 0
  %v124 = vsel %vm110, %v106, 0
  %v127 = vsel %vm110, %v107, 0
  %v130 = vsel %vm110, %v108, 0
  %v133 = vsel %vm110, %v109, 0
  %vm135 = vcmask 1041408
  %v137 = vsel %vm135, %v69, 0
  %139 = vmatprep.subr.bf16.mxu0 0
  %140 = vmatpush1.bf16.msra.mxu0 0
  %141 = vmatprep.subr.bf16.mxu0 0
  %142 = vmatpush1.bf16.msra.mxu0 0
  %143 = vmatprep.subr.bf16.mxu0 0
  %144 = vmatpush1.bf16.msra.mxu0 0
  %145 = vmatprep.subr.bf16.mxu0 0
  %146 = vmatpush1.bf16.msra.mxu0 0
  %147 = vmatprep.subr.bf16.mxu0 0
  %148 = vmatpush1.bf16.msra.mxu0 0
  %149 = vmatprep.subr.bf16.mxu0 0
  %150 = vmatpush1.bf16.msra.mxu0 0
  %151 = vmatprep.subr.bf16.mxu0 0
  %152 = vmatpush1.bf16.msra.mxu0 0
  %153 = vmatprep.subr.bf16.mxu0 0
  %154 = vmatpush1.bf16.msra.mxu0 %v137
  %155 = vmatprep.subr.bf16.mxu0 0
  %156 = vmatpush2.bf16.msra.mxu0 0
  %157 = vmatprep.subr.bf16.mxu0 0
  %158 = vmatpush2.bf16.msra.mxu0 0
  %159 = vmatprep.subr.bf16.mxu0 0
  %160 = vmatpush2.bf16.msra.mxu0 0
  %161 = vmatprep.subr.bf16.mxu0 0
  %162 = vmatpush2.bf16.msra.mxu0 0
  %163 = vmatprep.subr.bf16.mxu0 0
  %164 = vmatpush2.bf16.msra.mxu0 0
  %165 = vmatprep.subr.bf16.mxu0 0
  %166 = vmatpush2.bf16.msra.mxu0 0
  %167 = vmatprep.subr.bf16.mxu0 0
  %168 = vmatpush2.bf16.msra.mxu0 0
  %169 = vmatprep.subr.bf16.mxu0 0
  %170 = vmatpush2.bf16.msra.mxu0 0
  %171 = vmatprep.mubr.bf16.mxu0 0
  %172 = vmatmul.mubr.bf16.gmra.mxu0 %v112
  %v173 = vpop.f32.mrf.mxu0
  %v174 = vadd.f32 0.0, %v173
  %v175 = vpop.f32.mrf.mxu0
  %v176 = vpop.f32.mrf.mxu0
  %v177 = vadd.f32 0.0, %v176
  %v178 = vpop.f32.mrf.mxu0
  %179 = vmatprep.mubr.bf16.mxu0 0
  %180 = vmatmul.mubr.bf16.gmra.mxu0 %v115
  %v181 = vpop.f32.mrf.mxu0
  %v182 = vadd.f32 0.0, %v181
  %v183 = vpop.f32.mrf.mxu0
  %v184 = vpop.f32.mrf.mxu0
  %v185 = vadd.f32 0.0, %v184
  %v186 = vpop.f32.mrf.mxu0
  %187 = vmatprep.mubr.bf16.mxu0 0
  %188 = vmatmul.mubr.bf16.gmra.mxu0 %v118
  %v189 = vpop.f32.mrf.mxu0
  %v190 = vadd.f32 0.0, %v189
  %v191 = vpop.f32.mrf.mxu0
  %v192 = vpop.f32.mrf.mxu0
  %v193 = vadd.f32 0.0, %v192
  %v194 = vpop.f32.mrf.mxu0
  %195 = vmatprep.mubr.bf16.mxu0 0
  %196 = vmatmul.mubr.bf16.gmra.mxu0 %v121
  %v197 = vpop.f32.mrf.mxu0
  %v198 = vadd.f32 0.0, %v197
  %v199 = vpop.f32.mrf.mxu0
  %v200 = vpop.f32.mrf.mxu0
  %v201 = vadd.f32 0.0, %v200
  %v202 = vpop.f32.mrf.mxu0
  %203 = vmatprep.mubr.bf16.mxu0 0
  %204 = vmatmul.mubr.bf16.gmra.mxu0 %v124
  %v205 = vpop.f32.mrf.mxu0
  %v206 = vadd.f32 0.0, %v205
  %v207 = vpop.f32.mrf.mxu0
  %v208 = vpop.f32.mrf.mxu0
  %v209 = vadd.f32 0.0, %v208
  %v210 = vpop.f32.mrf.mxu0
  %211 = vmatprep.mubr.bf16.mxu0 0
  %212 = vmatmul.mubr.bf16.gmra.mxu0 %v127
  %v213 = vpop.f32.mrf.mxu0
  %v214 = vadd.f32 0.0, %v213
  %v215 = vpop.f32.mrf.mxu0
  %v216 = vpop.f32.mrf.mxu0
  %v217 = vadd.f32 0.0, %v216
  %v218 = vpop.f32.mrf.mxu0
  %219 = vmatprep.mubr.bf16.mxu0 0
  %220 = vmatmul.mubr.bf16.gmra.mxu0 %v130
  %v221 = vpop.f32.mrf.mxu0
  %v222 = vadd.f32 0.0, %v221
  %v223 = vpop.f32.mrf.mxu0
  %v224 = vpop.f32.mrf.mxu0
  %v225 = vadd.f32 0.0, %v224
  %v226 = vpop.f32.mrf.mxu0
  %227 = vmatprep.mubr.bf16.mxu0 0
  %228 = vmatmul.mubr.bf16.gmra.mxu0 %v133
  %v229 = vpop.f32.mrf.mxu0
  %v230 = vadd.f32 0.0, %v229
  %v231 = vpop.f32.mrf.mxu0
  %v232 = vpop.f32.mrf.mxu0
  %v233 = vadd.f32 0.0, %v232
  %v234 = vpop.f32.mrf.mxu0
  %235 = vdwg.mxu0
  %v252 = vunpack.c.l.b16 %v21
  %v253 = vunpack.c.l.b16 %v22
  %v254 = vunpack.c.l.b16 %v23
  %v255 = vunpack.c.l.b16 %v24
  %v256 = vunpack.c.l.b16 %v25
  %v257 = vunpack.c.l.b16 %v26
  %v258 = vunpack.c.l.b16 %v27
  %v259 = vunpack.c.l.b16 %v28
  %v260 = vunpack.c.l.b16 %v29
  %v261 = vunpack.c.l.b16 %v30
  %v262 = vunpack.c.l.b16 %v31
  %v263 = vunpack.c.l.b16 %v32
  %v264 = vunpack.c.l.b16 %v33
  %v265 = vunpack.c.l.b16 %v34
  %v266 = vunpack.c.l.b16 %v35
  %v267 = vunpack.c.l.b16 %v36
  %v268 = vpack.c.b16 %v253, %v252
  %v269 = vpack.c.b16 %v255, %v254
  %v270 = vpack.c.b16 %v257, %v256
  %v271 = vpack.c.b16 %v259, %v258
  %v272 = vpack.c.b16 %v261, %v260
  %v273 = vpack.c.b16 %v263, %v262
  %v274 = vpack.c.b16 %v265, %v264
  %v275 = vpack.c.b16 %v267, %v266
  %v300 = vunpack.c.l.b16 %v37
  %v301 = vunpack.c.l.b16 %v38
  %v302 = vunpack.c.l.b16 %v39
  %v303 = vunpack.c.l.b16 %v40
  %v304 = vunpack.c.l.b16 %v41
  %v305 = vunpack.c.l.b16 %v42
  %v306 = vunpack.c.l.b16 %v43
  %v307 = vunpack.c.l.b16 %v44
  %v308 = vunpack.c.l.b16 %v45
  %v309 = vunpack.c.l.b16 %v46
  %v310 = vunpack.c.l.b16 %v47
  %v311 = vunpack.c.l.b16 %v48
  %v312 = vunpack.c.l.b16 %v49
  %v313 = vunpack.c.l.b16 %v50
  %v314 = vunpack.c.l.b16 %v51
  %v315 = vunpack.c.l.b16 %v52
  %v316 = vpack.c.b16 %v301, %v300
  %v317 = vpack.c.b16 %v303, %v302
  %v318 = vpack.c.b16 %v305, %v304
  %v319 = vpack.c.b16 %v307, %v306
  %v320 = vpack.c.b16 %v309, %v308
  %v321 = vpack.c.b16 %v311, %v310
  %v322 = vpack.c.b16 %v313, %v312
  %v323 = vpack.c.b16 %v315, %v314
  %332 = vmatprep.subr.bf16.mxu0 0
  %333 = vmatpush1.bf16.msra.mxu0 %v323
  %334 = vmatprep.subr.bf16.mxu0 0
  %335 = vmatpush1.bf16.msra.mxu0 %v322
  %336 = vmatprep.subr.bf16.mxu0 0
  %337 = vmatpush1.bf16.msra.mxu0 %v321
  %338 = vmatprep.subr.bf16.mxu0 0
  %339 = vmatpush1.bf16.msra.mxu0 %v320
  %340 = vmatprep.subr.bf16.mxu0 0
  %341 = vmatpush1.bf16.msra.mxu0 %v319
  %342 = vmatprep.subr.bf16.mxu0 0
  %343 = vmatpush1.bf16.msra.mxu0 %v318
  %344 = vmatprep.subr.bf16.mxu0 0
  %345 = vmatpush1.bf16.msra.mxu0 %v317
  %346 = vmatprep.subr.bf16.mxu0 0
  %347 = vmatpush1.bf16.msra.mxu0 %v316
  %348 = vmatprep.subr.bf16.mxu0 0
  %349 = vmatpush2.bf16.msra.mxu0 0
  %350 = vmatprep.subr.bf16.mxu0 0
  %351 = vmatpush2.bf16.msra.mxu0 0
  %352 = vmatprep.subr.bf16.mxu0 0
  %353 = vmatpush2.bf16.msra.mxu0 0
  %354 = vmatprep.subr.bf16.mxu0 0
  %355 = vmatpush2.bf16.msra.mxu0 0
  %356 = vmatprep.subr.bf16.mxu0 0
  %357 = vmatpush2.bf16.msra.mxu0 0
  %358 = vmatprep.subr.bf16.mxu0 0
  %359 = vmatpush2.bf16.msra.mxu0 0
  %360 = vmatprep.subr.bf16.mxu0 0
  %361 = vmatpush2.bf16.msra.mxu0 0
  %362 = vmatprep.subr.bf16.mxu0 0
  %363 = vmatpush2.bf16.msra.mxu0 0
  %364 = vmatprep.mubr.bf16.mxu0 0
  %365 = vmatmul.mubr.bf16.gmra.mxu0 %v268
  %v366 = vpop.f32.mrf.mxu0
  %v367 = vadd.f32 %v174, %v366
  %v368 = vpop.f32.mrf.mxu0
  %v369 = vpop.f32.mrf.mxu0
  %v370 = vadd.f32 %v177, %v369
  %v371 = vpop.f32.mrf.mxu0
  %372 = vmatprep.mubr.bf16.mxu0 0
  %373 = vmatmul.mubr.bf16.gmra.mxu0 %v269
  %v374 = vpop.f32.mrf.mxu0
  %v375 = vadd.f32 %v182, %v374
  %v376 = vpop.f32.mrf.mxu0
  %v377 = vpop.f32.mrf.mxu0
  %v378 = vadd.f32 %v185, %v377
  %v379 = vpop.f32.mrf.mxu0
  %380 = vmatprep.mubr.bf16.mxu0 0
  %381 = vmatmul.mubr.bf16.gmra.mxu0 %v270
  %v382 = vpop.f32.mrf.mxu0
  %v383 = vadd.f32 %v190, %v382
  %v384 = vpop.f32.mrf.mxu0
  %v385 = vpop.f32.mrf.mxu0
  %v386 = vadd.f32 %v193, %v385
  %v387 = vpop.f32.mrf.mxu0
  %388 = vmatprep.mubr.bf16.mxu0 0
  %389 = vmatmul.mubr.bf16.gmra.mxu0 %v271
  %v390 = vpop.f32.mrf.mxu0
  %v391 = vadd.f32 %v198, %v390
  %v392 = vpop.f32.mrf.mxu0
  %v393 = vpop.f32.mrf.mxu0
  %v394 = vadd.f32 %v201, %v393
  %v395 = vpop.f32.mrf.mxu0
  %396 = vmatprep.mubr.bf16.mxu0 0
  %397 = vmatmul.mubr.bf16.gmra.mxu0 %v272
  %v398 = vpop.f32.mrf.mxu0
  %v399 = vadd.f32 %v206, %v398
  %v400 = vpop.f32.mrf.mxu0
  %v401 = vpop.f32.mrf.mxu0
  %v402 = vadd.f32 %v209, %v401
  %v403 = vpop.f32.mrf.mxu0
  %404 = vmatprep.mubr.bf16.mxu0 0
  %405 = vmatmul.mubr.bf16.gmra.mxu0 %v273
  %v406 = vpop.f32.mrf.mxu0
  %v407 = vadd.f32 %v214, %v406
  %v408 = vpop.f32.mrf.mxu0
  %v409 = vpop.f32.mrf.mxu0
  %v410 = vadd.f32 %v217, %v409
  %v411 = vpop.f32.mrf.mxu0
  %412 = vmatprep.mubr.bf16.mxu0 0
  %413 = vmatmul.mubr.bf16.gmra.mxu0 %v274
  %v414 = vpop.f32.mrf.mxu0
  %v415 = vadd.f32 %v222, %v414
  %v416 = vpop.f32.mrf.mxu0
  %v417 = vpop.f32.mrf.mxu0
  %v418 = vadd.f32 %v225, %v417
  %v419 = vpop.f32.mrf.mxu0
  %420 = vmatprep.mubr.bf16.mxu0 0
  %421 = vmatmul.mubr.bf16.gmra.mxu0 %v275
  %v422 = vpop.f32.mrf.mxu0
  %v423 = vadd.f32 %v230, %v422
  %v424 = vpop.f32.mrf.mxu0
  %v425 = vpop.f32.mrf.mxu0
  %v426 = vadd.f32 %v233, %v425
  %v427 = vpop.f32.mrf.mxu0
  %428 = vdwg.mxu0
  %v429 = vld [vmem:[%s4] sm:$0x1]
  %v431 = vlaneseq
  %v432 = vshrl.u32 %v431, 7
  %v433 = vsub.s32 0, %v432
  %v434 = vrot.slane %v429, %v433
  %v436 = vadd.f32 %v367, %v434
  %v437 = vadd.f32 %v370, %v434
  %v438 = vadd.f32 %v375, %v434
  %v439 = vadd.f32 %v378, %v434
  %v440 = vadd.f32 %v383, %v434
  %v441 = vadd.f32 %v386, %v434
  %v442 = vadd.f32 %v391, %v434
  %v443 = vadd.f32 %v394, %v434
  %v444 = vadd.f32 %v399, %v434
  %v445 = vadd.f32 %v402, %v434
  %v446 = vadd.f32 %v407, %v434
  %v447 = vadd.f32 %v410, %v434
  %v448 = vadd.f32 %v415, %v434
  %v449 = vadd.f32 %v418, %v434
  %v450 = vadd.f32 %v423, %v434
  %v451 = vadd.f32 %v426, %v434
  %v452 = vmax.f32 %v436, 0.0
  %v453 = vmax.f32 %v437, 0.0
  %v454 = vmax.f32 %v438, 0.0
  %v455 = vmax.f32 %v439, 0.0
  %v456 = vmax.f32 %v440, 0.0
  %v457 = vmax.f32 %v441, 0.0
  %v458 = vmax.f32 %v442, 0.0
  %v459 = vmax.f32 %v443, 0.0
  %v460 = vmax.f32 %v444, 0.0
  %v461 = vmax.f32 %v445, 0.0
  %v462 = vmax.f32 %v446, 0.0
  %v463 = vmax.f32 %v447, 0.0
  %v464 = vmax.f32 %v448, 0.0
  %v465 = vmax.f32 %v449, 0.0
  %v466 = vmax.f32 %v450, 0.0
  %v467 = vmax.f32 %v451, 0.0
  %468 = vst [vmem:[%s5] sm:$0xff] %v452
  %469 = vst [vmem:[%s5 + $0x8] sm:$0xff] %v453
  %470 = vst [vmem:[%s5 + $0x10] sm:$0xff] %v454
  %471 = vst [vmem:[%s5 + $0x18] sm:$0xff] %v455
  %472 = vst [vmem:[%s5 + $0x20] sm:$0xff] %v456
  %473 = vst [vmem:[%s5 + $0x28] sm:$0xff] %v457
  %474 = vst [vmem:[%s5 + $0x30] sm:$0xff] %v458
  %475 = vst [vmem:[%s5 + $0x38] sm:$0xff] %v459
  %476 = vst [vmem:[%s5 + $0x40] sm:$0xff] %v460
  %477 = vst [vmem:[%s5 + $0x48] sm:$0xff] %v461
  %478 = vst [vmem:[%s5 + $0x50] sm:$0xff] %v462
  %479 = vst [vmem:[%s5 + $0x58] sm:$0xff] %v463
  %480 = vst [vmem:[%s5 + $0x60] sm:$0xff] %v464
  %481 = vst [vmem:[%s5 + $0x68] sm:$0xff] %v465
  %482 = vst [vmem:[%s5 + $0x70] sm:$0xff] %v466
  %483 = vst [vmem:[%s5 + $0x78] sm:$0xff] %v467
  // Predicated region
  $region22: #{encoder_bottleneck_forward.5} parent=0 // pred_check
    _
  $region23: #{encoder_bottleneck_forward.5} parent=0 // pred_check_branch
    %485 = sbr.rel (0) target = $region25
  $region24: #{encoder_bottleneck_forward.5} parent=0 // pred_region
    _
  $region25: #{encoder_bottleneck_forward.5} parent=0 // pred_fallthru
    _
  // Predicated region
  $region26: #{encoder_bottleneck_forward.5} parent=0 // pred_check
    _
  $region27: #{encoder_bottleneck_forward.5} parent=0 // pred_check_branch
    %487 = sbr.rel (0) target = $region29
  $region28: #{encoder_bottleneck_forward.5} parent=0 // pred_region
    _
  $region29: #{encoder_bottleneck_forward.5} parent=0 // pred_fallthru
    _

// kernel: encoder_bottleneck_forward.3
$region0: #{encoder_bottleneck_forward.3}
  #allocation0 [shape = 'u32[]', space=smem, size = 0x4, offset = 0x4, fixed_abs, tag = 'smem constant byte address 0x4 - core index']
  #allocation1 [shape = 'u32[144,128]{1,0:T(1,128)}', space=vmem, size = 0x12000, scoped, tag = 'internal scratch']
  %s0 = inlined_call_operand.vmem [shape: bf16[512,4], index: 0, kind: input, shape index: {}]
  %s1 = inlined_call_operand.vmem [shape: bf16[4,128], index: 1, kind: input, shape index: {}]
  %s2 = inlined_call_operand.vmem [shape: f32[1,128], index: 2, kind: input, shape index: {}]
  %s3 = inlined_call_operand.vmem [shape: bf16[512,128], index: 3, kind: output, shape index: {}]
  %s4 = sld [smem:[#allocation0]]
  $region22: #{encoder_bottleneck_forward.3} parent=0
    _
  %s6 = ssub.s32 1, %s4
  %s7 = scalar_select 0, %s6, %s4
  // Predicated region
  $region2: #{encoder_bottleneck_forward.3} parent=0 // pred_check
    _
  $region3: #{encoder_bottleneck_forward.3} parent=0 // pred_check_branch
    %9 = sbr.rel (0) target = $region5
  $region4: #{encoder_bottleneck_forward.3} parent=0 // pred_region
    _
  $region5: #{encoder_bottleneck_forward.3} parent=0 // pred_fallthru
    _
  // Predicated region
  $region6: #{encoder_bottleneck_forward.3} parent=0 // pred_check
    _
  $region7: #{encoder_bottleneck_forward.3} parent=0 // pred_check_branch
    %11 = sbr.rel (0) target = $region9
  $region8: #{encoder_bottleneck_forward.3} parent=0 // pred_region
    _
  $region9: #{encoder_bottleneck_forward.3} parent=0 // pred_fallthru
    _
  // Predicated region
  $region10: #{encoder_bottleneck_forward.3} parent=0 // pred_check
    _
  $region11: #{encoder_bottleneck_forward.3} parent=0 // pred_check_branch
    %13 = sbr.rel (0) target = $region13
  $region12: #{encoder_bottleneck_forward.3} parent=0 // pred_region
    _
  $region13: #{encoder_bottleneck_forward.3} parent=0 // pred_fallthru
    _
  %v15 = vld [vmem:[%s0] sm:$0xf]
  %v16 = vld [vmem:[%s0 + $0x4] sm:$0xf]
  %v17 = vld [vmem:[%s0 + $0x8] sm:$0xf]
  %v18 = vld [vmem:[%s0 + $0xc] sm:$0xf]
  %v19 = vld [vmem:[%s0 + $0x10] sm:$0xf]
  %v20 = vld [vmem:[%s0 + $0x14] sm:$0xf]
  %v21 = vld [vmem:[%s0 + $0x18] sm:$0xf]
  %v22 = vld [vmem:[%s0 + $0x1c] sm:$0xf]
  %v23 = vld [vmem:[%s0 + $0x20] sm:$0xf]
  %v24 = vld [vmem:[%s0 + $0x24] sm:$0xf]
  %v25 = vld [vmem:[%s0 + $0x28] sm:$0xf]
  %v26 = vld [vmem:[%s0 + $0x2c] sm:$0xf]
  %v27 = vld [vmem:[%s0 + $0x30] sm:$0xf]
  %v28 = vld [vmem:[%s0 + $0x34] sm:$0xf]
  %v29 = vld [vmem:[%s0 + $0x38] sm:$0xf]
  %v30 = vld [vmem:[%s0 + $0x3c] sm:$0xf]
  %v31 = vld [vmem:[%s0 + $0x40] sm:$0xf]
  %v32 = vld [vmem:[%s0 + $0x44] sm:$0xf]
  %v33 = vld [vmem:[%s0 + $0x48] sm:$0xf]
  %v34 = vld [vmem:[%s0 + $0x4c] sm:$0xf]
  %v35 = vld [vmem:[%s0 + $0x50] sm:$0xf]
  %v36 = vld [vmem:[%s0 + $0x54] sm:$0xf]
  %v37 = vld [vmem:[%s0 + $0x58] sm:$0xf]
  %v38 = vld [vmem:[%s0 + $0x5c] sm:$0xf]
  %v39 = vld [vmem:[%s0 + $0x60] sm:$0xf]
  %v40 = vld [vmem:[%s0 + $0x64] sm:$0xf]
  %v41 = vld [vmem:[%s0 + $0x68] sm:$0xf]
  %v42 = vld [vmem:[%s0 + $0x6c] sm:$0xf]
  %v43 = vld [vmem:[%s0 + $0x70] sm:$0xf]
  %v44 = vld [vmem:[%s0 + $0x74] sm:$0xf]
  %v45 = vld [vmem:[%s0 + $0x78] sm:$0xf]
  %v46 = vld [vmem:[%s0 + $0x7c] sm:$0xf]
  %v47 = vld [vmem:[%s0 + $0x80] sm:$0xf]
  %v48 = vld [vmem:[%s0 + $0x84] sm:$0xf]
  %v49 = vld [vmem:[%s0 + $0x88] sm:$0xf]
  %v50 = vld [vmem:[%s0 + $0x8c] sm:$0xf]
  %v51 = vld [vmem:[%s0 + $0x90] sm:$0xf]
  %v52 = vld [vmem:[%s0 + $0x94] sm:$0xf]
  %v53 = vld [vmem:[%s0 + $0x98] sm:$0xf]
  %v54 = vld [vmem:[%s0 + $0x9c] sm:$0xf]
  %v55 = vld [vmem:[%s0 + $0xa0] sm:$0xf]
  %v56 = vld [vmem:[%s0 + $0xa4] sm:$0xf]
  %v57 = vld [vmem:[%s0 + $0xa8] sm:$0xf]
  %v58 = vld [vmem:[%s0 + $0xac] sm:$0xf]
  %v59 = vld [vmem:[%s0 + $0xb0] sm:$0xf]
  %v60 = vld [vmem:[%s0 + $0xb4] sm:$0xf]
  %v61 = vld [vmem:[%s0 + $0xb8] sm:$0xf]
  %v62 = vld [vmem:[%s0 + $0xbc] sm:$0xf]
  %v63 = vld [vmem:[%s0 + $0xc0] sm:$0xf]
  %v64 = vld [vmem:[%s0 + $0xc4] sm:$0xf]
  %v65 = vld [vmem:[%s0 + $0xc8] sm:$0xf]
  %v66 = vld [vmem:[%s0 + $0xcc] sm:$0xf]
  %v67 = vld [vmem:[%s0 + $0xd0] sm:$0xf]
  %v68 = vld [vmem:[%s0 + $0xd4] sm:$0xf]
  %v69 = vld [vmem:[%s0 + $0xd8] sm:$0xf]
  %v70 = vld [vmem:[%s0 + $0xdc] sm:$0xf]
  %v71 = vld [vmem:[%s0 + $0xe0] sm:$0xf]
  %v72 = vld [vmem:[%s0 + $0xe4] sm:$0xf]
  %v73 = vld [vmem:[%s0 + $0xe8] sm:$0xf]
  %v74 = vld [vmem:[%s0 + $0xec] sm:$0xf]
  %v75 = vld [vmem:[%s0 + $0xf0] sm:$0xf]
  %v76 = vld [vmem:[%s0 + $0xf4] sm:$0xf]
  %v77 = vld [vmem:[%s0 + $0xf8] sm:$0xf]
  %v78 = vld [vmem:[%s0 + $0xfc] sm:$0xf]
  %v79 = vld [vmem:[%s1] sm:$0x3]
  %v80 = vld [vmem:[%s2] sm:$0x1]
  %v82 = vlaneseq
  %v83 = vshrl.u32 %v82, 7
  %v84 = vsub.s32 0, %v83
  %v85 = vrot.slane %v80, %v84
  %v151 = vunpack.c.l.b16 %v15
  %v152 = vunpack.c.l.b16 %v16
  %v153 = vunpack.c.l.b16 %v17
  %v154 = vunpack.c.l.b16 %v18
  %v155 = vunpack.c.l.b16 %v19
  %v156 = vunpack.c.l.b16 %v20
  %v157 = vunpack.c.l.b16 %v21
  %v158 = vunpack.c.l.b16 %v22
  %v159 = vunpack.c.l.b16 %v23
  %v160 = vunpack.c.l.b16 %v24
  %v161 = vunpack.c.l.b16 %v25
  %v162 = vunpack.c.l.b16 %v26
  %v163 = vunpack.c.l.b16 %v27
  %v164 = vunpack.c.l.b16 %v28
  %v165 = vunpack.c.l.b16 %v29
  %v166 = vunpack.c.l.b16 %v30
  %v167 = vunpack.c.l.b16 %v31
  %v168 = vunpack.c.l.b16 %v32
  %v169 = vunpack.c.l.b16 %v33
  %v170 = vunpack.c.l.b16 %v34
  %v171 = vunpack.c.l.b16 %v35
  %v172 = vunpack.c.l.b16 %v36
  %v173 = vunpack.c.l.b16 %v37
  %v174 = vunpack.c.l.b16 %v38
  %v175 = vunpack.c.l.b16 %v39
  %v176 = vunpack.c.l.b16 %v40
  %v177 = vunpack.c.l.b16 %v41
  %v178 = vunpack.c.l.b16 %v42
  %v179 = vunpack.c.l.b16 %v43
  %v180 = vunpack.c.l.b16 %v44
  %v181 = vunpack.c.l.b16 %v45
  %v182 = vunpack.c.l.b16 %v46
  %v183 = vunpack.c.l.b16 %v47
  %v184 = vunpack.c.l.b16 %v48
  %v185 = vunpack.c.l.b16 %v49
  %v186 = vunpack.c.l.b16 %v50
  %v187 = vunpack.c.l.b16 %v51
  %v188 = vunpack.c.l.b16 %v52
  %v189 = vunpack.c.l.b16 %v53
  %v190 = vunpack.c.l.b16 %v54
  %v191 = vunpack.c.l.b16 %v55
  %v192 = vunpack.c.l.b16 %v56
  %v193 = vunpack.c.l.b16 %v57
  %v194 = vunpack.c.l.b16 %v58
  %v195 = vunpack.c.l.b16 %v59
  %v196 = vunpack.c.l.b16 %v60
  %v197 = vunpack.c.l.b16 %v61
  %v198 = vunpack.c.l.b16 %v62
  %v199 = vunpack.c.l.b16 %v63
  %v200 = vunpack.c.l.b16 %v64
  %v201 = vunpack.c.l.b16 %v65
  %v202 = vunpack.c.l.b16 %v66
  %v203 = vunpack.c.l.b16 %v67
  %v204 = vunpack.c.l.b16 %v68
  %v205 = vunpack.c.l.b16 %v69
  %v206 = vunpack.c.l.b16 %v70
  %v207 = vunpack.c.l.b16 %v71
  %v208 = vunpack.c.l.b16 %v72
  %v209 = vunpack.c.l.b16 %v73
  %v210 = vunpack.c.l.b16 %v74
  %v211 = vunpack.c.l.b16 %v75
  %v212 = vunpack.c.l.b16 %v76
  %v213 = vunpack.c.l.b16 %v77
  %v214 = vunpack.c.l.b16 %v78
  %v215 = vpack.c.b16 %v152, %v151
  %v216 = vpack.c.b16 %v154, %v153
  %v217 = vpack.c.b16 %v156, %v155
  %v218 = vpack.c.b16 %v158, %v157
  %v219 = vpack.c.b16 %v160, %v159
  %v220 = vpack.c.b16 %v162, %v161
  %v221 = vpack.c.b16 %v164, %v163
  %v222 = vpack.c.b16 %v166, %v165
  %v223 = vpack.c.b16 %v168, %v167
  %v224 = vpack.c.b16 %v170, %v169
  %v225 = vpack.c.b16 %v172, %v171
  %v226 = vpack.c.b16 %v174, %v173
  %v227 = vpack.c.b16 %v176, %v175
  %v228 = vpack.c.b16 %v178, %v177
  %v229 = vpack.c.b16 %v180, %v179
  %v230 = vpack.c.b16 %v182, %v181
  %v231 = vpack.c.b16 %v184, %v183
  %v232 = vpack.c.b16 %v186, %v185
  %v233 = vpack.c.b16 %v188, %v187
  %v234 = vpack.c.b16 %v190, %v189
  %v235 = vpack.c.b16 %v192, %v191
  %v236 = vpack.c.b16 %v194, %v193
  %v237 = vpack.c.b16 %v196, %v195
  %v238 = vpack.c.b16 %v198, %v197
  %v239 = vpack.c.b16 %v200, %v199
  %v240 = vpack.c.b16 %v202, %v201
  %v241 = vpack.c.b16 %v204, %v203
  %v242 = vpack.c.b16 %v206, %v205
  %v243 = vpack.c.b16 %v208, %v207
  %v244 = vpack.c.b16 %v210, %v209
  %v245 = vpack.c.b16 %v212, %v211
  %v246 = vpack.c.b16 %v214, %v213
  %vm247 = vcmask 31744
  %v249 = vsel %vm247, %v215, 0
  %v252 = vsel %vm247, %v216, 0
  %v255 = vsel %vm247, %v217, 0
  %v258 = vsel %vm247, %v218, 0
  %v261 = vsel %vm247, %v219, 0
  %v264 = vsel %vm247, %v220, 0
  %v267 = vsel %vm247, %v221, 0
  %v270 = vsel %vm247, %v222, 0
  %v273 = vsel %vm247, %v223, 0
  %v276 = vsel %vm247, %v224, 0
  %v279 = vsel %vm247, %v225, 0
  %v282 = vsel %vm247, %v226, 0
  %v285 = vsel %vm247, %v227, 0
  %v288 = vsel %vm247, %v228, 0
  %v291 = vsel %vm247, %v229, 0
  %v294 = vsel %vm247, %v230, 0
  %v297 = vsel %vm247, %v231, 0
  %v300 = vsel %vm247, %v232, 0
  %v303 = vsel %vm247, %v233, 0
  %v306 = vsel %vm247, %v234, 0
  %v309 = vsel %vm247, %v235, 0
  %v312 = vsel %vm247, %v236, 0
  %v315 = vsel %vm247, %v237, 0
  %v318 = vsel %vm247, %v238, 0
  %v321 = vsel %vm247, %v239, 0
  %v324 = vsel %vm247, %v240, 0
  %v327 = vsel %vm247, %v241, 0
  %v330 = vsel %vm247, %v242, 0
  %v333 = vsel %vm247, %v243, 0
  %v336 = vsel %vm247, %v244, 0
  %v339 = vsel %vm247, %v245, 0
  %v342 = vsel %vm247, %v246, 0
  %vm344 = vcmask 1041408
  %v346 = vsel %vm344, %v79, 0
  %348 = vmatprep.subr.bf16.mxu0 0
  %349 = vmatpush1.bf16.msra.mxu0 0
  %350 = vmatprep.subr.bf16.mxu0 0
  %351 = vmatpush1.bf16.msra.mxu0 0
  %352 = vmatprep.subr.bf16.mxu0 0
  %353 = vmatpush1.bf16.msra.mxu0 0
  %354 = vmatprep.subr.bf16.mxu0 0
  %355 = vmatpush1.bf16.msra.mxu0 0
  %356 = vmatprep.subr.bf16.mxu0 0
  %357 = vmatpush1.bf16.msra.mxu0 0
  %358 = vmatprep.subr.bf16.mxu0 0
  %359 = vmatpush1.bf16.msra.mxu0 0
  %360 = vmatprep.subr.bf16.mxu0 0
  %361 = vmatpush1.bf16.msra.mxu0 0
  %362 = vmatprep.subr.bf16.mxu0 0
  %363 = vmatpush1.bf16.msra.mxu0 %v346
  %364 = vmatprep.subr.bf16.mxu0 0
  %365 = vmatpush2.bf16.msra.mxu0 0
  %366 = vmatprep.subr.bf16.mxu0 0
  %367 = vmatpush2.bf16.msra.mxu0 0
  %368 = vmatprep.subr.bf16.mxu0 0
  %369 = vmatpush2.bf16.msra.mxu0 0
  %370 = vmatprep.subr.bf16.mxu0 0
  %371 = vmatpush2.bf16.msra.mxu0 0
  %372 = vmatprep.subr.bf16.mxu0 0
  %373 = vmatpush2.bf16.msra.mxu0 0
  %374 = vmatprep.subr.bf16.mxu0 0
  %375 = vmatpush2.bf16.msra.mxu0 0
  %376 = vmatprep.subr.bf16.mxu0 0
  %377 = vmatpush2.bf16.msra.mxu0 0
  %378 = vmatprep.subr.bf16.mxu0 0
  %379 = vmatpush2.bf16.msra.mxu0 0
  %380 = vmatprep.mubr.bf16.mxu0 0
  %381 = vmatmul.mubr.bf16.gmra.mxu0 %v249
  %v382 = vpop.f32.mrf.mxu0
  %v383 = vadd.f32 %v85, %v382
  %v384 = vpop.f32.mrf.mxu0
  %v385 = vpop.f32.mrf.mxu0
  %v386 = vadd.f32 %v85, %v385
  %v387 = vpop.f32.mrf.mxu0
  %388 = vmatprep.mubr.bf16.mxu0 0
  %389 = vmatmul.mubr.bf16.gmra.mxu0 %v252
  %v390 = vpop.f32.mrf.mxu0
  %v391 = vadd.f32 %v85, %v390
  %v392 = vpop.f32.mrf.mxu0
  %v393 = vpop.f32.mrf.mxu0
  %v394 = vadd.f32 %v85, %v393
  %v395 = vpop.f32.mrf.mxu0
  %396 = vmatprep.mubr.bf16.mxu0 0
  %397 = vmatmul.mubr.bf16.gmra.mxu0 %v255
  %v398 = vpop.f32.mrf.mxu0
  %v399 = vadd.f32 %v85, %v398
  %v400 = vpop.f32.mrf.mxu0
  %v401 = vpop.f32.mrf.mxu0
  %v402 = vadd.f32 %v85, %v401
  %v403 = vpop.f32.mrf.mxu0
  %404 = vmatprep.mubr.bf16.mxu0 0
  %405 = vmatmul.mubr.bf16.gmra.mxu0 %v258
  %v406 = vpop.f32.mrf.mxu0
  %v407 = vadd.f32 %v85, %v406
  %v408 = vpop.f32.mrf.mxu0
  %v409 = vpop.f32.mrf.mxu0
  %v410 = vadd.f32 %v85, %v409
  %v411 = vpop.f32.mrf.mxu0
  %412 = vmatprep.mubr.bf16.mxu0 0
  %413 = vmatmul.mubr.bf16.gmra.mxu0 %v261
  %v414 = vpop.f32.mrf.mxu0
  %v415 = vadd.f32 %v85, %v414
  %v416 = vpop.f32.mrf.mxu0
  %v417 = vpop.f32.mrf.mxu0
  %v418 = vadd.f32 %v85, %v417
  %v419 = vpop.f32.mrf.mxu0
  %420 = vmatprep.mubr.bf16.mxu0 0
  %421 = vmatmul.mubr.bf16.gmra.mxu0 %v264
  %v422 = vpop.f32.mrf.mxu0
  %v423 = vadd.f32 %v85, %v422
  %v424 = vpop.f32.mrf.mxu0
  %v425 = vpop.f32.mrf.mxu0
  %v426 = vadd.f32 %v85, %v425
  %v427 = vpop.f32.mrf.mxu0
  %428 = vmatprep.mubr.bf16.mxu0 0
  %429 = vmatmul.mubr.bf16.gmra.mxu0 %v267
  %v430 = vpop.f32.mrf.mxu0
  %v431 = vadd.f32 %v85, %v430
  %v432 = vpop.f32.mrf.mxu0
  %v433 = vpop.f32.mrf.mxu0
  %v434 = vadd.f32 %v85, %v433
  %v435 = vpop.f32.mrf.mxu0
  %436 = vmatprep.mubr.bf16.mxu0 0
  %437 = vmatmul.mubr.bf16.gmra.mxu0 %v270
  %v438 = vpop.f32.mrf.mxu0
  %v439 = vadd.f32 %v85, %v438
  %v440 = vpop.f32.mrf.mxu0
  %v441 = vpop.f32.mrf.mxu0
  %v442 = vadd.f32 %v85, %v441
  %v443 = vpop.f32.mrf.mxu0
  %444 = vmatprep.mubr.bf16.mxu0 0
  %445 = vmatmul.mubr.bf16.gmra.mxu0 %v273
  %v446 = vpop.f32.mrf.mxu0
  %v447 = vadd.f32 %v85, %v446
  %v448 = vpop.f32.mrf.mxu0
  %v449 = vpop.f32.mrf.mxu0
  %v450 = vadd.f32 %v85, %v449
  %v451 = vpop.f32.mrf.mxu0
  %452 = vmatprep.mubr.bf16.mxu0 0
  %453 = vmatmul.mubr.bf16.gmra.mxu0 %v276
  %v454 = vpop.f32.mrf.mxu0
  %v455 = vadd.f32 %v85, %v454
  %v456 = vpop.f32.mrf.mxu0
  %v457 = vpop.f32.mrf.mxu0
  %v458 = vadd.f32 %v85, %v457
  %v459 = vpop.f32.mrf.mxu0
  %460 = vmatprep.mubr.bf16.mxu0 0
  %461 = vmatmul.mubr.bf16.gmra.mxu0 %v279
  %v462 = vpop.f32.mrf.mxu0
  %v463 = vadd.f32 %v85, %v462
  %v464 = vpop.f32.mrf.mxu0
  %v465 = vpop.f32.mrf.mxu0
  %v466 = vadd.f32 %v85, %v465
  %v467 = vpop.f32.mrf.mxu0
  %468 = vmatprep.mubr.bf16.mxu0 0
  %469 = vmatmul.mubr.bf16.gmra.mxu0 %v282
  %v470 = vpop.f32.mrf.mxu0
  %v471 = vadd.f32 %v85, %v470
  %v472 = vpop.f32.mrf.mxu0
  %v473 = vpop.f32.mrf.mxu0
  %v474 = vadd.f32 %v85, %v473
  %v475 = vpop.f32.mrf.mxu0
  %476 = vmatprep.mubr.bf16.mxu0 0
  %477 = vmatmul.mubr.bf16.gmra.mxu0 %v285
  %v478 = vpop.f32.mrf.mxu0
  %v479 = vadd.f32 %v85, %v478
  %v480 = vpop.f32.mrf.mxu0
  %v481 = vpop.f32.mrf.mxu0
  %v482 = vadd.f32 %v85, %v481
  %v483 = vpop.f32.mrf.mxu0
  %484 = vmatprep.mubr.bf16.mxu0 0
  %485 = vmatmul.mubr.bf16.gmra.mxu0 %v288
  %v486 = vpop.f32.mrf.mxu0
  %v487 = vadd.f32 %v85, %v486
  %v488 = vpop.f32.mrf.mxu0
  %v489 = vpop.f32.mrf.mxu0
  %v490 = vadd.f32 %v85, %v489
  %v491 = vpop.f32.mrf.mxu0
  %492 = vmatprep.mubr.bf16.mxu0 0
  %493 = vmatmul.mubr.bf16.gmra.mxu0 %v291
  %v494 = vpop.f32.mrf.mxu0
  %v495 = vadd.f32 %v85, %v494
  %v496 = vpop.f32.mrf.mxu0
  %v497 = vpop.f32.mrf.mxu0
  %v498 = vadd.f32 %v85, %v497
  %v499 = vpop.f32.mrf.mxu0
  %500 = vmatprep.mubr.bf16.mxu0 0
  %501 = vmatmul.mubr.bf16.gmra.mxu0 %v294
  %v502 = vpop.f32.mrf.mxu0
  %v503 = vadd.f32 %v85, %v502
  %v504 = vpop.f32.mrf.mxu0
  %v505 = vpop.f32.mrf.mxu0
  %v506 = vadd.f32 %v85, %v505
  %v507 = vpop.f32.mrf.mxu0
  %508 = vmatprep.mubr.bf16.mxu0 0
  %509 = vmatmul.mubr.bf16.gmra.mxu0 %v297
  %v510 = vpop.f32.mrf.mxu0
  %v511 = vadd.f32 %v85, %v510
  %v512 = vpop.f32.mrf.mxu0
  %v513 = vpop.f32.mrf.mxu0
  %v514 = vadd.f32 %v85, %v513
  %v515 = vpop.f32.mrf.mxu0
  %516 = vmatprep.mubr.bf16.mxu0 0
  %517 = vmatmul.mubr.bf16.gmra.mxu0 %v300
  %v518 = vpop.f32.mrf.mxu0
  %v519 = vadd.f32 %v85, %v518
  %v520 = vpop.f32.mrf.mxu0
  %v521 = vpop.f32.mrf.mxu0
  %v522 = vadd.f32 %v85, %v521
  %v523 = vpop.f32.mrf.mxu0
  %524 = vmatprep.mubr.bf16.mxu0 0
  %525 = vmatmul.mubr.bf16.gmra.mxu0 %v303
  %v526 = vpop.f32.mrf.mxu0
  %v527 = vadd.f32 %v85, %v526
  %v528 = vpop.f32.mrf.mxu0
  %v529 = vpop.f32.mrf.mxu0
  %v530 = vadd.f32 %v85, %v529
  %v531 = vpop.f32.mrf.mxu0
  %532 = vmatprep.mubr.bf16.mxu0 0
  %533 = vmatmul.mubr.bf16.gmra.mxu0 %v306
  %v534 = vpop.f32.mrf.mxu0
  %v535 = vadd.f32 %v85, %v534
  %v536 = vpop.f32.mrf.mxu0
  %v537 = vpop.f32.mrf.mxu0
  %v538 = vadd.f32 %v85, %v537
  %v539 = vpop.f32.mrf.mxu0
  %540 = vmatprep.mubr.bf16.mxu0 0
  %541 = vmatmul.mubr.bf16.gmra.mxu0 %v309
  %v542 = vpop.f32.mrf.mxu0
  %v543 = vadd.f32 %v85, %v542
  %v544 = vpop.f32.mrf.mxu0
  %v545 = vpop.f32.mrf.mxu0
  %v546 = vadd.f32 %v85, %v545
  %v547 = vpop.f32.mrf.mxu0
  %548 = vmatprep.mubr.bf16.mxu0 0
  %549 = vmatmul.mubr.bf16.gmra.mxu0 %v312
  %v550 = vpop.f32.mrf.mxu0
  %v551 = vadd.f32 %v85, %v550
  %v552 = vpop.f32.mrf.mxu0
  %v553 = vpop.f32.mrf.mxu0
  %v554 = vadd.f32 %v85, %v553
  %v555 = vpop.f32.mrf.mxu0
  %556 = vmatprep.mubr.bf16.mxu0 0
  %557 = vmatmul.mubr.bf16.gmra.mxu0 %v315
  %v558 = vpop.f32.mrf.mxu0
  %v559 = vadd.f32 %v85, %v558
  %v560 = vpop.f32.mrf.mxu0
  %v561 = vpop.f32.mrf.mxu0
  %v562 = vadd.f32 %v85, %v561
  %v563 = vpop.f32.mrf.mxu0
  %564 = vmatprep.mubr.bf16.mxu0 0
  %565 = vmatmul.mubr.bf16.gmra.mxu0 %v318
  %v566 = vpop.f32.mrf.mxu0
  %v567 = vadd.f32 %v85, %v566
  %v568 = vpop.f32.mrf.mxu0
  %v569 = vpop.f32.mrf.mxu0
  %v570 = vadd.f32 %v85, %v569
  %v571 = vpop.f32.mrf.mxu0
  %572 = vmatprep.mubr.bf16.mxu0 0
  %573 = vmatmul.mubr.bf16.gmra.mxu0 %v321
  %v574 = vpop.f32.mrf.mxu0
  %v575 = vadd.f32 %v85, %v574
  %v576 = vpop.f32.mrf.mxu0
  %v577 = vpop.f32.mrf.mxu0
  %v578 = vadd.f32 %v85, %v577
  %v579 = vpop.f32.mrf.mxu0
  %580 = vmatprep.mubr.bf16.mxu0 0
  %581 = vmatmul.mubr.bf16.gmra.mxu0 %v324
  %v582 = vpop.f32.mrf.mxu0
  %v583 = vadd.f32 %v85, %v582
  %v584 = vpop.f32.mrf.mxu0
  %v585 = vpop.f32.mrf.mxu0
  %v586 = vadd.f32 %v85, %v585
  %v587 = vpop.f32.mrf.mxu0
  %588 = vmatprep.mubr.bf16.mxu0 0
  %589 = vmatmul.mubr.bf16.gmra.mxu0 %v327
  %v590 = vpop.f32.mrf.mxu0
  %v591 = vadd.f32 %v85, %v590
  %v592 = vpop.f32.mrf.mxu0
  %v593 = vpop.f32.mrf.mxu0
  %v594 = vadd.f32 %v85, %v593
  %v595 = vpop.f32.mrf.mxu0
  %596 = vmatprep.mubr.bf16.mxu0 0
  %597 = vmatmul.mubr.bf16.gmra.mxu0 %v330
  %v598 = vpop.f32.mrf.mxu0
  %v599 = vadd.f32 %v85, %v598
  %v600 = vpop.f32.mrf.mxu0
  %v601 = vpop.f32.mrf.mxu0
  %v602 = vadd.f32 %v85, %v601
  %v603 = vpop.f32.mrf.mxu0
  %604 = vmatprep.mubr.bf16.mxu0 0
  %605 = vmatmul.mubr.bf16.gmra.mxu0 %v333
  %v606 = vpop.f32.mrf.mxu0
  %v607 = vadd.f32 %v85, %v606
  %v608 = vpop.f32.mrf.mxu0
  %v609 = vpop.f32.mrf.mxu0
  %v610 = vadd.f32 %v85, %v609
  %v611 = vpop.f32.mrf.mxu0
  %612 = vmatprep.mubr.bf16.mxu0 0
  %613 = vmatmul.mubr.bf16.gmra.mxu0 %v336
  %v614 = vpop.f32.mrf.mxu0
  %v615 = vadd.f32 %v85, %v614
  %v616 = vpop.f32.mrf.mxu0
  %v617 = vpop.f32.mrf.mxu0
  %v618 = vadd.f32 %v85, %v617
  %v619 = vpop.f32.mrf.mxu0
  %620 = vmatprep.mubr.bf16.mxu0 0
  %621 = vmatmul.mubr.bf16.gmra.mxu0 %v339
  %v622 = vpop.f32.mrf.mxu0
  %v623 = vadd.f32 %v85, %v622
  %v624 = vpop.f32.mrf.mxu0
  %v625 = vpop.f32.mrf.mxu0
  %v626 = vadd.f32 %v85, %v625
  %v627 = vpop.f32.mrf.mxu0
  %628 = vmatprep.mubr.bf16.mxu0 0
  %629 = vmatmul.mubr.bf16.gmra.mxu0 %v342
  %v630 = vpop.f32.mrf.mxu0
  %v631 = vadd.f32 %v85, %v630
  %v632 = vpop.f32.mrf.mxu0
  %v633 = vpop.f32.mrf.mxu0
  %v634 = vadd.f32 %v85, %v633
  %v635 = vpop.f32.mrf.mxu0
  %636 = vdwg.mxu0
  %v637 = vmax.f32 %v383, 0.0
  %v638 = vmax.f32 %v386, 0.0
  %v639 = vmax.f32 %v391, 0.0
  %v640 = vmax.f32 %v394, 0.0
  %v641 = vmax.f32 %v399, 0.0
  %v642 = vmax.f32 %v402, 0.0
  %v643 = vmax.f32 %v407, 0.0
  %v644 = vmax.f32 %v410, 0.0
  %v645 = vmax.f32 %v415, 0.0
  %v646 = vmax.f32 %v418, 0.0
  %v647 = vmax.f32 %v423, 0.0
  %v648 = vmax.f32 %v426, 0.0
  %v649 = vmax.f32 %v431, 0.0
  %v650 = vmax.f32 %v434, 0.0
  %v651 = vmax.f32 %v439, 0.0
  %v652 = vmax.f32 %v442, 0.0
  %v653 = vmax.f32 %v447, 0.0
  %v654 = vmax.f32 %v450, 0.0
  %v655 = vmax.f32 %v455, 0.0
  %v656 = vmax.f32 %v458, 0.0
  %v657 = vmax.f32 %v463, 0.0
  %v658 = vmax.f32 %v466, 0.0
  %v659 = vmax.f32 %v471, 0.0
  %v660 = vmax.f32 %v474, 0.0
  %v661 = vmax.f32 %v479, 0.0
  %v662 = vmax.f32 %v482, 0.0
  %v663 = vmax.f32 %v487, 0.0
  %v664 = vmax.f32 %v490, 0.0
  %v665 = vmax.f32 %v495, 0.0
  %v666 = vmax.f32 %v498, 0.0
  %v667 = vmax.f32 %v503, 0.0
  %v668 = vmax.f32 %v506, 0.0
  %v669 = vmax.f32 %v511, 0.0
  %v670 = vmax.f32 %v514, 0.0
  %v671 = vmax.f32 %v519, 0.0
  %v672 = vmax.f32 %v522, 0.0
  %v673 = vmax.f32 %v527, 0.0
  %v674 = vmax.f32 %v530, 0.0
  %v675 = vmax.f32 %v535, 0.0
  %v676 = vmax.f32 %v538, 0.0
  %v677 = vmax.f32 %v543, 0.0
  %v678 = vmax.f32 %v546, 0.0
  %v679 = vmax.f32 %v551, 0.0
  %v680 = vmax.f32 %v554, 0.0
  %v681 = vmax.f32 %v559, 0.0
  %v682 = vmax.f32 %v562, 0.0
  %v683 = vmax.f32 %v567, 0.0
  %v684 = vmax.f32 %v570, 0.0
  %v685 = vmax.f32 %v575, 0.0
  %v686 = vmax.f32 %v578, 0.0
  %v687 = vmax.f32 %v583, 0.0
  %v688 = vmax.f32 %v586, 0.0
  %v689 = vmax.f32 %v591, 0.0
  %v690 = vmax.f32 %v594, 0.0
  %v691 = vmax.f32 %v599, 0.0
  %v692 = vmax.f32 %v602, 0.0
  %v693 = vmax.f32 %v607, 0.0
  %v694 = vmax.f32 %v610, 0.0
  %v695 = vmax.f32 %v615, 0.0
  %v696 = vmax.f32 %v618, 0.0
  %v697 = vmax.f32 %v623, 0.0
  %v698 = vmax.f32 %v626, 0.0
  %v699 = vmax.f32 %v631, 0.0
  %v700 = vmax.f32 %v634, 0.0
  %v701 = vpack.c.bf16 %v638, %v637
  %v702 = vpack.c.bf16 %v640, %v639
  %v703 = vpack.c.bf16 %v642, %v641
  %v704 = vpack.c.bf16 %v644, %v643
  %v705 = vpack.c.bf16 %v646, %v645
  %v706 = vpack.c.bf16 %v648, %v647
  %v707 = vpack.c.bf16 %v650, %v649
  %v708 = vpack.c.bf16 %v652, %v651
  %v709 = vpack.c.bf16 %v654, %v653
  %v710 = vpack.c.bf16 %v656, %v655
  %v711 = vpack.c.bf16 %v658, %v657
  %v712 = vpack.c.bf16 %v660, %v659
  %v713 = vpack.c.bf16 %v662, %v661
  %v714 = vpack.c.bf16 %v664, %v663
  %v715 = vpack.c.bf16 %v666, %v665
  %v716 = vpack.c.bf16 %v668, %v667
  %v717 = vpack.c.bf16 %v670, %v669
  %v718 = vpack.c.bf16 %v672, %v671
  %v719 = vpack.c.bf16 %v674, %v673
  %v720 = vpack.c.bf16 %v676, %v675
  %v721 = vpack.c.bf16 %v678, %v677
  %v722 = vpack.c.bf16 %v680, %v679
  %v723 = vpack.c.bf16 %v682, %v681
  %v724 = vpack.c.bf16 %v684, %v683
  %v725 = vpack.c.bf16 %v686, %v685
  %v726 = vpack.c.bf16 %v688, %v687
  %v727 = vpack.c.bf16 %v690, %v689
  %v728 = vpack.c.bf16 %v692, %v691
  %v729 = vpack.c.bf16 %v694, %v693
  %v730 = vpack.c.bf16 %v696, %v695
  %v731 = vpack.c.bf16 %v698, %v697
  %v732 = vpack.c.bf16 %v700, %v699
  %v765 = vunpack.c.l.b16 %v701
  %v766 = vunpack.c.h.b16 %v701
  %v767 = vunpack.c.l.b16 %v702
  %v768 = vunpack.c.h.b16 %v702
  %v769 = vunpack.c.l.b16 %v703
  %v770 = vunpack.c.h.b16 %v703
  %v771 = vunpack.c.l.b16 %v704
  %v772 = vunpack.c.h.b16 %v704
  %v773 = vunpack.c.l.b16 %v705
  %v774 = vunpack.c.h.b16 %v705
  %v775 = vunpack.c.l.b16 %v706
  %v776 = vunpack.c.h.b16 %v706
  %v777 = vunpack.c.l.b16 %v707
  %v778 = vunpack.c.h.b16 %v707
  %v779 = vunpack.c.l.b16 %v708
  %v780 = vunpack.c.h.b16 %v708
  %v781 = vunpack.c.l.b16 %v709
  %v782 = vunpack.c.h.b16 %v709
  %v783 = vunpack.c.l.b16 %v710
  %v784 = vunpack.c.h.b16 %v710
  %v785 = vunpack.c.l.b16 %v711
  %v786 = vunpack.c.h.b16 %v711
  %v787 = vunpack.c.l.b16 %v712
  %v788 = vunpack.c.h.b16 %v712
  %v789 = vunpack.c.l.b16 %v713
  %v790 = vunpack.c.h.b16 %v713
  %v791 = vunpack.c.l.b16 %v714
  %v792 = vunpack.c.h.b16 %v714
  %v793 = vunpack.c.l.b16 %v715
  %v794 = vunpack.c.h.b16 %v715
  %v795 = vunpack.c.l.b16 %v716
  %v796 = vunpack.c.h.b16 %v716
  %v797 = vunpack.c.l.b16 %v717
  %v798 = vunpack.c.h.b16 %v717
  %v799 = vunpack.c.l.b16 %v718
  %v800 = vunpack.c.h.b16 %v718
  %v801 = vunpack.c.l.b16 %v719
  %v802 = vunpack.c.h.b16 %v719
  %v803 = vunpack.c.l.b16 %v720
  %v804 = vunpack.c.h.b16 %v720
  %v805 = vunpack.c.l.b16 %v721
  %v806 = vunpack.c.h.b16 %v721
  %v807 = vunpack.c.l.b16 %v722
  %v808 = vunpack.c.h.b16 %v722
  %v809 = vunpack.c.l.b16 %v723
  %v810 = vunpack.c.h.b16 %v723
  %v811 = vunpack.c.l.b16 %v724
  %v812 = vunpack.c.h.b16 %v724
  %v813 = vunpack.c.l.b16 %v725
  %v814 = vunpack.c.h.b16 %v725
  %v815 = vunpack.c.l.b16 %v726
  %v816 = vunpack.c.h.b16 %v726
  %v817 = vunpack.c.l.b16 %v727
  %v818 = vunpack.c.h.b16 %v727
  %v819 = vunpack.c.l.b16 %v728
  %v820 = vunpack.c.h.b16 %v728
  %v821 = vunpack.c.l.b16 %v729
  %v822 = vunpack.c.h.b16 %v729
  %v823 = vunpack.c.l.b16 %v730
  %v824 = vunpack.c.h.b16 %v730
  %v825 = vunpack.c.l.b16 %v731
  %v826 = vunpack.c.h.b16 %v731
  %v827 = vunpack.c.l.b16 %v732
  %v828 = vunpack.c.h.b16 %v732
  %v829 = vpack.c.b16 %v765, %v765
  %v830 = vpack.c.b16 %v766, %v766
  %v831 = vpack.c.b16 %v767, %v767
  %v832 = vpack.c.b16 %v768, %v768
  %v833 = vpack.c.b16 %v769, %v769
  %v834 = vpack.c.b16 %v770, %v770
  %v835 = vpack.c.b16 %v771, %v771
  %v836 = vpack.c.b16 %v772, %v772
  %v837 = vpack.c.b16 %v773, %v773
  %v838 = vpack.c.b16 %v774, %v774
  %v839 = vpack.c.b16 %v775, %v775
  %v840 = vpack.c.b16 %v776, %v776
  %v841 = vpack.c.b16 %v777, %v777
  %v842 = vpack.c.b16 %v778, %v778
  %v843 = vpack.c.b16 %v779, %v779
  %v844 = vpack.c.b16 %v780, %v780
  %v845 = vpack.c.b16 %v781, %v781
  %v846 = vpack.c.b16 %v782, %v782
  %v847 = vpack.c.b16 %v783, %v783
  %v848 = vpack.c.b16 %v784, %v784
  %v849 = vpack.c.b16 %v785, %v785
  %v850 = vpack.c.b16 %v786, %v786
  %v851 = vpack.c.b16 %v787, %v787
  %v852 = vpack.c.b16 %v788, %v788
  %v853 = vpack.c.b16 %v789, %v789
  %v854 = vpack.c.b16 %v790, %v790
  %v855 = vpack.c.b16 %v791, %v791
  %v856 = vpack.c.b16 %v792, %v792
  %v857 = vpack.c.b16 %v793, %v793
  %v858 = vpack.c.b16 %v794, %v794
  %v859 = vpack.c.b16 %v795, %v795
  %v860 = vpack.c.b16 %v796, %v796
  %v861 = vpack.c.b16 %v797, %v797
  %v862 = vpack.c.b16 %v798, %v798
  %v863 = vpack.c.b16 %v799, %v799
  %v864 = vpack.c.b16 %v800, %v800
  %v865 = vpack.c.b16 %v801, %v801
  %v866 = vpack.c.b16 %v802, %v802
  %v867 = vpack.c.b16 %v803, %v803
  %v868 = vpack.c.b16 %v804, %v804
  %v869 = vpack.c.b16 %v805, %v805
  %v870 = vpack.c.b16 %v806, %v806
  %v871 = vpack.c.b16 %v807, %v807
  %v872 = vpack.c.b16 %v808, %v808
  %v873 = vpack.c.b16 %v809, %v809
  %v874 = vpack.c.b16 %v810, %v810
  %v875 = vpack.c.b16 %v811, %v811
  %v876 = vpack.c.b16 %v812, %v812
  %v877 = vpack.c.b16 %v813, %v813
  %v878 = vpack.c.b16 %v814, %v814
  %v879 = vpack.c.b16 %v815, %v815
  %v880 = vpack.c.b16 %v816, %v816
  %v881 = vpack.c.b16 %v817, %v817
  %v882 = vpack.c.b16 %v818, %v818
  %v883 = vpack.c.b16 %v819, %v819
  %v884 = vpack.c.b16 %v820, %v820
  %v885 = vpack.c.b16 %v821, %v821
  %v886 = vpack.c.b16 %v822, %v822
  %v887 = vpack.c.b16 %v823, %v823
  %v888 = vpack.c.b16 %v824, %v824
  %v889 = vpack.c.b16 %v825, %v825
  %v890 = vpack.c.b16 %v826, %v826
  %v891 = vpack.c.b16 %v827, %v827
  %v892 = vpack.c.b16 %v828, %v828
  %957 = vst [vmem:[%s3] sm:$0xf] %v829
  %958 = vst [vmem:[%s3 + $0x4] sm:$0xf] %v830
  %959 = vst [vmem:[%s3 + $0x8] sm:$0xf] %v831
  %960 = vst [vmem:[%s3 + $0xc] sm:$0xf] %v832
  %961 = vst [vmem:[%s3 + $0x10] sm:$0xf] %v833
  %962 = vst [vmem:[%s3 + $0x14] sm:$0xf] %v834
  %963 = vst [vmem:[%s3 + $0x18] sm:$0xf] %v835
  %964 = vst [vmem:[%s3 + $0x1c] sm:$0xf] %v836
  %965 = vst [vmem:[%s3 + $0x20] sm:$0xf] %v837
  %966 = vst [vmem:[%s3 + $0x24] sm:$0xf] %v838
  %967 = vst [vmem:[%s3 + $0x28] sm:$0xf] %v839
  %968 = vst [vmem:[%s3 + $0x2c] sm:$0xf] %v840
  %969 = vst [vmem:[%s3 + $0x30] sm:$0xf] %v841
  %970 = vst [vmem:[%s3 + $0x34] sm:$0xf] %v842
  %971 = vst [vmem:[%s3 + $0x38] sm:$0xf] %v843
  %972 = vst [vmem:[%s3 + $0x3c] sm:$0xf] %v844
  %973 = vst [vmem:[%s3 + $0x40] sm:$0xf] %v845
  %974 = vst [vmem:[%s3 + $0x44] sm:$0xf] %v846
  %975 = vst [vmem:[%s3 + $0x48] sm:$0xf] %v847
  %976 = vst [vmem:[%s3 + $0x4c] sm:$0xf] %v848
  %977 = vst [vmem:[%s3 + $0x50] sm:$0xf] %v849
  %978 = vst [vmem:[%s3 + $0x54] sm:$0xf] %v850
  %979 = vst [vmem:[%s3 + $0x58] sm:$0xf] %v851
  %980 = vst [vmem:[%s3 + $0x5c] sm:$0xf] %v852
  %981 = vst [vmem:[%s3 + $0x60] sm:$0xf] %v853
  %982 = vst [vmem:[%s3 + $0x64] sm:$0xf] %v854
  %983 = vst [vmem:[%s3 + $0x68] sm:$0xf] %v855
  %984 = vst [vmem:[%s3 + $0x6c] sm:$0xf] %v856
  %985 = vst [vmem:[%s3 + $0x70] sm:$0xf] %v857
  %986 = vst [vmem:[%s3 + $0x74] sm:$0xf] %v858
  %987 = vst [vmem:[%s3 + $0x78] sm:$0xf] %v859
  %988 = vst [vmem:[%s3 + $0x7c] sm:$0xf] %v860
  %989 = vst [vmem:[%s3 + $0x80] sm:$0xf] %v861
  %990 = vst [vmem:[%s3 + $0x84] sm:$0xf] %v862
  %991 = vst [vmem:[%s3 + $0x88] sm:$0xf] %v863
  %992 = vst [vmem:[%s3 + $0x8c] sm:$0xf] %v864
  %993 = vst [vmem:[%s3 + $0x90] sm:$0xf] %v865
  %994 = vst [vmem:[%s3 + $0x94] sm:$0xf] %v866
  %995 = vst [vmem:[%s3 + $0x98] sm:$0xf] %v867
  %996 = vst [vmem:[%s3 + $0x9c] sm:$0xf] %v868
  %997 = vst [vmem:[%s3 + $0xa0] sm:$0xf] %v869
  %998 = vst [vmem:[%s3 + $0xa4] sm:$0xf] %v870
  %999 = vst [vmem:[%s3 + $0xa8] sm:$0xf] %v871
  %1000 = vst [vmem:[%s3 + $0xac] sm:$0xf] %v872
  %1001 = vst [vmem:[%s3 + $0xb0] sm:$0xf] %v873
  %1002 = vst [vmem:[%s3 + $0xb4] sm:$0xf] %v874
  %1003 = vst [vmem:[%s3 + $0xb8] sm:$0xf] %v875
  %1004 = vst [vmem:[%s3 + $0xbc] sm:$0xf] %v876
  %1005 = vst [vmem:[%s3 + $0xc0] sm:$0xf] %v877
  %1006 = vst [vmem:[%s3 + $0xc4] sm:$0xf] %v878
  %1007 = vst [vmem:[%s3 + $0xc8] sm:$0xf] %v879
  %1008 = vst [vmem:[%s3 + $0xcc] sm:$0xf] %v880
  %1009 = vst [vmem:[%s3 + $0xd0] sm:$0xf] %v881
  %1010 = vst [vmem:[%s3 + $0xd4] sm:$0xf] %v882
  %1011 = vst [vmem:[%s3 + $0xd8] sm:$0xf] %v883
  %1012 = vst [vmem:[%s3 + $0xdc] sm:$0xf] %v884
  %1013 = vst [vmem:[%s3 + $0xe0] sm:$0xf] %v885
  %1014 = vst [vmem:[%s3 + $0xe4] sm:$0xf] %v886
  %1015 = vst [vmem:[%s3 + $0xe8] sm:$0xf] %v887
  %1016 = vst [vmem:[%s3 + $0xec] sm:$0xf] %v888
  %1017 = vst [vmem:[%s3 + $0xf0] sm:$0xf] %v889
  %1018 = vst [vmem:[%s3 + $0xf4] sm:$0xf] %v890
  %1019 = vst [vmem:[%s3 + $0xf8] sm:$0xf] %v891
  %1020 = vst [vmem:[%s3 + $0xfc] sm:$0xf] %v892
  // Predicated region
  $region14: #{encoder_bottleneck_forward.3} parent=0 // pred_check
    _
  $region15: #{encoder_bottleneck_forward.3} parent=0 // pred_check_branch
    %1022 = sbr.rel (0) target = $region17
  $region16: #{encoder_bottleneck_forward.3} parent=0 // pred_region
    _
  $region17: #{encoder_bottleneck_forward.3} parent=0 // pred_fallthru
    _
  // Predicated region
  $region18: #{encoder_bottleneck_forward.3} parent=0 // pred_check
    _
  $region19: #{encoder_bottleneck_forward.3} parent=0 // pred_check_branch
    %1024 = sbr.rel (0) target = $region21
  $region20: #{encoder_bottleneck_forward.3} parent=0 // pred_region
    _
  $region21: #{encoder_bottleneck_forward.3} parent=0 // pred_fallthru
    _

// kernel: encoder_bottleneck_forward.4
$region0: #{encoder_bottleneck_forward.4}
  #allocation0 [shape = 'u32[]', space=smem, size = 0x4, offset = 0x4, fixed_abs, tag = 'smem constant byte address 0x4 - core index']
  #allocation1 [shape = 'u32[144,128]{1,0:T(1,128)}', space=vmem, size = 0x12000, scoped, tag = 'internal scratch']
  %s0 = inlined_call_operand.vmem [shape: bf16[2,4,8,8,128], index: 0, kind: input, shape index: {}, may-alias: {0,1,2,3,4,5}]
  %s1 = inlined_call_operand.vmem [shape: bf16[2,4,8,8,128], index: 1, kind: input, shape index: {}, may-alias: {0,1,2,3,4,5}]
  %s2 = inlined_call_operand.vmem [shape: bf16[2,4,8,8,128], index: 2, kind: input, shape index: {}, may-alias: {0,1,2,3,4,5}]
  %s3 = inlined_call_operand.vmem [shape: bf16[2,4,8,8,128], index: 3, kind: input, shape index: {}, may-alias: {0,1,2,3,4,5}]
  %s4 = inlined_call_operand.vmem [shape: bf16[2,4,8,8,128], index: 4, kind: input, shape index: {}, may-alias: {0,1,2,3,4,5}]
  %s5 = inlined_call_operand.vmem [shape: bf16[2,4,8,8,128], index: 5, kind: input, shape index: {}, may-alias: {0,1,2,3,4,5}]
  %s6 = inlined_call_operand.vmem [shape: bf16[1152,128], index: 6, kind: input, shape index: {}]
  %s7 = inlined_call_operand.vmem [shape: f32[1,128], index: 7, kind: input, shape index: {}]
  %s8 = inlined_call_operand.vmem [shape: bf16[2,64,128], index: 8, kind: output, shape index: {}]
  %s9 = sld [smem:[#allocation0]]
  $region65: #{encoder_bottleneck_forward.4} parent=0
    _
  %s11 = ssub.s32 1, %s9
  %s12 = scalar_select 0, %s11, %s9
  loop: start=0, step=1, limit=4
  $region2: #{encoder_bottleneck_forward.4} parent=0 // loop_pre_header
    _
  $region3: #{encoder_bottleneck_forward.4} parent=0 // loop_header
    %s14 = sphi 0, %s18
    %p15 = scmp.ge.s32.totalorder %s14, 4
    %s21 = sphi 0, %s33
    %s22 = sphi 0, %s29
    %s23 = sphi 0, %s21
    %s24 = sphi 0, %s22
    %s25 = sphi 0, %s23
    %s26 = sphi 0, %s24
    %s38 = sphi 0, %s40
    %s41 = sphi 0, %s38
    %s42 = sphi 0, %s41
    %s58 = sphi 0, %s42
    %s66 = sphi 0, %s68
    %s69 = sphi 0, %s66
    %s70 = sphi 0, %s69
    %s86 = sphi 0, %s70
    %s94 = sphi 0, %s96
    %s97 = sphi 0, %s94
    %s98 = sphi 0, %s97
    %s114 = sphi 0, %s98
    %s122 = sphi 0, %s124
    %s125 = sphi 0, %s122
    %s126 = sphi 0, %s125
    %s142 = sphi 0, %s126
    %s158 = sphi 0, %s160
    %s161 = sphi 0, %s158
    %s162 = sphi 0, %s161
    %s178 = sphi 0, %s162
    %s194 = sphi 0, %s196
    %s197 = sphi 0, %s194
    %s198 = sphi 0, %s197
    %s214 = sphi 0, %s198
    %s218 = sphi 0, %s218
    %s220 = sphi 0, %s218
    %s221 = sphi 0, %s220
    %s235 = sphi 0, %s221
    %s239 = sphi 0, %s239
    %s241 = sphi 0, %s239
    %s242 = sphi 0, %s241
    %s256 = sphi 0, %s242
    %s264 = sphi 0, %s266
    %s267 = sphi 0, %s264
    %s268 = sphi 0, %s267
    %s284 = sphi 0, %s268
  $region4: #{encoder_bottleneck_forward.4} parent=0 // loop_header_branch
    %17 = sbr.rel (%p15) target = $region8
  $region5: #{encoder_bottleneck_forward.4} parent=0 // loop_body
    %s19 = ssub.s32 %s14, 1
    %s20 = ssub.s32 %s14, 2
    %s27 = sadd.s32 1, %s22
    %p28 = scmp.ge.s32.totalorder %s27, 1
    %s29 = scalar_select %p28, 0, %s27
    %s30 = sadd.s32 1, %s21
    %s31 = scalar_select %p28, %s30, %s21
    %p32 = scmp.ge.s32.totalorder %s31, 2
    %s33 = scalar_select %p32, 0, %s31
    %s34 = ssub.s32 %s21, %s33
    %s35 = ssub.s32 %s22, %s29
    %s36 = sor.u32 %s34, %s35
    %p37 = scmp.eq.s32.totalorder %s36, 0
    %s39 = sadd.s32 %s38, 1
    %s40 = scalar_select %p37, %s38, %s39
    %p43 = pneg %p37
    %p44 = scmp.eq.s32.totalorder %s14, 1
    %p45 = por %p43, %p44
    %p46 = scmp.ne.s32.totalorder %s38, %s41
    %p47 = scmp.eq.s32.totalorder %s14, 0
    %p48 = por %p46, %p47
    %p49 = scmp.ne.s32.totalorder %s38, %s41
    %p50 = scmp.eq.s32.totalorder %s19, 1
    %p51 = por %p49, %p50
    %p52 = scmp.ne.s32.totalorder %s41, %s42
    %p53 = scmp.eq.s32.totalorder %s19, 0
    %p54 = por %p52, %p53
    %p55 = scmp.ne.s32.totalorder %s41, %s42
    %p56 = scmp.eq.s32.totalorder %s20, 1
    %p57 = por %p55, %p56
    %p59 = scmp.ne.s32.totalorder %s42, %s58
    %p60 = scmp.eq.s32.totalorder %s20, 0
    %p61 = por %p59, %p60
    %s62 = ssub.s32 %s21, %s33
    %s63 = ssub.s32 %s22, %s29
    %s64 = sor.u32 %s62, %s63
    %p65 = scmp.eq.s32.totalorder %s64, 0
    %s67 = sadd.s32 %s66, 1
    %s68 = scalar_select %p65, %s66, %s67
    %p71 = pneg %p65
    %p72 = scmp.eq.s32.totalorder %s14, 1
    %p73 = por %p71, %p72
    %p74 = scmp.ne.s32.totalorder %s66, %s69
    %p75 = scmp.eq.s32.totalorder %s14, 0
    %p76 = por %p74, %p75
    %p77 = scmp.ne.s32.totalorder %s66, %s69
    %p78 = scmp.eq.s32.totalorder %s19, 1
    %p79 = por %p77, %p78
    %p80 = scmp.ne.s32.totalorder %s69, %s70
    %p81 = scmp.eq.s32.totalorder %s19, 0
    %p82 = por %p80, %p81
    %p83 = scmp.ne.s32.totalorder %s69, %s70
    %p84 = scmp.eq.s32.totalorder %s20, 1
    %p85 = por %p83, %p84
    %p87 = scmp.ne.s32.totalorder %s70, %s86
    %p88 = scmp.eq.s32.totalorder %s20, 0
    %p89 = por %p87, %p88
    %s90 = ssub.s32 %s21, %s33
    %s91 = ssub.s32 %s22, %s29
    %s92 = sor.u32 %s90, %s91
    %p93 = scmp.eq.s32.totalorder %s92, 0
    %s95 = sadd.s32 %s94, 1
    %s96 = scalar_select %p93, %s94, %s95
    %p99 = pneg %p93
    %p100 = scmp.eq.s32.totalorder %s14, 1
    %p101 = por %p99, %p100
    %p102 = scmp.ne.s32.totalorder %s94, %s97
    %p103 = scmp.eq.s32.totalorder %s14, 0
    %p104 = por %p102, %p103
    %p105 = scmp.ne.s32.totalorder %s94, %s97
    %p106 = scmp.eq.s32.totalorder %s19, 1
    %p107 = por %p105, %p106
    %p108 = scmp.ne.s32.totalorder %s97, %s98
    %p109 = scmp.eq.s32.totalorder %s19, 0
    %p110 = por %p108, %p109
    %p111 = scmp.ne.s32.totalorder %s97, %s98
    %p112 = scmp.eq.s32.totalorder %s20, 1
    %p113 = por %p111, %p112
    %p115 = scmp.ne.s32.totalorder %s98, %s114
    %p116 = scmp.eq.s32.totalorder %s20, 0
    %p117 = por %p115, %p116
    %s118 = ssub.s32 %s21, %s33
    %s119 = ssub.s32 %s22, %s29
    %s120 = sor.u32 %s118, %s119
    %p121 = scmp.eq.s32.totalorder %s120, 0
    %s123 = sadd.s32 %s122, 1
    %s124 = scalar_select %p121, %s122, %s123
    %p127 = pneg %p121
    %p128 = scmp.eq.s32.totalorder %s14, 1
    %p129 = por %p127, %p128
    %p130 = scmp.ne.s32.totalorder %s122, %s125
    %p131 = scmp.eq.s32.totalorder %s14, 0
    %p132 = por %p130, %p131
    %p133 = scmp.ne.s32.totalorder %s122, %s125
    %p134 = scmp.eq.s32.totalorder %s19, 1
    %p135 = por %p133, %p134
    %p136 = scmp.ne.s32.totalorder %s125, %s126
    %p137 = scmp.eq.s32.totalorder %s19, 0
    %p138 = por %p136, %p137
    %p139 = scmp.ne.s32.totalorder %s125, %s126
    %p140 = scmp.eq.s32.totalorder %s20, 1
    %p141 = por %p139, %p140
    %p143 = scmp.ne.s32.totalorder %s126, %s142
    %p144 = scmp.eq.s32.totalorder %s20, 0
    %p145 = por %p143, %p144
    %s146 = smul.u32 %s22, 8
    %s147 = ssub.s32 %s146, 1
    %p148 = scmp.gt.s32.totalorder %s147, 0
    %s149 = scalar_select %p148, %s147, 0
    %s150 = smul.u32 %s29, 8
    %s151 = ssub.s32 %s150, 1
    %p152 = scmp.gt.s32.totalorder %s151, 0
    %s153 = scalar_select %p152, %s151, 0
    %s154 = ssub.s32 %s21, %s33
    %s155 = ssub.s32 %s149, %s153
    %s156 = sor.u32 %s154, %s155
    %p157 = scmp.eq.s32.totalorder %s156, 0
    %s159 = sadd.s32 %s158, 1
    %s160 = scalar_select %p157, %s158, %s159
    %p163 = pneg %p157
    %p164 = scmp.eq.s32.totalorder %s14, 1
    %p165 = por %p163, %p164
    %p166 = scmp.ne.s32.totalorder %s158, %s161
    %p167 = scmp.eq.s32.totalorder %s14, 0
    %p168 = por %p166, %p167
    %p169 = scmp.ne.s32.totalorder %s158, %s161
    %p170 = scmp.eq.s32.totalorder %s19, 1
    %p171 = por %p169, %p170
    %p172 = scmp.ne.s32.totalorder %s161, %s162
    %p173 = scmp.eq.s32.totalorder %s19, 0
    %p174 = por %p172, %p173
    %p175 = scmp.ne.s32.totalorder %s161, %s162
    %p176 = scmp.eq.s32.totalorder %s20, 1
    %p177 = por %p175, %p176
    %p179 = scmp.ne.s32.totalorder %s162, %s178
    %p180 = scmp.eq.s32.totalorder %s20, 0
    %p181 = por %p179, %p180
    %s182 = smul.u32 %s22, 8
    %s183 = ssub.s32 %s182, 1
    %p184 = scmp.gt.s32.totalorder %s183, 0
    %s185 = scalar_select %p184, %s183, 0
    %s186 = smul.u32 %s29, 8
    %s187 = ssub.s32 %s186, 1
    %p188 = scmp.gt.s32.totalorder %s187, 0
    %s189 = scalar_select %p188, %s187, 0
    %s190 = ssub.s32 %s21, %s33
    %s191 = ssub.s32 %s185, %s189
    %s192 = sor.u32 %s190, %s191
    %p193 = scmp.eq.s32.totalorder %s192, 0
    %s195 = sadd.s32 %s194, 1
    %s196 = scalar_select %p193, %s194, %s195
    %p199 = pneg %p193
    %p200 = scmp.eq.s32.totalorder %s14, 1
    %p201 = por %p199, %p200
    %p202 = scmp.ne.s32.totalorder %s194, %s197
    %p203 = scmp.eq.s32.totalorder %s14, 0
    %p204 = por %p202, %p203
    %p205 = scmp.ne.s32.totalorder %s194, %s197
    %p206 = scmp.eq.s32.totalorder %s19, 1
    %p207 = por %p205, %p206
    %p208 = scmp.ne.s32.totalorder %s197, %s198
    %p209 = scmp.eq.s32.totalorder %s19, 0
    %p210 = por %p208, %p209
    %p211 = scmp.ne.s32.totalorder %s197, %s198
    %p212 = scmp.eq.s32.totalorder %s20, 1
    %p213 = por %p211, %p212
    %p215 = scmp.ne.s32.totalorder %s198, %s214
    %p216 = scmp.eq.s32.totalorder %s20, 0
    %p217 = por %p215, %p216
    %s219 = sadd.s32 %s218, 1
    %p222 = scmp.eq.s32.totalorder %s14, 1
    %p223 = scmp.ne.s32.totalorder %s218, %s220
    %p224 = scmp.eq.s32.totalorder %s14, 0
    %p225 = por %p223, %p224
    %p226 = scmp.ne.s32.totalorder %s218, %s220
    %p227 = scmp.eq.s32.totalorder %s19, 1
    %p228 = por %p226, %p227
    %p229 = scmp.ne.s32.totalorder %s220, %s221
    %p230 = scmp.eq.s32.totalorder %s19, 0
    %p231 = por %p229, %p230
    %p232 = scmp.ne.s32.totalorder %s220, %s221
    %p233 = scmp.eq.s32.totalorder %s20, 1
    %p234 = por %p232, %p233
    %p236 = scmp.ne.s32.totalorder %s221, %s235
    %p237 = scmp.eq.s32.totalorder %s20, 0
    %p238 = por %p236, %p237
    %s240 = sadd.s32 %s239, 1
    %p243 = scmp.eq.s32.totalorder %s14, 1
    %p244 = scmp.ne.s32.totalorder %s239, %s241
    %p245 = scmp.eq.s32.totalorder %s14, 0
    %p246 = por %p244, %p245
    %p247 = scmp.ne.s32.totalorder %s239, %s241
    %p248 = scmp.eq.s32.totalorder %s19, 1
    %p249 = por %p247, %p248
    %p250 = scmp.ne.s32.totalorder %s241, %s242
    %p251 = scmp.eq.s32.totalorder %s19, 0
    %p252 = por %p250, %p251
    %p253 = scmp.ne.s32.totalorder %s241, %s242
    %p254 = scmp.eq.s32.totalorder %s20, 1
    %p255 = por %p253, %p254
    %p257 = scmp.ne.s32.totalorder %s242, %s256
    %p258 = scmp.eq.s32.totalorder %s20, 0
    %p259 = por %p257, %p258
    %s260 = ssub.s32 %s21, %s33
    %s261 = ssub.s32 %s22, %s29
    %s262 = sor.u32 %s260, %s261
    %p263 = scmp.eq.s32.totalorder %s262, 0
    %s265 = sadd.s32 %s264, 1
    %s266 = scalar_select %p263, %s264, %s265
    %p269 = pneg %p263
    %p270 = scmp.eq.s32.totalorder %s14, 1
    %p271 = por %p269, %p270
    %p272 = scmp.ne.s32.totalorder %s264, %s267
    %p273 = scmp.eq.s32.totalorder %s14, 0
    %p274 = por %p272, %p273
    %p275 = scmp.ne.s32.totalorder %s264, %s267
    %p276 = scmp.eq.s32.totalorder %s19, 1
    %p277 = por %p275, %p276
    %p278 = scmp.ne.s32.totalorder %s267, %s268
    %p279 = scmp.eq.s32.totalorder %s19, 0
    %p280 = por %p278, %p279
    %p281 = scmp.ne.s32.totalorder %s267, %s268
    %p282 = scmp.eq.s32.totalorder %s20, 1
    %p283 = por %p281, %p282
    %p285 = scmp.ne.s32.totalorder %s268, %s284
    %p286 = scmp.eq.s32.totalorder %s20, 0
    %p287 = por %p285, %p286
    %p288 = scmp.le.s32.totalorder 1, %s14
    %p289 = scmp.lt.s32.totalorder %s14, 3
    %p290 = pnand %p288, %p289
    %p291 = pneg %p290
    // Predicated region
    $region9: #{encoder_bottleneck_forward.4} parent=5 // pred_check
      _
    $region10: #{encoder_bottleneck_forward.4} parent=5 // pred_check_branch
      %293 = sbr.rel (%p290) target = $region12
    $region11: #{encoder_bottleneck_forward.4} parent=5 // pred_region
      %s294 = ssub.s32 %s14, 1
      // Predicated region
      $region13: #{encoder_bottleneck_forward.4} parent=11 // pred_check
        %p295 = pneg %p231
      $region14: #{encoder_bottleneck_forward.4} parent=11 // pred_check_branch
        %297 = sbr.rel (%p295) target = $region16
      $region15: #{encoder_bottleneck_forward.4} parent=11 // pred_region
        _
      $region16: #{encoder_bottleneck_forward.4} parent=11 // pred_fallthru
        _
      // Predicated region
      $region17: #{encoder_bottleneck_forward.4} parent=11 // pred_check
        %p298 = pneg %p252
      $region18: #{encoder_bottleneck_forward.4} parent=11 // pred_check_branch
        %300 = sbr.rel (%p298) target = $region20
      $region19: #{encoder_bottleneck_forward.4} parent=11 // pred_region
        _
      $region20: #{encoder_bottleneck_forward.4} parent=11 // pred_fallthru
        _
    $region12: #{encoder_bottleneck_forward.4} parent=5 // pred_fallthru
      _
    %p301 = scmp.lt.s32.totalorder %s14, 2
    // Predicated region
    $region21: #{encoder_bottleneck_forward.4} parent=5 // pred_check
      %p302 = pneg %p301
    $region22: #{encoder_bottleneck_forward.4} parent=5 // pred_check_branch
      %304 = sbr.rel (%p302) target = $region24
    $region23: #{encoder_bottleneck_forward.4} parent=5 // pred_region
      // Predicated region
      $region25: #{encoder_bottleneck_forward.4} parent=23 // pred_check
        %p305 = pneg %p48
      $region26: #{encoder_bottleneck_forward.4} parent=23 // pred_check_branch
        %307 = sbr.rel (%p305) target = $region28
      $region27: #{encoder_bottleneck_forward.4} parent=23 // pred_region
        %s308 = smul.u32 8, %s22
        %p309 = scmp.lt.s32.totalorder %s21, 1
        %s310 = scalar_select %p309, %s21, 1
        %p311 = scmp.lt.s32.totalorder %s308, 7
        %s312 = scalar_select %p311, %s308, 7
        %s313 = smul.addr %s310, 32
        %s314 = sadd.s32 %s312, %s313
        %s315 = smul.addr %s314, 4
        %s316 = scalar_lea.vmem %s0, %s315
        %s317 = smul.u32 8, %s22
      $region28: #{encoder_bottleneck_forward.4} parent=23 // pred_fallthru
        _
      // Predicated region
      $region29: #{encoder_bottleneck_forward.4} parent=23 // pred_check
        %p318 = pneg %p76
      $region30: #{encoder_bottleneck_forward.4} parent=23 // pred_check_branch
        %320 = sbr.rel (%p318) target = $region32
      $region31: #{encoder_bottleneck_forward.4} parent=23 // pred_region
        %s321 = smul.u32 8, %s22
        %p322 = scmp.lt.s32.totalorder %s21, 1
        %s323 = scalar_select %p322, %s21, 1
        %p324 = scmp.lt.s32.totalorder %s321, 7
        %s325 = scalar_select %p324, %s321, 7
        %s326 = sadd.s32 %s325, 8
        %s327 = smul.addr %s323, 32
        %s328 = sadd.s32 %s326, %s327
        %s329 = smul.addr %s328, 4
        %s330 = scalar_lea.vmem %s1, %s329
        %s331 = smul.u32 8, %s22
      $region32: #{encoder_bottleneck_forward.4} parent=23 // pred_fallthru
        _
      // Predicated region
      $region33: #{encoder_bottleneck_forward.4} parent=23 // pred_check
        %p332 = pneg %p104
      $region34: #{encoder_bottleneck_forward.4} parent=23 // pred_check_branch
        %334 = sbr.rel (%p332) target = $region36
      $region35: #{encoder_bottleneck_forward.4} parent=23 // pred_region
        %s335 = smul.u32 8, %s22
        %p336 = scmp.lt.s32.totalorder %s21, 1
        %s337 = scalar_select %p336, %s21, 1
        %p338 = scmp.lt.s32.totalorder %s335, 7
        %s339 = scalar_select %p338, %s335, 7
        %s340 = sadd.s32 %s339, 16
        %s341 = smul.addr %s337, 32
        %s342 = sadd.s32 %s340, %s341
        %s343 = smul.addr %s342, 4
        %s344 = scalar_lea.vmem %s2, %s343
        %s345 = smul.u32 8, %s22
      $region36: #{encoder_bottleneck_forward.4} parent=23 // pred_fallthru
        _
      // Predicated region
      $region37: #{encoder_bottleneck_forward.4} parent=23 // pred_check
        %p346 = pneg %p132
      $region38: #{encoder_bottleneck_forward.4} parent=23 // pred_check_branch
        %348 = sbr.rel (%p346) target = $region40
      $region39: #{encoder_bottleneck_forward.4} parent=23 // pred_region
        %s349 = smul.u32 8, %s22
        %p350 = scmp.lt.s32.totalorder %s21, 1
        %s351 = scalar_select %p350, %s21, 1
        %p352 = scmp.lt.s32.totalorder %s349, 7
        %s353 = scalar_select %p352, %s349, 7
        %s354 = sadd.s32 %s353, 24
        %s355 = smul.addr %s351, 32
        %s356 = sadd.s32 %s354, %s355
        %s357 = smul.addr %s356, 4
        %s358 = scalar_lea.vmem %s3, %s357
        %s359 = smul.u32 8, %s22
      $region40: #{encoder_bottleneck_forward.4} parent=23 // pred_fallthru
        _
      // Predicated region
      $region41: #{encoder_bottleneck_forward.4} parent=23 // pred_check
        %p360 = pneg %p168
      $region42: #{encoder_bottleneck_forward.4} parent=23 // pred_check_branch
        %362 = sbr.rel (%p360) target = $region44
      $region43: #{encoder_bottleneck_forward.4} parent=23 // pred_region
        %s363 = smul.u32 %s22, 8
        %s364 = ssub.s32 %s363, 1
        %p365 = scmp.gt.s32.totalorder %s364, 0
        %s366 = scalar_select %p365, %s364, 0
        %p367 = scmp.lt.s32.totalorder %s21, 1
        %s368 = scalar_select %p367, %s21, 1
        %p369 = scmp.lt.s32.totalorder %s366, 7
        %s370 = scalar_select %p369, %s366, 7
        %s371 = sadd.s32 %s370, 16
        %s372 = smul.addr %s368, 32
        %s373 = sadd.s32 %s371, %s372
        %s374 = smul.addr %s373, 4
        %s375 = scalar_lea.vmem %s4, %s374
        %s376 = smul.u32 %s22, 8
        %s377 = ssub.s32 %s376, 1
        %p378 = scmp.gt.s32.totalorder %s377, 0
        %s379 = scalar_select %p378, %s377, 0
      $region44: #{encoder_bottleneck_forward.4} parent=23 // pred_fallthru
        _
      // Predicated region
      $region45: #{encoder_bottleneck_forward.4} parent=23 // pred_check
        %p380 = pneg %p204
      $region46: #{encoder_bottleneck_forward.4} parent=23 // pred_check_branch
        %382 = sbr.rel (%p380) target = $region48
      $region47: #{encoder_bottleneck_forward.4} parent=23 // pred_region
        %s383 = smul.u32 %s22, 8
        %s384 = ssub.s32 %s383, 1
        %p385 = scmp.gt.s32.totalorder %s384, 0
        %s386 = scalar_select %p385, %s384, 0
        %p387 = scmp.lt.s32.totalorder %s21, 1
        %s388 = scalar_select %p387, %s21, 1
        %p389 = scmp.lt.s32.totalorder %s386, 7
        %s390 = scalar_select %p389, %s386, 7
        %s391 = sadd.s32 %s390, 24
        %s392 = smul.addr %s388, 32
        %s393 = sadd.s32 %s391, %s392
        %s394 = smul.addr %s393, 4
        %s395 = scalar_lea.vmem %s5, %s394
        %s396 = smul.u32 %s22, 8
        %s397 = ssub.s32 %s396, 1
        %p398 = scmp.gt.s32.totalorder %s397, 0
        %s399 = scalar_select %p398, %s397, 0
      $region48: #{encoder_bottleneck_forward.4} parent=23 // pred_fallthru
        _
    $region24: #{encoder_bottleneck_forward.4} parent=5 // pred_fallthru
      _
    %p400 = scmp.le.s32.totalorder 1, %s14
    %p401 = scmp.lt.s32.totalorder %s14, 3
    %p402 = pnand %p400, %p401
    %p403 = pneg %p402
    // Predicated region
    $region49: #{encoder_bottleneck_forward.4} parent=5 // pred_check
      _
    $region50: #{encoder_bottleneck_forward.4} parent=5 // pred_check_branch
      %405 = sbr.rel (%p402) target = $region52
    $region51: #{encoder_bottleneck_forward.4} parent=5 // pred_region
      %s406 = ssub.s32 %s14, 1
      %s407 = smul.u32 8, %s24
      %p408 = scmp.lt.s32.totalorder %s23, 1
      %s409 = scalar_select %p408, %s23, 1
      %p410 = scmp.lt.s32.totalorder %s407, 7
      %s411 = scalar_select %p410, %s407, 7
      %s412 = smul.addr %s409, 32
      %s413 = sadd.s32 %s411, %s412
      %s414 = smul.addr %s413, 4
      %s415 = scalar_lea.vmem %s0, %s414
      %p416 = pneg %p54
      %p417 = pneg %p51
      %s418 = smul.u32 8, %s24
      %p419 = scmp.lt.s32.totalorder %s23, 1
      %s420 = scalar_select %p419, %s23, 1
      %p421 = scmp.lt.s32.totalorder %s418, 7
      %s422 = scalar_select %p421, %s418, 7
      %s423 = sadd.s32 %s422, 8
      %s424 = smul.addr %s420, 32
      %s425 = sadd.s32 %s423, %s424
      %s426 = smul.addr %s425, 4
      %s427 = scalar_lea.vmem %s1, %s426
      %p428 = pneg %p82
      %p429 = pneg %p79
      %s430 = smul.u32 8, %s24
      %p431 = scmp.lt.s32.totalorder %s23, 1
      %s432 = scalar_select %p431, %s23, 1
      %p433 = scmp.lt.s32.totalorder %s430, 7
      %s434 = scalar_select %p433, %s430, 7
      %s435 = sadd.s32 %s434, 16
      %s436 = smul.addr %s432, 32
      %s437 = sadd.s32 %s435, %s436
      %s438 = smul.addr %s437, 4
      %s439 = scalar_lea.vmem %s2, %s438
      %p440 = pneg %p110
      %p441 = pneg %p107
      %s442 = smul.u32 8, %s24
      %p443 = scmp.lt.s32.totalorder %s23, 1
      %s444 = scalar_select %p443, %s23, 1
      %p445 = scmp.lt.s32.totalorder %s442, 7
      %s446 = scalar_select %p445, %s442, 7
      %s447 = sadd.s32 %s446, 24
      %s448 = smul.addr %s444, 32
      %s449 = sadd.s32 %s447, %s448
      %s450 = smul.addr %s449, 4
      %s451 = scalar_lea.vmem %s3, %s450
      %p452 = pneg %p138
      %p453 = pneg %p135
      %s454 = smul.u32 %s24, 8
      %s455 = ssub.s32 %s454, 1
      %p456 = scmp.gt.s32.totalorder %s455, 0
      %s457 = scalar_select %p456, %s455, 0
      %p458 = scmp.lt.s32.totalorder %s23, 1
      %s459 = scalar_select %p458, %s23, 1
      %p460 = scmp.lt.s32.totalorder %s457, 7
      %s461 = scalar_select %p460, %s457, 7
      %s462 = sadd.s32 %s461, 16
      %s463 = smul.addr %s459, 32
      %s464 = sadd.s32 %s462, %s463
      %s465 = smul.addr %s464, 4
      %s466 = scalar_lea.vmem %s4, %s465
      %p467 = pneg %p174
      %p468 = pneg %p171
      %s469 = smul.u32 %s24, 8
      %s470 = ssub.s32 %s469, 1
      %p471 = scmp.gt.s32.totalorder %s470, 0
      %s472 = scalar_select %p471, %s470, 0
      %p473 = scmp.lt.s32.totalorder %s23, 1
      %s474 = scalar_select %p473, %s23, 1
      %p475 = scmp.lt.s32.totalorder %s472, 7
      %s476 = scalar_select %p475, %s472, 7
      %s477 = sadd.s32 %s476, 24
      %s478 = smul.addr %s474, 32
      %s479 = sadd.s32 %s477, %s478
      %s480 = smul.addr %s479, 4
      %s481 = scalar_lea.vmem %s5, %s480
      %p482 = pneg %p210
      %p483 = pneg %p207
      %p484 = pneg %p231
      %p485 = pneg %p228
      %p486 = pneg %p252
      %p487 = pneg %p249
      %p488 = pneg %p280
      %p489 = pneg %p277
      %s490 = smul.u32 8, %s24
      %p491 = scmp.lt.s32.totalorder %s23, 1
      %s492 = scalar_select %p491, %s23, 1
      %p493 = scmp.lt.s32.totalorder %s490, 7
      %s494 = scalar_select %p493, %s490, 7
      %s495 = smul.addr %s492, 8
      %s496 = sadd.s32 %s494, %s495
      %s497 = smul.addr %s496, 4
      %s498 = scalar_lea.vmem %s8, %s497
      %s499 = smul.u32 8, %s24
      %p500 = scmp.lt.s32.totalorder %s23, 1
      %s501 = scalar_select %p500, %s23, 1
      %p502 = scmp.lt.s32.totalorder %s499, 7
      %s503 = scalar_select %p502, %s499, 7
      %s504 = smul.addr %s501, 32
      %s505 = sadd.s32 %s503, %s504
      %s506 = smul.addr %s505, 4
      %s507 = scalar_lea.vmem %s0, %s506
      %s508 = smul.u32 8, %s24
      %s509 = smul.u32 8, %s24
      %p510 = scmp.lt.s32.totalorder %s23, 1
      %s511 = scalar_select %p510, %s23, 1
      %p512 = scmp.lt.s32.totalorder %s509, 7
      %s513 = scalar_select %p512, %s509, 7
      %s514 = sadd.s32 %s513, 8
      %s515 = smul.addr %s511, 32
      %s516 = sadd.s32 %s514, %s515
      %s517 = smul.addr %s516, 4
      %s518 = scalar_lea.vmem %s1, %s517
      %s519 = smul.u32 8, %s24
      %s520 = smul.u32 8, %s24
      %p521 = scmp.lt.s32.totalorder %s23, 1
      %s522 = scalar_select %p521, %s23, 1
      %p523 = scmp.lt.s32.totalorder %s520, 7
      %s524 = scalar_select %p523, %s520, 7
      %s525 = sadd.s32 %s524, 16
      %s526 = smul.addr %s522, 32
      %s527 = sadd.s32 %s525, %s526
      %s528 = smul.addr %s527, 4
      %s529 = scalar_lea.vmem %s2, %s528
      %s530 = smul.u32 8, %s24
      %s531 = smul.u32 8, %s24
      %p532 = scmp.lt.s32.totalorder %s23, 1
      %s533 = scalar_select %p532, %s23, 1
      %p534 = scmp.lt.s32.totalorder %s531, 7
      %s535 = scalar_select %p534, %s531, 7
      %s536 = sadd.s32 %s535, 24
      %s537 = smul.addr %s533, 32
      %s538 = sadd.s32 %s536, %s537
      %s539 = smul.addr %s538, 4
      %s540 = scalar_lea.vmem %s3, %s539
      %s541 = smul.u32 8, %s24
      %s542 = smul.u32 %s24, 8
      %s543 = ssub.s32 %s542, 1
      %p544 = scmp.gt.s32.totalorder %s543, 0
      %s545 = scalar_select %p544, %s543, 0
      %p546 = scmp.lt.s32.totalorder %s23, 1
      %s547 = scalar_select %p546, %s23, 1
      %p548 = scmp.lt.s32.totalorder %s545, 7
      %s549 = scalar_select %p548, %s545, 7
      %s550 = sadd.s32 %s549, 16
      %s551 = smul.addr %s547, 32
      %s552 = sadd.s32 %s550, %s551
      %s553 = smul.addr %s552, 4
      %s554 = scalar_lea.vmem %s4, %s553
      %s555 = smul.u32 %s24, 8
      %s556 = ssub.s32 %s555, 1
      %p557 = scmp.gt.s32.totalorder %s556, 0
      %s558 = scalar_select %p557, %s556, 0
      %s559 = smul.u32 %s24, 8
      %s560 = ssub.s32 %s559, 1
      %p561 = scmp.gt.s32.totalorder %s560, 0
      %s562 = scalar_select %p561, %s560, 0
      %p563 = scmp.lt.s32.totalorder %s23, 1
      %s564 = scalar_select %p563, %s23, 1
      %p565 = scmp.lt.s32.totalorder %s562, 7
      %s566 = scalar_select %p565, %s562, 7
      %s567 = sadd.s32 %s566, 24
      %s568 = smul.addr %s564, 32
      %s569 = sadd.s32 %s567, %s568
      %s570 = smul.addr %s569, 4
      %s571 = scalar_lea.vmem %s5, %s570
      %s572 = smul.u32 %s24, 8
      %s573 = ssub.s32 %s572, 1
      %p574 = scmp.gt.s32.totalorder %s573, 0
      %s575 = scalar_select %p574, %s573, 0
      %s576 = smul.u32 8, %s24
      %p577 = scmp.lt.s32.totalorder %s23, 1
      %s578 = scalar_select %p577, %s23, 1
      %p579 = scmp.lt.s32.totalorder %s576, 7
      %s580 = scalar_select %p579, %s576, 7
      %s581 = smul.addr %s578, 8
      %s582 = sadd.s32 %s580, %s581
      %s583 = smul.addr %s582, 4
      %s584 = scalar_lea.vmem %s8, %s583
      %s585 = smul.u32 8, %s24
      %v587 = vld [vmem:[%s507] sm:$0xf]
      %v588 = vld [vmem:[%s507 + $0x4] sm:$0xf]
      %v589 = vld [vmem:[%s507 + $0x8] sm:$0xf]
      %v590 = vld [vmem:[%s507 + $0xc] sm:$0xf]
      %v591 = vld [vmem:[%s507 + $0x10] sm:$0xf]
      %v592 = vld [vmem:[%s507 + $0x14] sm:$0xf]
      %v593 = vld [vmem:[%s507 + $0x18] sm:$0xf]
      %v594 = vld [vmem:[%s507 + $0x1c] sm:$0xf]
      %v595 = vld [vmem:[%s518] sm:$0xf]
      %v596 = vld [vmem:[%s518 + $0x4] sm:$0xf]
      %v597 = vld [vmem:[%s518 + $0x8] sm:$0xf]
      %v598 = vld [vmem:[%s518 + $0xc] sm:$0xf]
      %v599 = vld [vmem:[%s518 + $0x10] sm:$0xf]
      %v600 = vld [vmem:[%s518 + $0x14] sm:$0xf]
      %v601 = vld [vmem:[%s518 + $0x18] sm:$0xf]
      %v602 = vld [vmem:[%s518 + $0x1c] sm:$0xf]
      %v603 = vld [vmem:[%s529] sm:$0xf]
      %v604 = vld [vmem:[%s529 + $0x4] sm:$0xf]
      %v605 = vld [vmem:[%s529 + $0x8] sm:$0xf]
      %v606 = vld [vmem:[%s529 + $0xc] sm:$0xf]
      %v607 = vld [vmem:[%s529 + $0x10] sm:$0xf]
      %v608 = vld [vmem:[%s529 + $0x14] sm:$0xf]
      %v609 = vld [vmem:[%s529 + $0x18] sm:$0xf]
      %v610 = vld [vmem:[%s529 + $0x1c] sm:$0xf]
      %v611 = vld [vmem:[%s540] sm:$0xf]
      %v612 = vld [vmem:[%s540 + $0x4] sm:$0xf]
      %v613 = vld [vmem:[%s540 + $0x8] sm:$0xf]
      %v614 = vld [vmem:[%s540 + $0xc] sm:$0xf]
      %v615 = vld [vmem:[%s540 + $0x10] sm:$0xf]
      %v616 = vld [vmem:[%s540 + $0x14] sm:$0xf]
      %v617 = vld [vmem:[%s540 + $0x18] sm:$0xf]
      %v618 = vld [vmem:[%s540 + $0x1c] sm:$0xf]
      %v619 = vld [vmem:[%s554] sm:$0xf]
      %v620 = vld [vmem:[%s571] sm:$0xf]
      %p621 = scmp.gt.s32.totalorder %s24, 0
      %s622 = scalar_select %p621, 1, 0
      %v623 = vstv %s622
      %vm624 = vcmp.eq.s32.totalorder %v623, 1
      %v625 = vsel %vm624, %v619, 0
      %v626 = vsel %vm624, %v620, 0
      %v635 = vunpack.c.l.b16 %v595
      %v636 = vunpack.c.l.b16 %v596
      %v637 = vunpack.c.l.b16 %v597
      %v638 = vunpack.c.l.b16 %v598
      %v639 = vunpack.c.l.b16 %v599
      %v640 = vunpack.c.l.b16 %v600
      %v641 = vunpack.c.l.b16 %v601
      %v642 = vunpack.c.l.b16 %v602
      %v643 = vpack.c.b16 %v635, %v635
      %v644 = vpack.c.b16 %v636, %v636
      %v645 = vpack.c.b16 %v637, %v637
      %v646 = vpack.c.b16 %v638, %v638
      %v647 = vpack.c.b16 %v639, %v639
      %v648 = vpack.c.b16 %v640, %v640
      %v649 = vpack.c.b16 %v641, %v641
      %v650 = vpack.c.b16 %v642, %v642
      %v652 = vshrl.u32 %v643, 16
      %v654 = vrot.slane %v652, 7
      %v655 = vshll.u32 %v643, 16
      %v657 = vor.u32 %v654, %v655
      %v659 = vshrl.u32 %v644, 16
      %v661 = vrot.slane %v659, 7
      %v662 = vshll.u32 %v644, 16
      %v664 = vor.u32 %v661, %v662
      %v666 = vshrl.u32 %v645, 16
      %v668 = vrot.slane %v666, 7
      %v669 = vshll.u32 %v645, 16
      %v671 = vor.u32 %v668, %v669
      %v673 = vshrl.u32 %v646, 16
      %v675 = vrot.slane %v673, 7
      %v676 = vshll.u32 %v646, 16
      %v678 = vor.u32 %v675, %v676
      %v680 = vshrl.u32 %v647, 16
      %v682 = vrot.slane %v680, 7
      %v683 = vshll.u32 %v647, 16
      %v685 = vor.u32 %v682, %v683
      %v687 = vshrl.u32 %v648, 16
      %v689 = vrot.slane %v687, 7
      %v690 = vshll.u32 %v648, 16
      %v692 = vor.u32 %v689, %v690
      %v694 = vshrl.u32 %v649, 16
      %v696 = vrot.slane %v694, 7
      %v697 = vshll.u32 %v649, 16
      %v699 = vor.u32 %v696, %v697
      %v701 = vshrl.u32 %v650, 16
      %v703 = vrot.slane %v701, 7
      %v704 = vshll.u32 %v650, 16
      %v706 = vor.u32 %v703, %v704
      %vm715 = vcmask 1040384
      %vm716 = vsmask.f32 256
      %vm717 = vmand %vm715, %vm716
      %v718 = vsel %vm717, 0, %v657
      %v719 = vsel %vm717, 0, %v664
      %v720 = vsel %vm717, 0, %v671
      %v721 = vsel %vm717, 0, %v678
      %v722 = vsel %vm717, 0, %v685
      %v723 = vsel %vm717, 0, %v692
      %v724 = vsel %vm717, 0, %v699
      %v725 = vsel %vm717, 0, %v706
      %v735 = vunpack.c.l.b16 %v626
      %v736 = vunpack.c.l.b16 %v611
      %v737 = vunpack.c.l.b16 %v612
      %v738 = vunpack.c.l.b16 %v613
      %v739 = vunpack.c.l.b16 %v614
      %v740 = vunpack.c.l.b16 %v615
      %v741 = vunpack.c.l.b16 %v616
      %v742 = vunpack.c.l.b16 %v617
      %v743 = vunpack.c.l.b16 %v618
      %v744 = vpack.c.b16 %v735, %v735
      %v745 = vpack.c.b16 %v736, %v736
      %v746 = vpack.c.b16 %v737, %v737
      %v747 = vpack.c.b16 %v738, %v738
      %v748 = vpack.c.b16 %v739, %v739
      %v749 = vpack.c.b16 %v740, %v740
      %v750 = vpack.c.b16 %v741, %v741
      %v751 = vpack.c.b16 %v742, %v742
      %v752 = vpack.c.b16 %v743, %v743
      %v754 = vshrl.u32 %v744, 16
      %v756 = vrot.slane %v754, 7
      %v757 = vshll.u32 %v744, 16
      %v759 = vor.u32 %v756, %v757
      %v761 = vshrl.u32 %v745, 16
      %v763 = vrot.slane %v761, 7
      %v764 = vshll.u32 %v745, 16
      %v766 = vor.u32 %v763, %v764
      %v768 = vshrl.u32 %v746, 16
      %v770 = vrot.slane %v768, 7
      %v771 = vshll.u32 %v746, 16
      %v773 = vor.u32 %v770, %v771
      %v775 = vshrl.u32 %v747, 16
      %v777 = vrot.slane %v775, 7
      %v778 = vshll.u32 %v747, 16
      %v780 = vor.u32 %v777, %v778
      %v782 = vshrl.u32 %v748, 16
      %v784 = vrot.slane %v782, 7
      %v785 = vshll.u32 %v748, 16
      %v787 = vor.u32 %v784, %v785
      %v789 = vshrl.u32 %v749, 16
      %v791 = vrot.slane %v789, 7
      %v792 = vshll.u32 %v749, 16
      %v794 = vor.u32 %v791, %v792
      %v796 = vshrl.u32 %v750, 16
      %v798 = vrot.slane %v796, 7
      %v799 = vshll.u32 %v750, 16
      %v801 = vor.u32 %v798, %v799
      %v803 = vshrl.u32 %v751, 16
      %v805 = vrot.slane %v803, 7
      %v806 = vshll.u32 %v751, 16
      %v808 = vor.u32 %v805, %v806
      %v810 = vshrl.u32 %v752, 16
      %v812 = vrot.slane %v810, 7
      %v813 = vshll.u32 %v752, 16
      %v815 = vor.u32 %v812, %v813
      %v825 = vsel %vm717, 0, %v759
      %v826 = vsel %vm717, 0, %v766
      %v827 = vsel %vm717, 0, %v773
      %v828 = vsel %vm717, 0, %v780
      %v829 = vsel %vm717, 0, %v787
      %v830 = vsel %vm717, 0, %v794
      %v831 = vsel %vm717, 0, %v801
      %v832 = vsel %vm717, 0, %v808
      %v833 = vsel %vm717, 0, %v815
      %v842 = vunpack.c.l.b16 %v825
      %v843 = vunpack.c.h.b16 %v825
      %v844 = vunpack.c.l.b16 %v826
      %v845 = vunpack.c.h.b16 %v826
      %v846 = vunpack.c.l.b16 %v827
      %v847 = vunpack.c.h.b16 %v827
      %v848 = vunpack.c.l.b16 %v828
      %v849 = vunpack.c.h.b16 %v828
      %v850 = vunpack.c.l.b16 %v829
      %v851 = vunpack.c.h.b16 %v829
      %v852 = vunpack.c.l.b16 %v830
      %v853 = vunpack.c.h.b16 %v830
      %v854 = vunpack.c.l.b16 %v831
      %v855 = vunpack.c.h.b16 %v831
      %v856 = vunpack.c.l.b16 %v832
      %v857 = vunpack.c.h.b16 %v832
      %v858 = vpack.c.b16 %v842, %v842
      %v859 = vpack.c.b16 %v843, %v843
      %v860 = vpack.c.b16 %v844, %v844
      %v861 = vpack.c.b16 %v845, %v845
      %v862 = vpack.c.b16 %v846, %v846
      %v863 = vpack.c.b16 %v847, %v847
      %v864 = vpack.c.b16 %v848, %v848
      %v865 = vpack.c.b16 %v849, %v849
      %v866 = vpack.c.b16 %v850, %v850
      %v867 = vpack.c.b16 %v851, %v851
      %v868 = vpack.c.b16 %v852, %v852
      %v869 = vpack.c.b16 %v853, %v853
      %v870 = vpack.c.b16 %v854, %v854
      %v871 = vpack.c.b16 %v855, %v855
      %v872 = vpack.c.b16 %v856, %v856
      %v873 = vpack.c.b16 %v857, %v857
      %vm874 = vsmask.f32 3328
      %vm875 = vsmask.f32 7440
      %vm876 = vmor %vm874, %vm875
      %v878 = vshrl.u32 %v858, 16
      %v880 = vrot.slane %v878, 4
      %v881 = vshll.u32 %v858, 16
      %v883 = vrot.slane %v881, 5
      %v884 = vor.u32 %v880, %v883
      %v885 = vrot.slane %v884, 4
      %v887 = vshll.u32 %v859, 16
      %v889 = vrot.slane %v887, 5
      %v890 = vsel %vm876, %v885, %v889
      %v892 = vshrl.u32 %v860, 16
      %v894 = vrot.slane %v892, 4
      %v895 = vshll.u32 %v860, 16
      %v897 = vrot.slane %v895, 5
      %v898 = vor.u32 %v894, %v897
      %v899 = vrot.slane %v898, 4
      %v901 = vshll.u32 %v861, 16
      %v903 = vrot.slane %v901, 5
      %v904 = vsel %vm876, %v899, %v903
      %v906 = vshrl.u32 %v862, 16
      %v908 = vrot.slane %v906, 4
      %v909 = vshll.u32 %v862, 16
      %v911 = vrot.slane %v909, 5
      %v912 = vor.u32 %v908, %v911
      %v913 = vrot.slane %v912, 4
      %v915 = vshll.u32 %v863, 16
      %v917 = vrot.slane %v915, 5
      %v918 = vsel %vm876, %v913, %v917
      %v920 = vshrl.u32 %v864, 16
      %v922 = vrot.slane %v920, 4
      %v923 = vshll.u32 %v864, 16
      %v925 = vrot.slane %v923, 5
      %v926 = vor.u32 %v922, %v925
      %v927 = vrot.slane %v926, 4
      %v929 = vshll.u32 %v865, 16
      %v931 = vrot.slane %v929, 5
      %v932 = vsel %vm876, %v927, %v931
      %v934 = vshrl.u32 %v866, 16
      %v936 = vrot.slane %v934, 4
      %v937 = vshll.u32 %v866, 16
      %v939 = vrot.slane %v937, 5
      %v940 = vor.u32 %v936, %v939
      %v941 = vrot.slane %v940, 4
      %v943 = vshll.u32 %v867, 16
      %v945 = vrot.slane %v943, 5
      %v946 = vsel %vm876, %v941, %v945
      %v948 = vshrl.u32 %v868, 16
      %v950 = vrot.slane %v948, 4
      %v951 = vshll.u32 %v868, 16
      %v953 = vrot.slane %v951, 5
      %v954 = vor.u32 %v950, %v953
      %v955 = vrot.slane %v954, 4
      %v957 = vshll.u32 %v869, 16
      %v959 = vrot.slane %v957, 5
      %v960 = vsel %vm876, %v955, %v959
      %v962 = vshrl.u32 %v870, 16
      %v964 = vrot.slane %v962, 4
      %v965 = vshll.u32 %v870, 16
      %v967 = vrot.slane %v965, 5
      %v968 = vor.u32 %v964, %v967
      %v969 = vrot.slane %v968, 4
      %v971 = vshll.u32 %v871, 16
      %v973 = vrot.slane %v971, 5
      %v974 = vsel %vm876, %v969, %v973
      %v976 = vshrl.u32 %v872, 16
      %v978 = vrot.slane %v976, 4
      %v979 = vshll.u32 %v872, 16
      %v981 = vrot.slane %v979, 5
      %v982 = vor.u32 %v978, %v981
      %v983 = vrot.slane %v982, 4
      %v985 = vshll.u32 %v873, 16
      %v987 = vrot.slane %v985, 5
      %v988 = vsel %vm876, %v983, %v987
      %v997 = vunpack.c.l.b16 %v718
      %v998 = vunpack.c.h.b16 %v718
      %v999 = vunpack.c.l.b16 %v719
      %v1000 = vunpack.c.h.b16 %v719
      %v1001 = vunpack.c.l.b16 %v720
      %v1002 = vunpack.c.h.b16 %v720
      %v1003 = vunpack.c.l.b16 %v721
      %v1004 = vunpack.c.h.b16 %v721
      %v1005 = vunpack.c.l.b16 %v722
      %v1006 = vunpack.c.h.b16 %v722
      %v1007 = vunpack.c.l.b16 %v723
      %v1008 = vunpack.c.h.b16 %v723
      %v1009 = vunpack.c.l.b16 %v724
      %v1010 = vunpack.c.h.b16 %v724
      %v1011 = vunpack.c.l.b16 %v725
      %v1012 = vunpack.c.h.b16 %v725
      %v1013 = vpack.c.b16 %v997, %v997
      %v1014 = vpack.c.b16 %v998, %v998
      %v1015 = vpack.c.b16 %v999, %v999
      %v1016 = vpack.c.b16 %v1000, %v1000
      %v1017 = vpack.c.b16 %v1001, %v1001
      %v1018 = vpack.c.b16 %v1002, %v1002
      %v1019 = vpack.c.b16 %v1003, %v1003
      %v1020 = vpack.c.b16 %v1004, %v1004
      %v1021 = vpack.c.b16 %v1005, %v1005
      %v1022 = vpack.c.b16 %v1006, %v1006
      %v1023 = vpack.c.b16 %v1007, %v1007
      %v1024 = vpack.c.b16 %v1008, %v1008
      %v1025 = vpack.c.b16 %v1009, %v1009
      %v1026 = vpack.c.b16 %v1010, %v1010
      %v1027 = vpack.c.b16 %v1011, %v1011
      %v1028 = vpack.c.b16 %v1012, %v1012
      %v1030 = vshrl.u32 %v1013, 16
      %v1032 = vrot.slane %v1030, 4
      %v1033 = vshll.u32 %v1013, 16
      %v1035 = vrot.slane %v1033, 5
      %v1036 = vor.u32 %v1032, %v1035
      %v1037 = vrot.slane %v1036, 4
      %v1039 = vshll.u32 %v1014, 16
      %v1041 = vrot.slane %v1039, 5
      %v1042 = vsel %vm876, %v1037, %v1041
      %v1044 = vshrl.u32 %v1015, 16
      %v1046 = vrot.slane %v1044, 4
      %v1047 = vshll.u32 %v1015, 16
      %v1049 = vrot.slane %v1047, 5
      %v1050 = vor.u32 %v1046, %v1049
      %v1051 = vrot.slane %v1050, 4
      %v1053 = vshll.u32 %v1016, 16
      %v1055 = vrot.slane %v1053, 5
      %v1056 = vsel %vm876, %v1051, %v1055
      %v1058 = vshrl.u32 %v1017, 16
      %v1060 = vrot.slane %v1058, 4
      %v1061 = vshll.u32 %v1017, 16
      %v1063 = vrot.slane %v1061, 5
      %v1064 = vor.u32 %v1060, %v1063
      %v1065 = vrot.slane %v1064, 4
      %v1067 = vshll.u32 %v1018, 16
      %v1069 = vrot.slane %v1067, 5
      %v1070 = vsel %vm876, %v1065, %v1069
      %v1072 = vshrl.u32 %v1019, 16
      %v1074 = vrot.slane %v1072, 4
      %v1075 = vshll.u32 %v1019, 16
      %v1077 = vrot.slane %v1075, 5
      %v1078 = vor.u32 %v1074, %v1077
      %v1079 = vrot.slane %v1078, 4
      %v1081 = vshll.u32 %v1020, 16
      %v1083 = vrot.slane %v1081, 5
      %v1084 = vsel %vm876, %v1079, %v1083
      %v1086 = vshrl.u32 %v1021, 16
      %v1088 = vrot.slane %v1086, 4
      %v1089 = vshll.u32 %v1021, 16
      %v1091 = vrot.slane %v1089, 5
      %v1092 = vor.u32 %v1088, %v1091
      %v1093 = vrot.slane %v1092, 4
      %v1095 = vshll.u32 %v1022, 16
      %v1097 = vrot.slane %v1095, 5
      %v1098 = vsel %vm876, %v1093, %v1097
      %v1100 = vshrl.u32 %v1023, 16
      %v1102 = vrot.slane %v1100, 4
      %v1103 = vshll.u32 %v1023, 16
      %v1105 = vrot.slane %v1103, 5
      %v1106 = vor.u32 %v1102, %v1105
      %v1107 = vrot.slane %v1106, 4
      %v1109 = vshll.u32 %v1024, 16
      %v1111 = vrot.slane %v1109, 5
      %v1112 = vsel %vm876, %v1107, %v1111
      %v1114 = vshrl.u32 %v1025, 16
      %v1116 = vrot.slane %v1114, 4
      %v1117 = vshll.u32 %v1025, 16
      %v1119 = vrot.slane %v1117, 5
      %v1120 = vor.u32 %v1116, %v1119
      %v1121 = vrot.slane %v1120, 4
      %v1123 = vshll.u32 %v1026, 16
      %v1125 = vrot.slane %v1123, 5
      %v1126 = vsel %vm876, %v1121, %v1125
      %v1128 = vshrl.u32 %v1027, 16
      %v1130 = vrot.slane %v1128, 4
      %v1131 = vshll.u32 %v1027, 16
      %v1133 = vrot.slane %v1131, 5
      %v1134 = vor.u32 %v1130, %v1133
      %v1135 = vrot.slane %v1134, 4
      %v1137 = vshll.u32 %v1028, 16
      %v1139 = vrot.slane %v1137, 5
      %v1140 = vsel %vm876, %v1135, %v1139
      %v1142 = vunpack.c.l.b16 %v833
      %v1143 = vunpack.c.h.b16 %v833
      %v1144 = vpack.c.b16 %v1142, %v1142
      %v1145 = vpack.c.b16 %v1143, %v1143
      %v1147 = vshrl.u32 %v1144, 16
      %v1149 = vrot.slane %v1147, 4
      %v1150 = vshll.u32 %v1144, 16
      %v1152 = vrot.slane %v1150, 5
      %v1153 = vor.u32 %v1149, %v1152
      %v1154 = vrot.slane %v1153, 4
      %v1156 = vshll.u32 %v1145, 16
      %v1158 = vrot.slane %v1156, 5
      %v1159 = vsel %vm876, %v1154, %v1158
      %v1160 = vpack.c.b16 %v844, %v842
      %v1161 = vpack.c.b16 %v848, %v846
      %v1162 = vpack.c.b16 %v852, %v850
      %v1163 = vpack.c.b16 %v856, %v854
      %v1176 = vunpack.c.l.b16 %v625
      %v1177 = vunpack.c.l.b16 %v603
      %v1178 = vunpack.c.l.b16 %v604
      %v1179 = vunpack.c.l.b16 %v605
      %v1180 = vunpack.c.l.b16 %v606
      %v1181 = vunpack.c.l.b16 %v607
      %v1182 = vunpack.c.l.b16 %v608
      %v1183 = vunpack.c.l.b16 %v609
      %v1184 = vpack.c.b16 %v1177, %v1176
      %v1185 = vpack.c.b16 %v1179, %v1178
      %v1186 = vpack.c.b16 %v1181, %v1180
      %v1187 = vpack.c.b16 %v1183, %v1182
      %v1192 = vunpack.c.l.b16 %v890
      %v1193 = vunpack.c.l.b16 %v904
      %v1194 = vunpack.c.l.b16 %v918
      %v1195 = vunpack.c.l.b16 %v932
      %v1196 = vunpack.c.l.b16 %v946
      %v1197 = vunpack.c.l.b16 %v960
      %v1198 = vunpack.c.l.b16 %v974
      %v1199 = vunpack.c.l.b16 %v988
      %v1200 = vpack.c.b16 %v1193, %v1192
      %v1201 = vpack.c.b16 %v1195, %v1194
      %v1202 = vpack.c.b16 %v1197, %v1196
      %v1203 = vpack.c.b16 %v1199, %v1198
      %v1208 = vpack.c.b16 %v999, %v997
      %v1209 = vpack.c.b16 %v1003, %v1001
      %v1210 = vpack.c.b16 %v1007, %v1005
      %v1211 = vpack.c.b16 %v1011, %v1009
      %v1224 = vunpack.c.l.b16 %v587
      %v1225 = vunpack.c.l.b16 %v588
      %v1226 = vunpack.c.l.b16 %v589
      %v1227 = vunpack.c.l.b16 %v590
      %v1228 = vunpack.c.l.b16 %v591
      %v1229 = vunpack.c.l.b16 %v592
      %v1230 = vunpack.c.l.b16 %v593
      %v1231 = vunpack.c.l.b16 %v594
      %v1232 = vpack.c.b16 %v1225, %v1224
      %v1233 = vpack.c.b16 %v1227, %v1226
      %v1234 = vpack.c.b16 %v1229, %v1228
      %v1235 = vpack.c.b16 %v1231, %v1230
      %v1240 = vunpack.c.l.b16 %v1042
      %v1241 = vunpack.c.l.b16 %v1056
      %v1242 = vunpack.c.l.b16 %v1070
      %v1243 = vunpack.c.l.b16 %v1084
      %v1244 = vunpack.c.l.b16 %v1098
      %v1245 = vunpack.c.l.b16 %v1112
      %v1246 = vunpack.c.l.b16 %v1126
      %v1247 = vunpack.c.l.b16 %v1140
      %v1248 = vpack.c.b16 %v1241, %v1240
      %v1249 = vpack.c.b16 %v1243, %v1242
      %v1250 = vpack.c.b16 %v1245, %v1244
      %v1251 = vpack.c.b16 %v1247, %v1246
      %v1256 = vpack.c.b16 %v846, %v844
      %v1257 = vpack.c.b16 %v850, %v848
      %v1258 = vpack.c.b16 %v854, %v852
      %v1259 = vpack.c.b16 %v1142, %v856
      %v1265 = vunpack.c.l.b16 %v610
      %v1266 = vpack.c.b16 %v1178, %v1177
      %v1267 = vpack.c.b16 %v1180, %v1179
      %v1268 = vpack.c.b16 %v1182, %v1181
      %v1269 = vpack.c.b16 %v1265, %v1183
      %v1274 = vunpack.c.l.b16 %v1159
      %v1275 = vpack.c.b16 %v1194, %v1193
      %v1276 = vpack.c.b16 %v1196, %v1195
      %v1277 = vpack.c.b16 %v1198, %v1197
      %v1278 = vpack.c.b16 %v1274, %v1199
      %v1283 = vld [vmem:[%s6] sm:$0xf]
      %v1284 = vld [vmem:[%s6 + $0x4] sm:$0xf]
      %v1285 = vld [vmem:[%s6 + $0x8] sm:$0xf]
      %v1286 = vld [vmem:[%s6 + $0xc] sm:$0xf]
      %v1287 = vld [vmem:[%s6 + $0x10] sm:$0xf]
      %v1288 = vld [vmem:[%s6 + $0x14] sm:$0xf]
      %v1289 = vld [vmem:[%s6 + $0x18] sm:$0xf]
      %v1290 = vld [vmem:[%s6 + $0x1c] sm:$0xf]
      %v1291 = vld [vmem:[%s6 + $0x20] sm:$0xf]
      %v1292 = vld [vmem:[%s6 + $0x24] sm:$0xf]
      %v1293 = vld [vmem:[%s6 + $0x28] sm:$0xf]
      %v1294 = vld [vmem:[%s6 + $0x2c] sm:$0xf]
      %v1295 = vld [vmem:[%s6 + $0x30] sm:$0xf]
      %v1296 = vld [vmem:[%s6 + $0x34] sm:$0xf]
      %v1297 = vld [vmem:[%s6 + $0x38] sm:$0xf]
      %v1298 = vld [vmem:[%s6 + $0x3c] sm:$0xf]
      %v1299 = vld [vmem:[%s6 + $0x40] sm:$0xf]
      %v1300 = vld [vmem:[%s6 + $0x44] sm:$0xf]
      %v1301 = vld [vmem:[%s6 + $0x48] sm:$0xf]
      %v1302 = vld [vmem:[%s6 + $0x4c] sm:$0xf]
      %v1303 = vld [vmem:[%s6 + $0x50] sm:$0xf]
      %v1304 = vld [vmem:[%s6 + $0x54] sm:$0xf]
      %v1305 = vld [vmem:[%s6 + $0x58] sm:$0xf]
      %v1306 = vld [vmem:[%s6 + $0x5c] sm:$0xf]
      %v1307 = vld [vmem:[%s6 + $0x60] sm:$0xf]
      %v1308 = vld [vmem:[%s6 + $0x64] sm:$0xf]
      %v1309 = vld [vmem:[%s6 + $0x68] sm:$0xf]
      %v1310 = vld [vmem:[%s6 + $0x6c] sm:$0xf]
      %v1311 = vld [vmem:[%s6 + $0x70] sm:$0xf]
      %v1312 = vld [vmem:[%s6 + $0x74] sm:$0xf]
      %v1313 = vld [vmem:[%s6 + $0x78] sm:$0xf]
      %v1314 = vld [vmem:[%s6 + $0x7c] sm:$0xf]
      %v1315 = vld [vmem:[%s6 + $0x80] sm:$0xf]
      %v1316 = vld [vmem:[%s6 + $0x84] sm:$0xf]
      %v1317 = vld [vmem:[%s6 + $0x88] sm:$0xf]
      %v1318 = vld [vmem:[%s6 + $0x8c] sm:$0xf]
      %v1319 = vld [vmem:[%s6 + $0x90] sm:$0xf]
      %v1320 = vld [vmem:[%s6 + $0x94] sm:$0xf]
      %v1321 = vld [vmem:[%s6 + $0x98] sm:$0xf]
      %v1322 = vld [vmem:[%s6 + $0x9c] sm:$0xf]
      %v1323 = vld [vmem:[%s6 + $0xa0] sm:$0xf]
      %v1324 = vld [vmem:[%s6 + $0xa4] sm:$0xf]
      %v1325 = vld [vmem:[%s6 + $0xa8] sm:$0xf]
      %v1326 = vld [vmem:[%s6 + $0xac] sm:$0xf]
      %v1327 = vld [vmem:[%s6 + $0xb0] sm:$0xf]
      %v1328 = vld [vmem:[%s6 + $0xb4] sm:$0xf]
      %v1329 = vld [vmem:[%s6 + $0xb8] sm:$0xf]
      %v1330 = vld [vmem:[%s6 + $0xbc] sm:$0xf]
      %v1331 = vld [vmem:[%s6 + $0xc0] sm:$0xf]
      %v1332 = vld [vmem:[%s6 + $0xc4] sm:$0xf]
      %v1333 = vld [vmem:[%s6 + $0xc8] sm:$0xf]
      %v1334 = vld [vmem:[%s6 + $0xcc] sm:$0xf]
      %v1335 = vld [vmem:[%s6 + $0xd0] sm:$0xf]
      %v1336 = vld [vmem:[%s6 + $0xd4] sm:$0xf]
      %v1337 = vld [vmem:[%s6 + $0xd8] sm:$0xf]
      %v1338 = vld [vmem:[%s6 + $0xdc] sm:$0xf]
      %v1339 = vld [vmem:[%s6 + $0xe0] sm:$0xf]
      %v1340 = vld [vmem:[%s6 + $0xe4] sm:$0xf]
      %v1341 = vld [vmem:[%s6 + $0xe8] sm:$0xf]
      %v1342 = vld [vmem:[%s6 + $0xec] sm:$0xf]
      %v1343 = vld [vmem:[%s6 + $0xf0] sm:$0xf]
      %v1344 = vld [vmem:[%s6 + $0xf4] sm:$0xf]
      %v1345 = vld [vmem:[%s6 + $0xf8] sm:$0xf]
      %v1346 = vld [vmem:[%s6 + $0xfc] sm:$0xf]
      %v1347 = vld [vmem:[%s6 + $0x100] sm:$0xf]
      %v1348 = vld [vmem:[%s6 + $0x104] sm:$0xf]
      %v1349 = vld [vmem:[%s6 + $0x108] sm:$0xf]
      %v1350 = vld [vmem:[%s6 + $0x10c] sm:$0xf]
      %v1351 = vld [vmem:[%s6 + $0x110] sm:$0xf]
      %v1352 = vld [vmem:[%s6 + $0x114] sm:$0xf]
      %v1353 = vld [vmem:[%s6 + $0x118] sm:$0xf]
      %v1354 = vld [vmem:[%s6 + $0x11c] sm:$0xf]
      %v1355 = vld [vmem:[%s6 + $0x120] sm:$0xf]
      %v1356 = vld [vmem:[%s6 + $0x124] sm:$0xf]
      %v1357 = vld [vmem:[%s6 + $0x128] sm:$0xf]
      %v1358 = vld [vmem:[%s6 + $0x12c] sm:$0xf]
      %v1359 = vld [vmem:[%s6 + $0x130] sm:$0xf]
      %v1360 = vld [vmem:[%s6 + $0x134] sm:$0xf]
      %v1361 = vld [vmem:[%s6 + $0x138] sm:$0xf]
      %v1362 = vld [vmem:[%s6 + $0x13c] sm:$0xf]
      %v1363 = vld [vmem:[%s6 + $0x140] sm:$0xf]
      %v1364 = vld [vmem:[%s6 + $0x144] sm:$0xf]
      %v1365 = vld [vmem:[%s6 + $0x148] sm:$0xf]
      %v1366 = vld [vmem:[%s6 + $0x14c] sm:$0xf]
      %v1367 = vld [vmem:[%s6 + $0x150] sm:$0xf]
      %v1368 = vld [vmem:[%s6 + $0x154] sm:$0xf]
      %v1369 = vld [vmem:[%s6 + $0x158] sm:$0xf]
      %v1370 = vld [vmem:[%s6 + $0x15c] sm:$0xf]
      %v1371 = vld [vmem:[%s6 + $0x160] sm:$0xf]
      %v1372 = vld [vmem:[%s6 + $0x164] sm:$0xf]
      %v1373 = vld [vmem:[%s6 + $0x168] sm:$0xf]
      %v1374 = vld [vmem:[%s6 + $0x16c] sm:$0xf]
      %v1375 = vld [vmem:[%s6 + $0x170] sm:$0xf]
      %v1376 = vld [vmem:[%s6 + $0x174] sm:$0xf]
      %v1377 = vld [vmem:[%s6 + $0x178] sm:$0xf]
      %v1378 = vld [vmem:[%s6 + $0x17c] sm:$0xf]
      %v1379 = vld [vmem:[%s6 + $0x180] sm:$0xf]
      %v1380 = vld [vmem:[%s6 + $0x184] sm:$0xf]
      %v1381 = vld [vmem:[%s6 + $0x188] sm:$0xf]
      %v1382 = vld [vmem:[%s6 + $0x18c] sm:$0xf]
      %v1383 = vld [vmem:[%s6 + $0x190] sm:$0xf]
      %v1384 = vld [vmem:[%s6 + $0x194] sm:$0xf]
      %v1385 = vld [vmem:[%s6 + $0x198] sm:$0xf]
      %v1386 = vld [vmem:[%s6 + $0x19c] sm:$0xf]
      %v1387 = vld [vmem:[%s6 + $0x1a0] sm:$0xf]
      %v1388 = vld [vmem:[%s6 + $0x1a4] sm:$0xf]
      %v1389 = vld [vmem:[%s6 + $0x1a8] sm:$0xf]
      %v1390 = vld [vmem:[%s6 + $0x1ac] sm:$0xf]
      %v1391 = vld [vmem:[%s6 + $0x1b0] sm:$0xf]
      %v1392 = vld [vmem:[%s6 + $0x1b4] sm:$0xf]
      %v1393 = vld [vmem:[%s6 + $0x1b8] sm:$0xf]
      %v1394 = vld [vmem:[%s6 + $0x1bc] sm:$0xf]
      %v1395 = vld [vmem:[%s6 + $0x1c0] sm:$0xf]
      %v1396 = vld [vmem:[%s6 + $0x1c4] sm:$0xf]
      %v1397 = vld [vmem:[%s6 + $0x1c8] sm:$0xf]
      %v1398 = vld [vmem:[%s6 + $0x1cc] sm:$0xf]
      %v1399 = vld [vmem:[%s6 + $0x1d0] sm:$0xf]
      %v1400 = vld [vmem:[%s6 + $0x1d4] sm:$0xf]
      %v1401 = vld [vmem:[%s6 + $0x1d8] sm:$0xf]
      %v1402 = vld [vmem:[%s6 + $0x1dc] sm:$0xf]
      %v1403 = vld [vmem:[%s6 + $0x1e0] sm:$0xf]
      %v1404 = vld [vmem:[%s6 + $0x1e4] sm:$0xf]
      %v1405 = vld [vmem:[%s6 + $0x1e8] sm:$0xf]
      %v1406 = vld [vmem:[%s6 + $0x1ec] sm:$0xf]
      %v1407 = vld [vmem:[%s6 + $0x1f0] sm:$0xf]
      %v1408 = vld [vmem:[%s6 + $0x1f4] sm:$0xf]
      %v1409 = vld [vmem:[%s6 + $0x1f8] sm:$0xf]
      %v1410 = vld [vmem:[%s6 + $0x1fc] sm:$0xf]
      %v1411 = vld [vmem:[%s6 + $0x200] sm:$0xf]
      %v1412 = vld [vmem:[%s6 + $0x204] sm:$0xf]
      %v1413 = vld [vmem:[%s6 + $0x208] sm:$0xf]
      %v1414 = vld [vmem:[%s6 + $0x20c] sm:$0xf]
      %v1415 = vld [vmem:[%s6 + $0x210] sm:$0xf]
      %v1416 = vld [vmem:[%s6 + $0x214] sm:$0xf]
      %v1417 = vld [vmem:[%s6 + $0x218] sm:$0xf]
      %v1418 = vld [vmem:[%s6 + $0x21c] sm:$0xf]
      %v1419 = vld [vmem:[%s6 + $0x220] sm:$0xf]
      %v1420 = vld [vmem:[%s6 + $0x224] sm:$0xf]
      %v1421 = vld [vmem:[%s6 + $0x228] sm:$0xf]
      %v1422 = vld [vmem:[%s6 + $0x22c] sm:$0xf]
      %v1423 = vld [vmem:[%s6 + $0x230] sm:$0xf]
      %v1424 = vld [vmem:[%s6 + $0x234] sm:$0xf]
      %v1425 = vld [vmem:[%s6 + $0x238] sm:$0xf]
      %v1426 = vld [vmem:[%s6 + $0x23c] sm:$0xf]
      %v1427 = vld [vmem:[%s7] sm:$0x1]
      %v1429 = vlaneseq
      %v1430 = vshrl.u32 %v1429, 7
      %v1431 = vsub.s32 0, %v1430
      %v1432 = vrot.slane %v1427, %v1431
      %v1578 = vunpack.c.l.b16 %v1283
      %v1579 = vunpack.c.l.b16 %v1284
      %v1580 = vunpack.c.l.b16 %v1285
      %v1581 = vunpack.c.l.b16 %v1286
      %v1582 = vunpack.c.l.b16 %v1287
      %v1583 = vunpack.c.l.b16 %v1288
      %v1584 = vunpack.c.l.b16 %v1289
      %v1585 = vunpack.c.l.b16 %v1290
      %v1586 = vunpack.c.l.b16 %v1291
      %v1587 = vunpack.c.l.b16 %v1292
      %v1588 = vunpack.c.l.b16 %v1293
      %v1589 = vunpack.c.l.b16 %v1294
      %v1590 = vunpack.c.l.b16 %v1295
      %v1591 = vunpack.c.l.b16 %v1296
      %v1592 = vunpack.c.l.b16 %v1297
      %v1593 = vunpack.c.l.b16 %v1298
      %v1594 = vunpack.c.l.b16 %v1299
      %v1595 = vunpack.c.l.b16 %v1300
      %v1596 = vunpack.c.l.b16 %v1301
      %v1597 = vunpack.c.l.b16 %v1302
      %v1598 = vunpack.c.l.b16 %v1303
      %v1599 = vunpack.c.l.b16 %v1304
      %v1600 = vunpack.c.l.b16 %v1305
      %v1601 = vunpack.c.l.b16 %v1306
      %v1602 = vunpack.c.l.b16 %v1307
      %v1603 = vunpack.c.l.b16 %v1308
      %v1604 = vunpack.c.l.b16 %v1309
      %v1605 = vunpack.c.l.b16 %v1310
      %v1606 = vunpack.c.l.b16 %v1311
      %v1607 = vunpack.c.l.b16 %v1312
      %v1608 = vunpack.c.l.b16 %v1313
      %v1609 = vunpack.c.l.b16 %v1314
      %v1610 = vunpack.c.l.b16 %v1315
      %v1611 = vunpack.c.l.b16 %v1316
      %v1612 = vunpack.c.l.b16 %v1317
      %v1613 = vunpack.c.l.b16 %v1318
      %v1614 = vunpack.c.l.b16 %v1319
      %v1615 = vunpack.c.l.b16 %v1320
      %v1616 = vunpack.c.l.b16 %v1321
      %v1617 = vunpack.c.l.b16 %v1322
      %v1618 = vunpack.c.l.b16 %v1323
      %v1619 = vunpack.c.l.b16 %v1324
      %v1620 = vunpack.c.l.b16 %v1325
      %v1621 = vunpack.c.l.b16 %v1326
      %v1622 = vunpack.c.l.b16 %v1327
      %v1623 = vunpack.c.l.b16 %v1328
      %v1624 = vunpack.c.l.b16 %v1329
      %v1625 = vunpack.c.l.b16 %v1330
      %v1626 = vunpack.c.l.b16 %v1331
      %v1627 = vunpack.c.l.b16 %v1332
      %v1628 = vunpack.c.l.b16 %v1333
      %v1629 = vunpack.c.l.b16 %v1334
      %v1630 = vunpack.c.l.b16 %v1335
      %v1631 = vunpack.c.l.b16 %v1336
      %v1632 = vunpack.c.l.b16 %v1337
      %v1633 = vunpack.c.l.b16 %v1338
      %v1634 = vunpack.c.l.b16 %v1339
      %v1635 = vunpack.c.l.b16 %v1340
      %v1636 = vunpack.c.l.b16 %v1341
      %v1637 = vunpack.c.l.b16 %v1342
      %v1638 = vunpack.c.l.b16 %v1343
      %v1639 = vunpack.c.l.b16 %v1344
      %v1640 = vunpack.c.l.b16 %v1345
      %v1641 = vunpack.c.l.b16 %v1346
      %v1642 = vunpack.c.l.b16 %v1347
      %v1643 = vunpack.c.l.b16 %v1348
      %v1644 = vunpack.c.l.b16 %v1349
      %v1645 = vunpack.c.l.b16 %v1350
      %v1646 = vunpack.c.l.b16 %v1351
      %v1647 = vunpack.c.l.b16 %v1352
      %v1648 = vunpack.c.l.b16 %v1353
      %v1649 = vunpack.c.l.b16 %v1354
      %v1650 = vunpack.c.l.b16 %v1355
      %v1651 = vunpack.c.l.b16 %v1356
      %v1652 = vunpack.c.l.b16 %v1357
      %v1653 = vunpack.c.l.b16 %v1358
      %v1654 = vunpack.c.l.b16 %v1359
      %v1655 = vunpack.c.l.b16 %v1360
      %v1656 = vunpack.c.l.b16 %v1361
      %v1657 = vunpack.c.l.b16 %v1362
      %v1658 = vunpack.c.l.b16 %v1363
      %v1659 = vunpack.c.l.b16 %v1364
      %v1660 = vunpack.c.l.b16 %v1365
      %v1661 = vunpack.c.l.b16 %v1366
      %v1662 = vunpack.c.l.b16 %v1367
      %v1663 = vunpack.c.l.b16 %v1368
      %v1664 = vunpack.c.l.b16 %v1369
      %v1665 = vunpack.c.l.b16 %v1370
      %v1666 = vunpack.c.l.b16 %v1371
      %v1667 = vunpack.c.l.b16 %v1372
      %v1668 = vunpack.c.l.b16 %v1373
      %v1669 = vunpack.c.l.b16 %v1374
      %v1670 = vunpack.c.l.b16 %v1375
      %v1671 = vunpack.c.l.b16 %v1376
      %v1672 = vunpack.c.l.b16 %v1377
      %v1673 = vunpack.c.l.b16 %v1378
      %v1674 = vunpack.c.l.b16 %v1379
      %v1675 = vunpack.c.l.b16 %v1380
      %v1676 = vunpack.c.l.b16 %v1381
      %v1677 = vunpack.c.l.b16 %v1382
      %v1678 = vunpack.c.l.b16 %v1383
      %v1679 = vunpack.c.l.b16 %v1384
      %v1680 = vunpack.c.l.b16 %v1385
      %v1681 = vunpack.c.l.b16 %v1386
      %v1682 = vunpack.c.l.b16 %v1387
      %v1683 = vunpack.c.l.b16 %v1388
      %v1684 = vunpack.c.l.b16 %v1389
      %v1685 = vunpack.c.l.b16 %v1390
      %v1686 = vunpack.c.l.b16 %v1391
      %v1687 = vunpack.c.l.b16 %v1392
      %v1688 = vunpack.c.l.b16 %v1393
      %v1689 = vunpack.c.l.b16 %v1394
      %v1690 = vunpack.c.l.b16 %v1395
      %v1691 = vunpack.c.l.b16 %v1396
      %v1692 = vunpack.c.l.b16 %v1397
      %v1693 = vunpack.c.l.b16 %v1398
      %v1694 = vunpack.c.l.b16 %v1399
      %v1695 = vunpack.c.l.b16 %v1400
      %v1696 = vunpack.c.l.b16 %v1401
      %v1697 = vunpack.c.l.b16 %v1402
      %v1698 = vunpack.c.l.b16 %v1403
      %v1699 = vunpack.c.l.b16 %v1404
      %v1700 = vunpack.c.l.b16 %v1405
      %v1701 = vunpack.c.l.b16 %v1406
      %v1702 = vunpack.c.l.b16 %v1407
      %v1703 = vunpack.c.l.b16 %v1408
      %v1704 = vunpack.c.l.b16 %v1409
      %v1705 = vunpack.c.l.b16 %v1410
      %v1706 = vunpack.c.l.b16 %v1411
      %v1707 = vunpack.c.l.b16 %v1412
      %v1708 = vunpack.c.l.b16 %v1413
      %v1709 = vunpack.c.l.b16 %v1414
      %v1710 = vunpack.c.l.b16 %v1415
      %v1711 = vunpack.c.l.b16 %v1416
      %v1712 = vunpack.c.l.b16 %v1417
      %v1713 = vunpack.c.l.b16 %v1418
      %v1714 = vunpack.c.l.b16 %v1419
      %v1715 = vunpack.c.l.b16 %v1420
      %v1716 = vunpack.c.l.b16 %v1421
      %v1717 = vunpack.c.l.b16 %v1422
      %v1718 = vunpack.c.l.b16 %v1423
      %v1719 = vunpack.c.l.b16 %v1424
      %v1720 = vunpack.c.l.b16 %v1425
      %v1721 = vunpack.c.l.b16 %v1426
      %v1722 = vpack.c.b16 %v1579, %v1578
      %v1723 = vpack.c.b16 %v1581, %v1580
      %v1724 = vpack.c.b16 %v1583, %v1582
      %v1725 = vpack.c.b16 %v1585, %v1584
      %v1726 = vpack.c.b16 %v1587, %v1586
      %v1727 = vpack.c.b16 %v1589, %v1588
      %v1728 = vpack.c.b16 %v1591, %v1590
      %v1729 = vpack.c.b16 %v1593, %v1592
      %v1730 = vpack.c.b16 %v1595, %v1594
      %v1731 = vpack.c.b16 %v1597, %v1596
      %v1732 = vpack.c.b16 %v1599, %v1598
      %v1733 = vpack.c.b16 %v1601, %v1600
      %v1734 = vpack.c.b16 %v1603, %v1602
      %v1735 = vpack.c.b16 %v1605, %v1604
      %v1736 = vpack.c.b16 %v1607, %v1606
      %v1737 = vpack.c.b16 %v1609, %v1608
      %v1738 = vpack.c.b16 %v1611, %v1610
      %v1739 = vpack.c.b16 %v1613, %v1612
      %v1740 = vpack.c.b16 %v1615, %v1614
      %v1741 = vpack.c.b16 %v1617, %v1616
      %v1742 = vpack.c.b16 %v1619, %v1618
      %v1743 = vpack.c.b16 %v1621, %v1620
      %v1744 = vpack.c.b16 %v1623, %v1622
      %v1745 = vpack.c.b16 %v1625, %v1624
      %v1746 = vpack.c.b16 %v1627, %v1626
      %v1747 = vpack.c.b16 %v1629, %v1628
      %v1748 = vpack.c.b16 %v1631, %v1630
      %v1749 = vpack.c.b16 %v1633, %v1632
      %v1750 = vpack.c.b16 %v1635, %v1634
      %v1751 = vpack.c.b16 %v1637, %v1636
      %v1752 = vpack.c.b16 %v1639, %v1638
      %v1753 = vpack.c.b16 %v1641, %v1640
      %v1754 = vpack.c.b16 %v1643, %v1642
      %v1755 = vpack.c.b16 %v1645, %v1644
      %v1756 = vpack.c.b16 %v1647, %v1646
      %v1757 = vpack.c.b16 %v1649, %v1648
      %v1758 = vpack.c.b16 %v1651, %v1650
      %v1759 = vpack.c.b16 %v1653, %v1652
      %v1760 = vpack.c.b16 %v1655, %v1654
      %v1761 = vpack.c.b16 %v1657, %v1656
      %v1762 = vpack.c.b16 %v1659, %v1658
      %v1763 = vpack.c.b16 %v1661, %v1660
      %v1764 = vpack.c.b16 %v1663, %v1662
      %v1765 = vpack.c.b16 %v1665, %v1664
      %v1766 = vpack.c.b16 %v1667, %v1666
      %v1767 = vpack.c.b16 %v1669, %v1668
      %v1768 = vpack.c.b16 %v1671, %v1670
      %v1769 = vpack.c.b16 %v1673, %v1672
      %v1770 = vpack.c.b16 %v1675, %v1674
      %v1771 = vpack.c.b16 %v1677, %v1676
      %v1772 = vpack.c.b16 %v1679, %v1678
      %v1773 = vpack.c.b16 %v1681, %v1680
      %v1774 = vpack.c.b16 %v1683, %v1682
      %v1775 = vpack.c.b16 %v1685, %v1684
      %v1776 = vpack.c.b16 %v1687, %v1686
      %v1777 = vpack.c.b16 %v1689, %v1688
      %v1778 = vpack.c.b16 %v1691, %v1690
      %v1779 = vpack.c.b16 %v1693, %v1692
      %v1780 = vpack.c.b16 %v1695, %v1694
      %v1781 = vpack.c.b16 %v1697, %v1696
      %v1782 = vpack.c.b16 %v1699, %v1698
      %v1783 = vpack.c.b16 %v1701, %v1700
      %v1784 = vpack.c.b16 %v1703, %v1702
      %v1785 = vpack.c.b16 %v1705, %v1704
      %v1786 = vpack.c.b16 %v1707, %v1706
      %v1787 = vpack.c.b16 %v1709, %v1708
      %v1788 = vpack.c.b16 %v1711, %v1710
      %v1789 = vpack.c.b16 %v1713, %v1712
      %v1790 = vpack.c.b16 %v1715, %v1714
      %v1791 = vpack.c.b16 %v1717, %v1716
      %v1792 = vpack.c.b16 %v1719, %v1718
      %v1793 = vpack.c.b16 %v1721, %v1720
      %1866 = vmatprep.subr.bf16.mxu0 0
      %1867 = vmatpush1.bf16.msra.mxu0 %v1729
      %1868 = vmatprep.subr.bf16.mxu0 0
      %1869 = vmatpush1.bf16.msra.mxu0 %v1728
      %1870 = vmatprep.subr.bf16.mxu0 0
      %1871 = vmatpush1.bf16.msra.mxu0 %v1727
      %1872 = vmatprep.subr.bf16.mxu0 0
      %1873 = vmatpush1.bf16.msra.mxu0 %v1726
      %1874 = vmatprep.subr.bf16.mxu0 0
      %1875 = vmatpush1.bf16.msra.mxu0 %v1725
      %1876 = vmatprep.subr.bf16.mxu0 0
      %1877 = vmatpush1.bf16.msra.mxu0 %v1724
      %1878 = vmatprep.subr.bf16.mxu0 0
      %1879 = vmatpush1.bf16.msra.mxu0 %v1723
      %1880 = vmatprep.subr.bf16.mxu0 0
      %1881 = vmatpush1.bf16.msra.mxu0 %v1722
      %1882 = vmatprep.subr.bf16.mxu0 0
      %1883 = vmatpush2.bf16.msra.mxu0 %v1737
      %1884 = vmatprep.subr.bf16.mxu0 0
      %1885 = vmatpush2.bf16.msra.mxu0 %v1736
      %1886 = vmatprep.subr.bf16.mxu0 0
      %1887 = vmatpush2.bf16.msra.mxu0 %v1735
      %1888 = vmatprep.subr.bf16.mxu0 0
      %1889 = vmatpush2.bf16.msra.mxu0 %v1734
      %1890 = vmatprep.subr.bf16.mxu0 0
      %1891 = vmatpush2.bf16.msra.mxu0 %v1733
      %1892 = vmatprep.subr.bf16.mxu0 0
      %1893 = vmatpush2.bf16.msra.mxu0 %v1732
      %1894 = vmatprep.subr.bf16.mxu0 0
      %1895 = vmatpush2.bf16.msra.mxu0 %v1731
      %1896 = vmatprep.subr.bf16.mxu0 0
      %1897 = vmatpush2.bf16.msra.mxu0 %v1730
      %1898 = vmatprep.mubr.bf16.mxu0 %v1184
      %1899 = vmatmul.mubr.bf16.gmra.mxu0 %v1160
      %v1900 = vpop.f32.mrf.mxu0
      %v1901 = vadd.f32 %v1432, %v1900
      %v1902 = vpop.f32.mrf.mxu0
      %v1903 = vpop.f32.mrf.mxu0
      %v1904 = vadd.f32 %v1432, %v1903
      %v1905 = vpop.f32.mrf.mxu0
      %1906 = vmatprep.mubr.bf16.mxu0 %v1185
      %1907 = vmatmul.mubr.bf16.gmra.mxu0 %v1161
      %v1908 = vpop.f32.mrf.mxu0
      %v1909 = vadd.f32 %v1432, %v1908
      %v1910 = vpop.f32.mrf.mxu0
      %v1911 = vpop.f32.mrf.mxu0
      %v1912 = vadd.f32 %v1432, %v1911
      %v1913 = vpop.f32.mrf.mxu0
      %1914 = vmatprep.mubr.bf16.mxu0 %v1186
      %1915 = vmatmul.mubr.bf16.gmra.mxu0 %v1162
      %v1916 = vpop.f32.mrf.mxu0
      %v1917 = vadd.f32 %v1432, %v1916
      %v1918 = vpop.f32.mrf.mxu0
      %v1919 = vpop.f32.mrf.mxu0
      %v1920 = vadd.f32 %v1432, %v1919
      %v1921 = vpop.f32.mrf.mxu0
      %1922 = vmatprep.mubr.bf16.mxu0 %v1187
      %1923 = vmatmul.mubr.bf16.gmra.mxu0 %v1163
      %v1924 = vpop.f32.mrf.mxu0
      %v1925 = vadd.f32 %v1432, %v1924
      %v1926 = vpop.f32.mrf.mxu0
      %v1927 = vpop.f32.mrf.mxu0
      %v1928 = vadd.f32 %v1432, %v1927
      %v1929 = vpop.f32.mrf.mxu0
      %1930 = vdwg.mxu0
      %1931 = vmatprep.subr.bf16.mxu0 0
      %1932 = vmatpush1.bf16.msra.mxu0 %v1745
      %1933 = vmatprep.subr.bf16.mxu0 0
      %1934 = vmatpush1.bf16.msra.mxu0 %v1744
      %1935 = vmatprep.subr.bf16.mxu0 0
      %1936 = vmatpush1.bf16.msra.mxu0 %v1743
      %1937 = vmatprep.subr.bf16.mxu0 0
      %1938 = vmatpush1.bf16.msra.mxu0 %v1742
      %1939 = vmatprep.subr.bf16.mxu0 0
      %1940 = vmatpush1.bf16.msra.mxu0 %v1741
      %1941 = vmatprep.subr.bf16.mxu0 0
      %1942 = vmatpush1.bf16.msra.mxu0 %v1740
      %1943 = vmatprep.subr.bf16.mxu0 0
      %1944 = vmatpush1.bf16.msra.mxu0 %v1739
      %1945 = vmatprep.subr.bf16.mxu0 0
      %1946 = vmatpush1.bf16.msra.mxu0 %v1738
      %1947 = vmatprep.subr.bf16.mxu0 0
      %1948 = vmatpush2.bf16.msra.mxu0 %v1753
      %1949 = vmatprep.subr.bf16.mxu0 0
      %1950 = vmatpush2.bf16.msra.mxu0 %v1752
      %1951 = vmatprep.subr.bf16.mxu0 0
      %1952 = vmatpush2.bf16.msra.mxu0 %v1751
      %1953 = vmatprep.subr.bf16.mxu0 0
      %1954 = vmatpush2.bf16.msra.mxu0 %v1750
      %1955 = vmatprep.subr.bf16.mxu0 0
      %1956 = vmatpush2.bf16.msra.mxu0 %v1749
      %1957 = vmatprep.subr.bf16.mxu0 0
      %1958 = vmatpush2.bf16.msra.mxu0 %v1748
      %1959 = vmatprep.subr.bf16.mxu0 0
      %1960 = vmatpush2.bf16.msra.mxu0 %v1747
      %1961 = vmatprep.subr.bf16.mxu0 0
      %1962 = vmatpush2.bf16.msra.mxu0 %v1746
      %1963 = vmatprep.mubr.bf16.mxu0 %v1208
      %1964 = vmatmul.mubr.bf16.gmra.mxu0 %v1200
      %v1965 = vpop.f32.mrf.mxu0
      %v1966 = vadd.f32 %v1901, %v1965
      %v1967 = vpop.f32.mrf.mxu0
      %v1968 = vpop.f32.mrf.mxu0
      %v1969 = vadd.f32 %v1904, %v1968
      %v1970 = vpop.f32.mrf.mxu0
      %1971 = vmatprep.mubr.bf16.mxu0 %v1209
      %1972 = vmatmul.mubr.bf16.gmra.mxu0 %v1201
      %v1973 = vpop.f32.mrf.mxu0
      %v1974 = vadd.f32 %v1909, %v1973
      %v1975 = vpop.f32.mrf.mxu0
      %v1976 = vpop.f32.mrf.mxu0
      %v1977 = vadd.f32 %v1912, %v1976
      %v1978 = vpop.f32.mrf.mxu0
      %1979 = vmatprep.mubr.bf16.mxu0 %v1210
      %1980 = vmatmul.mubr.bf16.gmra.mxu0 %v1202
      %v1981 = vpop.f32.mrf.mxu0
      %v1982 = vadd.f32 %v1917, %v1981
      %v1983 = vpop.f32.mrf.mxu0
      %v1984 = vpop.f32.mrf.mxu0
      %v1985 = vadd.f32 %v1920, %v1984
      %v1986 = vpop.f32.mrf.mxu0
      %1987 = vmatprep.mubr.bf16.mxu0 %v1211
      %1988 = vmatmul.mubr.bf16.gmra.mxu0 %v1203
      %v1989 = vpop.f32.mrf.mxu0
      %v1990 = vadd.f32 %v1925, %v1989
      %v1991 = vpop.f32.mrf.mxu0
      %v1992 = vpop.f32.mrf.mxu0
      %v1993 = vadd.f32 %v1928, %v1992
      %v1994 = vpop.f32.mrf.mxu0
      %1995 = vdwg.mxu0
      %1996 = vmatprep.subr.bf16.mxu0 0
      %1997 = vmatpush1.bf16.msra.mxu0 %v1761
      %1998 = vmatprep.subr.bf16.mxu0 0
      %1999 = vmatpush1.bf16.msra.mxu0 %v1760
      %2000 = vmatprep.subr.bf16.mxu0 0
      %2001 = vmatpush1.bf16.msra.mxu0 %v1759
      %2002 = vmatprep.subr.bf16.mxu0 0
      %2003 = vmatpush1.bf16.msra.mxu0 %v1758
      %2004 = vmatprep.subr.bf16.mxu0 0
      %2005 = vmatpush1.bf16.msra.mxu0 %v1757
      %2006 = vmatprep.subr.bf16.mxu0 0
      %2007 = vmatpush1.bf16.msra.mxu0 %v1756
      %2008 = vmatprep.subr.bf16.mxu0 0
      %2009 = vmatpush1.bf16.msra.mxu0 %v1755
      %2010 = vmatprep.subr.bf16.mxu0 0
      %2011 = vmatpush1.bf16.msra.mxu0 %v1754
      %2012 = vmatprep.subr.bf16.mxu0 0
      %2013 = vmatpush2.bf16.msra.mxu0 %v1769
      %2014 = vmatprep.subr.bf16.mxu0 0
      %2015 = vmatpush2.bf16.msra.mxu0 %v1768
      %2016 = vmatprep.subr.bf16.mxu0 0
      %2017 = vmatpush2.bf16.msra.mxu0 %v1767
      %2018 = vmatprep.subr.bf16.mxu0 0
      %2019 = vmatpush2.bf16.msra.mxu0 %v1766
      %2020 = vmatprep.subr.bf16.mxu0 0
      %2021 = vmatpush2.bf16.msra.mxu0 %v1765
      %2022 = vmatprep.subr.bf16.mxu0 0
      %2023 = vmatpush2.bf16.msra.mxu0 %v1764
      %2024 = vmatprep.subr.bf16.mxu0 0
      %2025 = vmatpush2.bf16.msra.mxu0 %v1763
      %2026 = vmatprep.subr.bf16.mxu0 0
      %2027 = vmatpush2.bf16.msra.mxu0 %v1762
      %2028 = vmatprep.mubr.bf16.mxu0 %v1248
      %2029 = vmatmul.mubr.bf16.gmra.mxu0 %v1232
      %v2030 = vpop.f32.mrf.mxu0
      %v2031 = vadd.f32 %v1966, %v2030
      %v2032 = vpop.f32.mrf.mxu0
      %v2033 = vpop.f32.mrf.mxu0
      %v2034 = vadd.f32 %v1969, %v2033
      %v2035 = vpop.f32.mrf.mxu0
      %2036 = vmatprep.mubr.bf16.mxu0 %v1249
      %2037 = vmatmul.mubr.bf16.gmra.mxu0 %v1233
      %v2038 = vpop.f32.mrf.mxu0
      %v2039 = vadd.f32 %v1974, %v2038
      %v2040 = vpop.f32.mrf.mxu0
      %v2041 = vpop.f32.mrf.mxu0
      %v2042 = vadd.f32 %v1977, %v2041
      %v2043 = vpop.f32.mrf.mxu0
      %2044 = vmatprep.mubr.bf16.mxu0 %v1250
      %2045 = vmatmul.mubr.bf16.gmra.mxu0 %v1234
      %v2046 = vpop.f32.mrf.mxu0
      %v2047 = vadd.f32 %v1982, %v2046
      %v2048 = vpop.f32.mrf.mxu0
      %v2049 = vpop.f32.mrf.mxu0
      %v2050 = vadd.f32 %v1985, %v2049
      %v2051 = vpop.f32.mrf.mxu0
      %2052 = vmatprep.mubr.bf16.mxu0 %v1251
      %2053 = vmatmul.mubr.bf16.gmra.mxu0 %v1235
      %v2054 = vpop.f32.mrf.mxu0
      %v2055 = vadd.f32 %v1990, %v2054
      %v2056 = vpop.f32.mrf.mxu0
      %v2057 = vpop.f32.mrf.mxu0
      %v2058 = vadd.f32 %v1993, %v2057
      %v2059 = vpop.f32.mrf.mxu0
      %2060 = vdwg.mxu0
      %2061 = vmatprep.subr.bf16.mxu0 0
      %2062 = vmatpush1.bf16.msra.mxu0 %v1777
      %2063 = vmatprep.subr.bf16.mxu0 0
      %2064 = vmatpush1.bf16.msra.mxu0 %v1776
      %2065 = vmatprep.subr.bf16.mxu0 0
      %2066 = vmatpush1.bf16.msra.mxu0 %v1775
      %2067 = vmatprep.subr.bf16.mxu0 0
      %2068 = vmatpush1.bf16.msra.mxu0 %v1774
      %2069 = vmatprep.subr.bf16.mxu0 0
      %2070 = vmatpush1.bf16.msra.mxu0 %v1773
      %2071 = vmatprep.subr.bf16.mxu0 0
      %2072 = vmatpush1.bf16.msra.mxu0 %v1772
      %2073 = vmatprep.subr.bf16.mxu0 0
      %2074 = vmatpush1.bf16.msra.mxu0 %v1771
      %2075 = vmatprep.subr.bf16.mxu0 0
      %2076 = vmatpush1.bf16.msra.mxu0 %v1770
      %2077 = vmatprep.subr.bf16.mxu0 0
      %2078 = vmatpush2.bf16.msra.mxu0 %v1785
      %2079 = vmatprep.subr.bf16.mxu0 0
      %2080 = vmatpush2.bf16.msra.mxu0 %v1784
      %2081 = vmatprep.subr.bf16.mxu0 0
      %2082 = vmatpush2.bf16.msra.mxu0 %v1783
      %2083 = vmatprep.subr.bf16.mxu0 0
      %2084 = vmatpush2.bf16.msra.mxu0 %v1782
      %2085 = vmatprep.subr.bf16.mxu0 0
      %2086 = vmatpush2.bf16.msra.mxu0 %v1781
      %2087 = vmatprep.subr.bf16.mxu0 0
      %2088 = vmatpush2.bf16.msra.mxu0 %v1780
      %2089 = vmatprep.subr.bf16.mxu0 0
      %2090 = vmatpush2.bf16.msra.mxu0 %v1779
      %2091 = vmatprep.subr.bf16.mxu0 0
      %2092 = vmatpush2.bf16.msra.mxu0 %v1778
      %2093 = vmatprep.mubr.bf16.mxu0 %v1266
      %2094 = vmatmul.mubr.bf16.gmra.mxu0 %v1256
      %v2095 = vpop.f32.mrf.mxu0
      %v2096 = vadd.f32 %v2031, %v2095
      %v2097 = vpop.f32.mrf.mxu0
      %v2098 = vpop.f32.mrf.mxu0
      %v2099 = vadd.f32 %v2034, %v2098
      %v2100 = vpop.f32.mrf.mxu0
      %2101 = vmatprep.mubr.bf16.mxu0 %v1267
      %2102 = vmatmul.mubr.bf16.gmra.mxu0 %v1257
      %v2103 = vpop.f32.mrf.mxu0
      %v2104 = vadd.f32 %v2039, %v2103
      %v2105 = vpop.f32.mrf.mxu0
      %v2106 = vpop.f32.mrf.mxu0
      %v2107 = vadd.f32 %v2042, %v2106
      %v2108 = vpop.f32.mrf.mxu0
      %2109 = vmatprep.mubr.bf16.mxu0 %v1268
      %2110 = vmatmul.mubr.bf16.gmra.mxu0 %v1258
      %v2111 = vpop.f32.mrf.mxu0
      %v2112 = vadd.f32 %v2047, %v2111
      %v2113 = vpop.f32.mrf.mxu0
      %v2114 = vpop.f32.mrf.mxu0
      %v2115 = vadd.f32 %v2050, %v2114
      %v2116 = vpop.f32.mrf.mxu0
      %2117 = vmatprep.mubr.bf16.mxu0 %v1269
      %2118 = vmatmul.mubr.bf16.gmra.mxu0 %v1259
      %v2119 = vpop.f32.mrf.mxu0
      %v2120 = vadd.f32 %v2055, %v2119
      %v2121 = vpop.f32.mrf.mxu0
      %v2122 = vpop.f32.mrf.mxu0
      %v2123 = vadd.f32 %v2058, %v2122
      %v2124 = vpop.f32.mrf.mxu0
      %2125 = vdwg.mxu0
      %2126 = vmatprep.subr.bf16.mxu0 0
      %2127 = vmatpush1.bf16.msra.mxu0 %v1793
      %2128 = vmatprep.subr.bf16.mxu0 0
      %2129 = vmatpush1.bf16.msra.mxu0 %v1792
      %2130 = vmatprep.subr.bf16.mxu0 0
      %2131 = vmatpush1.bf16.msra.mxu0 %v1791
      %2132 = vmatprep.subr.bf16.mxu0 0
      %2133 = vmatpush1.bf16.msra.mxu0 %v1790
      %2134 = vmatprep.subr.bf16.mxu0 0
      %2135 = vmatpush1.bf16.msra.mxu0 %v1789
      %2136 = vmatprep.subr.bf16.mxu0 0
      %2137 = vmatpush1.bf16.msra.mxu0 %v1788
      %2138 = vmatprep.subr.bf16.mxu0 0
      %2139 = vmatpush1.bf16.msra.mxu0 %v1787
      %2140 = vmatprep.subr.bf16.mxu0 0
      %2141 = vmatpush1.bf16.msra.mxu0 %v1786
      %2142 = vmatprep.subr.bf16.mxu0 0
      %2143 = vmatpush2.bf16.msra.mxu0 0
      %2144 = vmatprep.subr.bf16.mxu0 0
      %2145 = vmatpush2.bf16.msra.mxu0 0
      %2146 = vmatprep.subr.bf16.mxu0 0
      %2147 = vmatpush2.bf16.msra.mxu0 0
      %2148 = vmatprep.subr.bf16.mxu0 0
      %2149 = vmatpush2.bf16.msra.mxu0 0
      %2150 = vmatprep.subr.bf16.mxu0 0
      %2151 = vmatpush2.bf16.msra.mxu0 0
      %2152 = vmatprep.subr.bf16.mxu0 0
      %2153 = vmatpush2.bf16.msra.mxu0 0
      %2154 = vmatprep.subr.bf16.mxu0 0
      %2155 = vmatpush2.bf16.msra.mxu0 0
      %2156 = vmatprep.subr.bf16.mxu0 0
      %2157 = vmatpush2.bf16.msra.mxu0 0
      %2158 = vmatprep.mubr.bf16.mxu0 0
      %2159 = vmatmul.mubr.bf16.gmra.mxu0 %v1275
      %v2160 = vpop.f32.mrf.mxu0
      %v2161 = vadd.f32 %v2096, %v2160
      %v2162 = vpop.f32.mrf.mxu0
      %v2163 = vpop.f32.mrf.mxu0
      %v2164 = vadd.f32 %v2099, %v2163
      %v2165 = vpop.f32.mrf.mxu0
      %2166 = vmatprep.mubr.bf16.mxu0 0
      %2167 = vmatmul.mubr.bf16.gmra.mxu0 %v1276
      %v2168 = vpop.f32.mrf.mxu0
      %v2169 = vadd.f32 %v2104, %v2168
      %v2170 = vpop.f32.mrf.mxu0
      %v2171 = vpop.f32.mrf.mxu0
      %v2172 = vadd.f32 %v2107, %v2171
      %v2173 = vpop.f32.mrf.mxu0
      %2174 = vmatprep.mubr.bf16.mxu0 0
      %2175 = vmatmul.mubr.bf16.gmra.mxu0 %v1277
      %v2176 = vpop.f32.mrf.mxu0
      %v2177 = vadd.f32 %v2112, %v2176
      %v2178 = vpop.f32.mrf.mxu0
      %v2179 = vpop.f32.mrf.mxu0
      %v2180 = vadd.f32 %v2115, %v2179
      %v2181 = vpop.f32.mrf.mxu0
      %2182 = vmatprep.mubr.bf16.mxu0 0
      %2183 = vmatmul.mubr.bf16.gmra.mxu0 %v1278
      %v2184 = vpop.f32.mrf.mxu0
      %v2185 = vadd.f32 %v2120, %v2184
      %v2186 = vpop.f32.mrf.mxu0
      %v2187 = vpop.f32.mrf.mxu0
      %v2188 = vadd.f32 %v2123, %v2187
      %v2189 = vpop.f32.mrf.mxu0
      %2190 = vdwg.mxu0
      %v2191 = vmax.f32 %v2161, 0.0
      %v2192 = vmax.f32 %v2164, 0.0
      %v2193 = vmax.f32 %v2169, 0.0
      %v2194 = vmax.f32 %v2172, 0.0
      %v2195 = vmax.f32 %v2177, 0.0
      %v2196 = vmax.f32 %v2180, 0.0
      %v2197 = vmax.f32 %v2185, 0.0
      %v2198 = vmax.f32 %v2188, 0.0
      %v2199 = vpack.c.bf16 %v2192, %v2191
      %v2200 = vpack.c.bf16 %v2194, %v2193
      %v2201 = vpack.c.bf16 %v2196, %v2195
      %v2202 = vpack.c.bf16 %v2198, %v2197
      %v2207 = vunpack.c.l.b16 %v2199
      %v2208 = vunpack.c.h.b16 %v2199
      %v2209 = vunpack.c.l.b16 %v2200
      %v2210 = vunpack.c.h.b16 %v2200
      %v2211 = vunpack.c.l.b16 %v2201
      %v2212 = vunpack.c.h.b16 %v2201
      %v2213 = vunpack.c.l.b16 %v2202
      %v2214 = vunpack.c.h.b16 %v2202
      %v2215 = vpack.c.b16 %v2207, %v2207
      %v2216 = vpack.c.b16 %v2208, %v2208
      %v2217 = vpack.c.b16 %v2209, %v2209
      %v2218 = vpack.c.b16 %v2210, %v2210
      %v2219 = vpack.c.b16 %v2211, %v2211
      %v2220 = vpack.c.b16 %v2212, %v2212
      %v2221 = vpack.c.b16 %v2213, %v2213
      %v2222 = vpack.c.b16 %v2214, %v2214
      %2231 = vst [vmem:[%s584] sm:$0xf] %v2215
      %2232 = vst [vmem:[%s584 + $0x4] sm:$0xf] %v2216
      %2233 = vst [vmem:[%s584 + $0x8] sm:$0xf] %v2217
      %2234 = vst [vmem:[%s584 + $0xc] sm:$0xf] %v2218
      %2235 = vst [vmem:[%s584 + $0x10] sm:$0xf] %v2219
      %2236 = vst [vmem:[%s584 + $0x14] sm:$0xf] %v2220
      %2237 = vst [vmem:[%s584 + $0x18] sm:$0xf] %v2221
      %2238 = vst [vmem:[%s584 + $0x1c] sm:$0xf] %v2222
      %s2239 = smul.u32 8, %s24
      %p2240 = scmp.lt.s32.totalorder %s23, 1
      %s2241 = scalar_select %p2240, %s23, 1
      %p2242 = scmp.lt.s32.totalorder %s2239, 7
      %s2243 = scalar_select %p2242, %s2239, 7
      %s2244 = smul.addr %s2241, 8
      %s2245 = sadd.s32 %s2243, %s2244
      %s2246 = smul.addr %s2245, 4
      %s2247 = scalar_lea.vmem %s8, %s2246
      // Predicated region
      $region53: #{encoder_bottleneck_forward.4} parent=51 // pred_check
        %p2248 = pneg %p277
      $region54: #{encoder_bottleneck_forward.4} parent=51 // pred_check_branch
        %2250 = sbr.rel (%p2248) target = $region56
      $region55: #{encoder_bottleneck_forward.4} parent=51 // pred_region
        %s2251 = smul.u32 8, %s24
      $region56: #{encoder_bottleneck_forward.4} parent=51 // pred_fallthru
        _
    $region52: #{encoder_bottleneck_forward.4} parent=5 // pred_fallthru
      _
    %p2252 = scmp.le.s32.totalorder 2, %s14
    // Predicated region
    $region57: #{encoder_bottleneck_forward.4} parent=5 // pred_check
      %p2253 = pneg %p2252
    $region58: #{encoder_bottleneck_forward.4} parent=5 // pred_check_branch
      %2255 = sbr.rel (%p2253) target = $region60
    $region59: #{encoder_bottleneck_forward.4} parent=5 // pred_region
      %s2256 = ssub.s32 %s14, 2
      // Predicated region
      $region61: #{encoder_bottleneck_forward.4} parent=59 // pred_check
        %p2257 = pneg %p283
      $region62: #{encoder_bottleneck_forward.4} parent=59 // pred_check_branch
        %2259 = sbr.rel (%p2257) target = $region64
      $region63: #{encoder_bottleneck_forward.4} parent=59 // pred_region
        %s2260 = smul.u32 8, %s26
        %p2261 = scmp.lt.s32.totalorder %s25, 1
        %s2262 = scalar_select %p2261, %s25, 1
        %p2263 = scmp.lt.s32.totalorder %s2260, 7
        %s2264 = scalar_select %p2263, %s2260, 7
        %s2265 = smul.addr %s2262, 8
        %s2266 = sadd.s32 %s2264, %s2265
        %s2267 = smul.addr %s2266, 4
        %s2268 = scalar_lea.vmem %s8, %s2267
      $region64: #{encoder_bottleneck_forward.4} parent=59 // pred_fallthru
        _
    $region60: #{encoder_bottleneck_forward.4} parent=5 // pred_fallthru
      _
  $region6: #{encoder_bottleneck_forward.4} parent=0 // loop_footer
    %s18 = sadd.s32 1, %s14
  $region7: #{encoder_bottleneck_forward.4} parent=0 // loop_footer_branch
    %13 = sbr.rel target = $region3
  $region8: #{encoder_bottleneck_forward.4} parent=0 // loop_exit
    _

</llo_original>
